<compile_context>
chip_gen: v7x
topology: tpu7x:2x2x1
jax: 0.10.0
libtpu: 0.0.40
codegen_flags: <defaults>
</compile_context>

<pallas_src>
import functools
import math

import jax
import jax.numpy as jnp
from jax.experimental import pallas as pl
from jax.experimental.pallas import tpu as pltpu


# ---------------------------------------------------------------------------
# Feature probe: can Mosaic lower the (M, C) -> (M//wo, wo*C) lane-packing
# reshape used to make output stores lane-dense?  Fall back to the
# channel-minor (masked-store) layout if not.
# ---------------------------------------------------------------------------
@functools.lru_cache(maxsize=None)
def _lane_pack_ok(m_t, wo, c):
    th = m_t // wo

    def probe(x_ref, o_ref):
        o_ref[...] = x_ref[...].reshape(th, wo * c)

    try:
        x = jnp.arange(m_t * c, dtype=jnp.float32).reshape(m_t, c)
        out = pl.pallas_call(
            probe, out_shape=jax.ShapeDtypeStruct((th, wo * c), jnp.float32))(x)
        return bool(jnp.array_equal(out, x.reshape(th, wo * c)))
    except Exception:
        return False


def _pick_row_tile(ho, wo, target_m=256):
    """Largest 8-aligned divisor of ho with ~target_m output rows per tile."""
    cand = max(1, target_m // max(wo, 1))
    for th in range(min(ho, cand), 0, -1):
        if ho % th == 0 and th % 8 == 0:
            return th
    return ho                      # single tile (block == full dim, still legal)


def _tile_bytes(shape, dtype):
    shape = tuple(shape)
    lead = 1
    for d in shape[:-2]:
        lead *= d
    sub = -(-shape[-2] // 8) * 8
    lane = -(-shape[-1] // 128) * 128
    return lead * sub * lane * jnp.dtype(dtype).itemsize


# ---------------------------------------------------------------------------
# Pallas kernel factory: direct conv (wide-K or per-tap) + BN bias
# (+ fused 1x1 projection second output) (+ residual) (+ ReLU)
# ---------------------------------------------------------------------------
def _make_conv_bn_kernel(taps, th, wo, relu, has_residual, has_proj,
                         center_tap, wide_k, pack):
    m_t = th * wo

    def kernel(*refs):
        it = iter(refs)
        x_ref = next(it)                  # (s*s, Hph, Wph, cin) bf16 phase block
        w_ref = next(it)                  # (9*cin, cout) or (9, cin, cout) bf16
        b_ref = next(it)                  # (1, cout) f32 folded BN bias
        wp_ref = bp_ref = r_ref = None
        if has_proj:
            wp_ref = next(it)             # (cin, cout_sc) bf16
            bp_ref = next(it)             # (1, cout_sc)   f32
        if has_residual:
            r_ref = next(it)              # (1, th, wo*c) or (1, m_t, c) bf16
        o_ref = next(it)
        op_ref = next(it) if has_proj else None
        p_scr = next(it) if wide_k else None     # (m_t, 9*cin) bf16 scratch

        cin = x_ref.shape[-1]
        row0 = pl.program_id(1) * th      # row tile within the image

        # Load each tap's (th, wo, cin) slab once (unit-stride static slices).
        slabs = []
        for (p, dh, dw) in taps:          # static unroll (<= 9 taps)
            slab = x_ref[p, pl.ds(row0 + dh, th), pl.ds(dw, wo), :]
            slabs.append(slab.reshape(m_t, cin))

        if wide_k:
            # Assemble the (m_t, 9*cin) patch in VMEM scratch -> single MXU pass.
            for t, sl in enumerate(slabs):
                p_scr[:, t * cin:(t + 1) * cin] = sl
            acc = jnp.dot(p_scr[...], w_ref[...],
                          preferred_element_type=jnp.float32)
        else:
            acc = None
            for t, sl in enumerate(slabs):
                c = jnp.dot(sl, w_ref[t], preferred_element_type=jnp.float32)
                acc = c if acc is None else acc + c

        def epilogue(y, bias, res_ref, do_relu, out_ref):
            y = y + bias                              # folded BN bias (f32)
            if pack:
                y = y.reshape(th, wo * y.shape[-1])   # lane-pack: (th, wo*c)
            if res_ref is not None:
                y = y + res_ref[0].astype(jnp.float32)
            if do_relu:
                y = jnp.maximum(y, 0.0)
            out_ref[0] = y.astype(out_ref.dtype)

        epilogue(acc, b_ref[...], r_ref, relu, o_ref)

        if has_proj:                                  # fused 1x1 projection shortcut
            sc = jnp.dot(slabs[center_tap], wp_ref[...],
                         preferred_element_type=jnp.float32)
            epilogue(sc, bp_ref[...], None, False, op_ref)

    return kernel


# ---------------------------------------------------------------------------
# Wrapper: fused conv + BN (+ fused projection) (+ residual) (+ ReLU), NHWC
# ---------------------------------------------------------------------------
def conv_bn(x_nhwc, w_oihw, bn, stride, relu, residual_nhwc=None, proj=None,
            out_dtype=jnp.bfloat16):
    cout, cin, kh, kw = w_oihw.shape
    n, h, w, _ = x_nhwc.shape
    pad = (kh - 1) // 2                   # 1 for 3x3, 0 for 1x1 (PyTorch spec)
    s = stride
    ho = (h + 2 * pad - kh) // s + 1
    wo = (w + 2 * pad - kw) // s + 1
    n_taps = kh * kw

    # ---- fold inference BN into the conv (scale -> weights, bias streamed) --
    def fold_bn(w_, bn_):
        co = w_.shape[0]
        gamma, beta, mean, var, eps = bn_
        scale = gamma * jax.lax.rsqrt(var + eps)
        bias = (beta - mean * scale).reshape(1, co).astype(jnp.float32)
        w_hwio = jnp.transpose(w_, (2, 3, 1, 0)) * scale
        return w_hwio, bias

    w_hwio, bias = fold_bn(w_oihw, bn)
    wide_k = cin < 128                    # single wide-K contraction for small cin
    if wide_k:
        w_taps = w_hwio.reshape(n_taps * cin, cout).astype(jnp.bfloat16)
    else:
        w_taps = w_hwio.reshape(n_taps, cin, cout).astype(jnp.bfloat16)

    has_proj = proj is not None
    if has_proj:
        w_sc_oihw, bn_sc = proj
        cout_sc = w_sc_oihw.shape[0]
        assert kh == 3 and kw == 3 and w_sc_oihw.shape[2:] == (1, 1)
        wsc_hwio, bias_sc = fold_bn(w_sc_oihw, bn_sc)
        w_sc = wsc_hwio.reshape(cin, cout_sc).astype(jnp.bfloat16)

    # ---- padded (and, for stride>1, phase-decomposed) bf16 input -----------
    xb = x_nhwc.astype(jnp.bfloat16)
    xp = jnp.pad(xb, ((0, 0), (pad, pad), (pad, pad), (0, 0)))
    hp, wp = h + 2 * pad, w + 2 * pad
    if s == 1:                            # no phase transpose needed
        hph, wph = hp, wp
        phases = xp
    else:
        hp2, wp2 = -(-hp // s) * s, -(-wp // s) * s
        if (hp2, wp2) != (hp, wp):
            xp = jnp.pad(xp, ((0, 0), (0, hp2 - hp), (0, wp2 - wp), (0, 0)))
        hph, wph = hp2 // s, wp2 // s
        phases = xp.reshape(n, hph, s, wph, s, cin)
        phases = jnp.transpose(phases, (0, 2, 4, 1, 3, 5))
    phases = phases.reshape(n * s * s, hph, wph, cin)

    # Tap (ih, iw) reads phase (ih%s)*s + (iw%s) at offset (ih//s, iw//s).
    taps = tuple(((ih % s) * s + (iw % s), ih // s, iw // s)
                 for ih in range(kh) for iw in range(kw))
    center_tap = (kh // 2) * kw + (kw // 2)   # == the 1x1 projection's tap

    th = _pick_row_tile(ho, wo)
    n_tiles = ho // th
    m_t = th * wo

    pack = cout < 128 and _lane_pack_ok(m_t, wo, cout)
    if has_proj:
        pack = pack and cout_sc < 128 and _lane_pack_ok(m_t, wo, cout_sc)

    # ---- specs / args -------------------------------------------------------
    vmem_items = []
    in_specs = [
        pl.BlockSpec((s * s, hph, wph, cin), lambda i, j: (i, 0, 0, 0)),
        pl.BlockSpec(w_taps.shape, lambda i, j: (0,) * w_taps.ndim),
        pl.BlockSpec((1, cout), lambda i, j: (0, 0)),
    ]
    args = [phases, w_taps, bias]
    vmem_items += [((s * s, hph, wph, cin), jnp.bfloat16),
                   (w_taps.shape, jnp.bfloat16), ((1, cout), jnp.float32)]
    if has_proj:
        in_specs += [pl.BlockSpec((cin, cout_sc), lambda i, j: (0, 0)),
                     pl.BlockSpec((1, cout_sc), lambda i, j: (0, 0))]
        args += [w_sc, bias_sc]
        vmem_items += [((cin, cout_sc), jnp.bfloat16), ((1, cout_sc), jnp.float32)]

    has_residual = residual_nhwc is not None
    if has_residual:
        assert residual_nhwc.shape == (n, ho, wo, cout)
        res = residual_nhwc.astype(jnp.bfloat16)
        if pack:
            res = res.reshape(n, ho, wo * cout)
            in_specs.append(pl.BlockSpec((1, th, wo * cout), lambda i, j: (i, j, 0)))
            vmem_items.append(((1, th, wo * cout), jnp.bfloat16))
        else:
            res = res.reshape(n, ho * wo, cout)
            in_specs.append(pl.BlockSpec((1, m_t, cout), lambda i, j: (i, j, 0)))
            vmem_items.append(((1, m_t, cout), jnp.bfloat16))
        args.append(res)

    def out_entry(c, dt):
        if pack:
            return (jax.ShapeDtypeStruct((n, ho, wo * c), dt),
                    pl.BlockSpec((1, th, wo * c), lambda i, j: (i, j, 0)),
                    ((1, th, wo * c), dt))
        return (jax.ShapeDtypeStruct((n, ho * wo, c), dt),
                pl.BlockSpec((1, m_t, c), lambda i, j: (i, j, 0)),
                ((1, m_t, c), dt))

    out_shapes, out_specs = [], []
    sds, spec, vi = out_entry(cout, out_dtype)
    out_shapes.append(sds); out_specs.append(spec); vmem_items.append(vi)
    if has_proj:
        sds, spec, vi = out_entry(cout_sc, jnp.bfloat16)
        out_shapes.append(sds); out_specs.append(spec); vmem_items.append(vi)

    scratch_shapes = []
    if wide_k:
        scratch_shapes.append(pltpu.VMEM((m_t, n_taps * cin), jnp.bfloat16))
        vmem_items.append(((m_t, n_taps * cin), jnp.bfloat16))

    # ---- cost estimate + VMEM budget ---------------------------------------
    flops = 2 * n * ho * wo * n_taps * cin * cout
    if has_proj:
        flops += 2 * n * ho * wo * cin * cout_sc
    bytes_accessed = sum(int(a.size) * a.dtype.itemsize for a in args)
    bytes_accessed += sum(math.prod(o.shape) * jnp.dtype(o.dtype).itemsize
                          for o in out_shapes)
    vmem_need = 2 * sum(_tile_bytes(sh, dt) for sh, dt in vmem_items) + (4 << 20)
    # TODO(synk): on v7x (64 MiB physical VMEM) shrink the row tile for large
    #             stages instead of just raising the limit.
    vmem_limit = int(max(vmem_need, 32 << 20))

    kernel = _make_conv_bn_kernel(taps, th, wo, relu, has_residual, has_proj,
                                  center_tap, wide_k, pack)

    outs = pl.pallas_call(
        kernel,
        out_shape=tuple(out_shapes),
        grid_spec=pltpu.PrefetchScalarGridSpec(
            num_scalar_prefetch=0,
            grid=(n, n_tiles),                 # batch x row-tiles, both parallel
            in_specs=in_specs,
            out_specs=tuple(out_specs),
            scratch_shapes=tuple(scratch_shapes),
        ),
        compiler_params=pltpu.CompilerParams(
            dimension_semantics=("parallel", "parallel"),
            vmem_limit_bytes=vmem_limit),
        cost_estimate=pl.CostEstimate(flops=int(flops), transcendentals=0,
                                      bytes_accessed=int(bytes_accessed)),
    )(*args)

    out_main = outs[0].reshape(n, ho, wo, cout)
    if has_proj:
        return out_main, outs[1].reshape(n, ho, wo, cout_sc)
    return out_main


# ---------------------------------------------------------------------------
# BasicBlock parameters + forward (public interface is NCHW, like PyTorch)
# ---------------------------------------------------------------------------
def init_basic_block_params(key, in_planes, planes, stride, expansion=1):
    def bn_params(k, c):
        k1, k2, k3, k4 = jax.random.split(k, 4)
        gamma = 1.0 + 0.1 * jax.random.normal(k1, (c,), jnp.float32)
        beta = 0.1 * jax.random.normal(k2, (c,), jnp.float32)
        mean = 0.1 * jax.random.normal(k3, (c,), jnp.float32)
        var = 0.5 + jax.random.uniform(k4, (c,), jnp.float32)
        return (gamma, beta, mean, var, jnp.float32(1e-5))

    keys = jax.random.split(key, 6)
    params = {
        "w1": 0.1 * jax.random.normal(keys[0], (planes, in_planes, 3, 3), jnp.float32),
        "bn1": bn_params(keys[1], planes),
        "w2": 0.1 * jax.random.normal(keys[2], (planes, planes, 3, 3), jnp.float32),
        "bn2": bn_params(keys[3], planes),
    }
    if stride != 1 or in_planes != expansion * planes:
        params["w_sc"] = 0.1 * jax.random.normal(
            keys[4], (expansion * planes, in_planes, 1, 1), jnp.float32)
        params["bn_sc"] = bn_params(keys[5], expansion * planes)
    return params


@functools.partial(jax.jit, static_argnums=(2,))
def basic_block_forward(params, x_nchw, stride):
    x = jnp.transpose(x_nchw, (0, 2, 3, 1))                 # NCHW -> NHWC
    if "w_sc" in params:
        # Projection shortcut fused into the conv1 pallas_call: x read once.
        out1, shortcut = conv_bn(x, params["w1"], params["bn1"], stride,
                                 relu=True,
                                 proj=(params["w_sc"], params["bn_sc"]))
    else:
        out1 = conv_bn(x, params["w1"], params["bn1"], stride, relu=True)
        shortcut = x.astype(jnp.bfloat16)                   # bf16 residual
    out = conv_bn(out1, params["w2"], params["bn2"], 1, relu=True,
                  residual_nhwc=shortcut, out_dtype=jnp.float32)
    return jnp.transpose(out, (0, 3, 1, 2))                 # NHWC -> NCHW


# ---------------------------------------------------------------------------
# Pure-JAX f32 reference (sanity check)
# ---------------------------------------------------------------------------
def _ref_conv_bn(x_nhwc, w_oihw, bn, stride, relu, residual=None):
    kh = w_oihw.shape[2]
    pad = (kh - 1) // 2
    y = jax.lax.conv_general_dilated(
        x_nhwc, jnp.transpose(w_oihw, (2, 3, 1, 0)),
        window_strides=(stride, stride), padding=[(pad, pad), (pad, pad)],
        dimension_numbers=("NHWC", "HWIO", "NHWC"))
    gamma, beta, mean, var, eps = bn
    y = (y - mean) / jnp.sqrt(var + eps) * gamma + beta
    if residual is not None:
        y = y + residual
    if relu:
        y = jnp.maximum(y, 0.0)
    return y


def _ref_forward(params, x_nchw, stride):
    x = jnp.transpose(x_nchw, (0, 2, 3, 1))
    out = _ref_conv_bn(x, params["w1"], params["bn1"], stride, relu=True)
    if "w_sc" in params:
        shortcut = _ref_conv_bn(x, params["w_sc"], params["bn_sc"], stride, relu=False)
    else:
        shortcut = x
    out = _ref_conv_bn(out, params["w2"], params["bn2"], 1, relu=True,
                       residual=shortcut)
    return jnp.transpose(out, (0, 3, 1, 2))


if __name__ == "__main__":
    key = jax.random.PRNGKey(0)
    kx, kA, kB, kC, kxc = jax.random.split(key, 5)

    # Case A: stride=1, identity shortcut (NCHW 2x4x16x16)
    xa = jax.random.normal(kx, (2, 4, 16, 16), jnp.float32)
    params_a = init_basic_block_params(kA, in_planes=4, planes=4, stride=1)
    out_a = jax.block_until_ready(basic_block_forward(params_a, xa, 1))
    ref_a = _ref_forward(params_a, xa, 1)

    # Case B: stride=2, fused 1x1-conv + BN projection shortcut (-> 2x8x8x8)
    params_b = init_basic_block_params(kB, in_planes=4, planes=8, stride=2)
    out_b = jax.block_until_ready(basic_block_forward(params_b, xa, 2))
    ref_b = _ref_forward(params_b, xa, 2)

    # Case C: stride=1 at 32x32 with 8 channels — exercises the row-tile grid.
    xc = jax.random.normal(kxc, (2, 8, 32, 32), jnp.float32)
    params_c = init_basic_block_params(kC, in_planes=8, planes=8, stride=1)
    out_c = jax.block_until_ready(basic_block_forward(params_c, xc, 1))
    ref_c = _ref_forward(params_c, xc, 1)

    assert out_a.shape == (2, 4, 16, 16), out_a.shape
    assert out_b.shape == (2, 8, 8, 8), out_b.shape
    assert out_c.shape == (2, 8, 32, 32), out_c.shape

    # bf16 matmul operands / bf16 intermediates (f32 accumulation) vs. f32 ref.
    for name, o, r in (("A", out_a, ref_a), ("B", out_b, ref_b), ("C", out_c, ref_c)):
        err = float(jnp.max(jnp.abs(o - r)))
        assert jnp.allclose(o, r, rtol=3e-2, atol=3e-2), (name, err)

    print("KERNEL_OK")
</pallas_src>

<mosaic_0001>
module attributes {stable_mosaic.version = 11 : i64} {
  func.func @kernel(%arg0: i32, %arg1: i32, %arg2: memref<1x18x18x4xbf16, #tpu.memory_space<vmem>>, %arg3: memref<36x4xbf16, #tpu.memory_space<vmem>>, %arg4: memref<1x4xf32, #tpu.memory_space<vmem>>, %arg5: memref<1x256x4xbf16, #tpu.memory_space<vmem>>, %arg6: memref<256x36xbf16, #tpu.memory_space<vmem>>) attributes {dimension_semantics = [#tpu.dimension_semantics<parallel>, #tpu.dimension_semantics<parallel>], iteration_bounds = array<i64: 2, 1>, scalar_prefetch = 0 : i64, scratch_operands = 1 : i64, tpu.core_type = #tpu.core_type<tc>, window_params = [{transform_indices = @transform_0, window_bounds = array<i64: 1, 18, 18, 4>}, {pipeline_mode = #tpu.pipeline_mode<synchronous>, transform_indices = @transform_1, window_bounds = array<i64: 36, 4>}, {pipeline_mode = #tpu.pipeline_mode<synchronous>, transform_indices = @transform_2, window_bounds = array<i64: 1, 4>}, {transform_indices = @transform_3, window_bounds = array<i64: 1, 256, 4>}]} {
    %c16_i32 = arith.constant 16 : i32
    %0 = arith.muli %arg1, %c16_i32 : i32
    %c0_i32 = arith.constant 0 : i32
    %1 = arith.addi %0, %c0_i32 : i32
    %c0 = arith.constant 0 : index
    %2 = arith.index_cast %1 : i32 to index
    %c0_0 = arith.constant 0 : index
    %c0_1 = arith.constant 0 : index
    %3 = vector.load %arg2[%c0, %2, %c0_0, %c0_1] : memref<1x18x18x4xbf16, #tpu.memory_space<vmem>>, vector<1x16x16x4xbf16>
    %4 = vector.shape_cast %3 : vector<1x16x16x4xbf16> to vector<16x16x4xbf16>
    %5 = vector.shape_cast %4 : vector<16x16x4xbf16> to vector<256x4xbf16>
    %c0_i32_2 = arith.constant 0 : i32
    %6 = arith.addi %0, %c0_i32_2 : i32
    %c0_3 = arith.constant 0 : index
    %7 = arith.index_cast %6 : i32 to index
    %c1 = arith.constant 1 : index
    %c0_4 = arith.constant 0 : index
    %8 = vector.load %arg2[%c0_3, %7, %c1, %c0_4] : memref<1x18x18x4xbf16, #tpu.memory_space<vmem>>, vector<1x16x16x4xbf16>
    %9 = vector.shape_cast %8 : vector<1x16x16x4xbf16> to vector<16x16x4xbf16>
    %10 = vector.shape_cast %9 : vector<16x16x4xbf16> to vector<256x4xbf16>
    %c0_i32_5 = arith.constant 0 : i32
    %11 = arith.addi %0, %c0_i32_5 : i32
    %c0_6 = arith.constant 0 : index
    %12 = arith.index_cast %11 : i32 to index
    %c2 = arith.constant 2 : index
    %c0_7 = arith.constant 0 : index
    %13 = vector.load %arg2[%c0_6, %12, %c2, %c0_7] : memref<1x18x18x4xbf16, #tpu.memory_space<vmem>>, vector<1x16x16x4xbf16>
    %14 = vector.shape_cast %13 : vector<1x16x16x4xbf16> to vector<16x16x4xbf16>
    %15 = vector.shape_cast %14 : vector<16x16x4xbf16> to vector<256x4xbf16>
    %c1_i32 = arith.constant 1 : i32
    %16 = arith.addi %0, %c1_i32 : i32
    %c0_8 = arith.constant 0 : index
    %17 = arith.index_cast %16 : i32 to index
    %c0_9 = arith.constant 0 : index
    %c0_10 = arith.constant 0 : index
    %18 = vector.load %arg2[%c0_8, %17, %c0_9, %c0_10] : memref<1x18x18x4xbf16, #tpu.memory_space<vmem>>, vector<1x16x16x4xbf16>
    %19 = vector.shape_cast %18 : vector<1x16x16x4xbf16> to vector<16x16x4xbf16>
    %20 = vector.shape_cast %19 : vector<16x16x4xbf16> to vector<256x4xbf16>
    %c1_i32_11 = arith.constant 1 : i32
    %21 = arith.addi %0, %c1_i32_11 : i32
    %c0_12 = arith.constant 0 : index
    %22 = arith.index_cast %21 : i32 to index
    %c1_13 = arith.constant 1 : index
    %c0_14 = arith.constant 0 : index
    %23 = vector.load %arg2[%c0_12, %22, %c1_13, %c0_14] : memref<1x18x18x4xbf16, #tpu.memory_space<vmem>>, vector<1x16x16x4xbf16>
    %24 = vector.shape_cast %23 : vector<1x16x16x4xbf16> to vector<16x16x4xbf16>
    %25 = vector.shape_cast %24 : vector<16x16x4xbf16> to vector<256x4xbf16>
    %c1_i32_15 = arith.constant 1 : i32
    %26 = arith.addi %0, %c1_i32_15 : i32
    %c0_16 = arith.constant 0 : index
    %27 = arith.index_cast %26 : i32 to index
    %c2_17 = arith.constant 2 : index
    %c0_18 = arith.constant 0 : index
    %28 = vector.load %arg2[%c0_16, %27, %c2_17, %c0_18] : memref<1x18x18x4xbf16, #tpu.memory_space<vmem>>, vector<1x16x16x4xbf16>
    %29 = vector.shape_cast %28 : vector<1x16x16x4xbf16> to vector<16x16x4xbf16>
    %30 = vector.shape_cast %29 : vector<16x16x4xbf16> to vector<256x4xbf16>
    %c2_i32 = arith.constant 2 : i32
    %31 = arith.addi %0, %c2_i32 : i32
    %c0_19 = arith.constant 0 : index
    %32 = arith.index_cast %31 : i32 to index
    %c0_20 = arith.constant 0 : index
    %c0_21 = arith.constant 0 : index
    %33 = vector.load %arg2[%c0_19, %32, %c0_20, %c0_21] : memref<1x18x18x4xbf16, #tpu.memory_space<vmem>>, vector<1x16x16x4xbf16>
    %34 = vector.shape_cast %33 : vector<1x16x16x4xbf16> to vector<16x16x4xbf16>
    %35 = vector.shape_cast %34 : vector<16x16x4xbf16> to vector<256x4xbf16>
    %c2_i32_22 = arith.constant 2 : i32
    %36 = arith.addi %0, %c2_i32_22 : i32
    %c0_23 = arith.constant 0 : index
    %37 = arith.index_cast %36 : i32 to index
    %c1_24 = arith.constant 1 : index
    %c0_25 = arith.constant 0 : index
    %38 = vector.load %arg2[%c0_23, %37, %c1_24, %c0_25] : memref<1x18x18x4xbf16, #tpu.memory_space<vmem>>, vector<1x16x16x4xbf16>
    %39 = vector.shape_cast %38 : vector<1x16x16x4xbf16> to vector<16x16x4xbf16>
    %40 = vector.shape_cast %39 : vector<16x16x4xbf16> to vector<256x4xbf16>
    %c2_i32_26 = arith.constant 2 : i32
    %41 = arith.addi %0, %c2_i32_26 : i32
    %c0_27 = arith.constant 0 : index
    %42 = arith.index_cast %41 : i32 to index
    %c2_28 = arith.constant 2 : index
    %c0_29 = arith.constant 0 : index
    %43 = vector.load %arg2[%c0_27, %42, %c2_28, %c0_29] : memref<1x18x18x4xbf16, #tpu.memory_space<vmem>>, vector<1x16x16x4xbf16>
    %44 = vector.shape_cast %43 : vector<1x16x16x4xbf16> to vector<16x16x4xbf16>
    %45 = vector.shape_cast %44 : vector<16x16x4xbf16> to vector<256x4xbf16>
    %c0_30 = arith.constant 0 : index
    %c0_31 = arith.constant 0 : index
    %46 = vector.load %arg6[%c0_30, %c0_31] : memref<256x36xbf16, #tpu.memory_space<vmem>>, vector<256x4xbf16>
    tpu.vector_store %arg6[%c0_30, %c0_31], %5 {strides = array<i32>} : memref<256x36xbf16, #tpu.memory_space<vmem>>, vector<256x4xbf16>,
    %c0_32 = arith.constant 0 : index
    %c4 = arith.constant 4 : index
    %47 = vector.load %arg6[%c0_32, %c4] : memref<256x36xbf16, #tpu.memory_space<vmem>>, vector<256x4xbf16>
    tpu.vector_store %arg6[%c0_32, %c4], %10 {strides = array<i32>} : memref<256x36xbf16, #tpu.memory_space<vmem>>, vector<256x4xbf16>,
    %c0_33 = arith.constant 0 : index
    %c8 = arith.constant 8 : index
    %48 = vector.load %arg6[%c0_33, %c8] : memref<256x36xbf16, #tpu.memory_space<vmem>>, vector<256x4xbf16>
    tpu.vector_store %arg6[%c0_33, %c8], %15 {strides = array<i32>} : memref<256x36xbf16, #tpu.memory_space<vmem>>, vector<256x4xbf16>,
    %c0_34 = arith.constant 0 : index
    %c12 = arith.constant 12 : index
    %49 = vector.load %arg6[%c0_34, %c12] : memref<256x36xbf16, #tpu.memory_space<vmem>>, vector<256x4xbf16>
    tpu.vector_store %arg6[%c0_34, %c12], %20 {strides = array<i32>} : memref<256x36xbf16, #tpu.memory_space<vmem>>, vector<256x4xbf16>,
    %c0_35 = arith.constant 0 : index
    %c16 = arith.constant 16 : index
    %50 = vector.load %arg6[%c0_35, %c16] : memref<256x36xbf16, #tpu.memory_space<vmem>>, vector<256x4xbf16>
    tpu.vector_store %arg6[%c0_35, %c16], %25 {strides = array<i32>} : memref<256x36xbf16, #tpu.memory_space<vmem>>, vector<256x4xbf16>,
    %c0_36 = arith.constant 0 : index
    %c20 = arith.constant 20 : index
    %51 = vector.load %arg6[%c0_36, %c20] : memref<256x36xbf16, #tpu.memory_space<vmem>>, vector<256x4xbf16>
    tpu.vector_store %arg6[%c0_36, %c20], %30 {strides = array<i32>} : memref<256x36xbf16, #tpu.memory_space<vmem>>, vector<256x4xbf16>,
    %c0_37 = arith.constant 0 : index
    %c24 = arith.constant 24 : index
    %52 = vector.load %arg6[%c0_37, %c24] : memref<256x36xbf16, #tpu.memory_space<vmem>>, vector<256x4xbf16>
    tpu.vector_store %arg6[%c0_37, %c24], %35 {strides = array<i32>} : memref<256x36xbf16, #tpu.memory_space<vmem>>, vector<256x4xbf16>,
    %c0_38 = arith.constant 0 : index
    %c28 = arith.constant 28 : index
    %53 = vector.load %arg6[%c0_38, %c28] : memref<256x36xbf16, #tpu.memory_space<vmem>>, vector<256x4xbf16>
    tpu.vector_store %arg6[%c0_38, %c28], %40 {strides = array<i32>} : memref<256x36xbf16, #tpu.memory_space<vmem>>, vector<256x4xbf16>,
    %c0_39 = arith.constant 0 : index
    %c32 = arith.constant 32 : index
    %54 = vector.load %arg6[%c0_39, %c32] : memref<256x36xbf16, #tpu.memory_space<vmem>>, vector<256x4xbf16>
    tpu.vector_store %arg6[%c0_39, %c32], %45 {strides = array<i32>} : memref<256x36xbf16, #tpu.memory_space<vmem>>, vector<256x4xbf16>,
    %c0_40 = arith.constant 0 : index
    %c0_41 = arith.constant 0 : index
    %55 = vector.load %arg6[%c0_40, %c0_41] : memref<256x36xbf16, #tpu.memory_space<vmem>>, vector<256x36xbf16>
    %c0_42 = arith.constant 0 : index
    %c0_43 = arith.constant 0 : index
    %56 = vector.load %arg3[%c0_42, %c0_43] : memref<36x4xbf16, #tpu.memory_space<vmem>>, vector<36x4xbf16>
    %cst = arith.constant dense<0.000000e+00> : vector<256x4xf32>
    %57 = tpu.matmul %55, %56, %cst {dimension_numbers = #tpu.dot_dimension_numbers<[1], [0], [0], [1], [0, 0, 1, 1], [], []>} : vector<256x36xbf16>, vector<36x4xbf16>, vector<256x4xf32> -> vector<256x4xf32>
    %c0_44 = arith.constant 0 : index
    %c0_45 = arith.constant 0 : index
    %58 = vector.load %arg4[%c0_44, %c0_45] : memref<1x4xf32, #tpu.memory_space<vmem>>, vector<1x4xf32>
    %59 = vector.broadcast %58 : vector<1x4xf32> to vector<256x4xf32>
    %60 = arith.addf %57, %59 : vector<256x4xf32>
    %cst_46 = arith.constant 0.000000e+00 : f32
    %61 = vector.broadcast %cst_46 : f32 to vector<256x4xf32>
    %62 = arith.maximumf %60, %61 : vector<256x4xf32>
    %63 = arith.truncf %62 : vector<256x4xf32> to vector<256x4xbf16>
    %c0_47 = arith.constant 0 : index
    %c0_48 = arith.constant 0 : index
    %c0_49 = arith.constant 0 : index
    %64 = vector.load %arg5[%c0_47, %c0_48, %c0_49] : memref<1x256x4xbf16, #tpu.memory_space<vmem>>, vector<1x256x4xbf16>
    %65 = vector.shape_cast %64 : vector<1x256x4xbf16> to vector<256x4xbf16>
    %66 = vector.shape_cast %63 : vector<256x4xbf16> to vector<1x256x4xbf16>
    tpu.vector_store %arg5[%c0_47, %c0_48, %c0_49], %66 {strides = array<i32>} : memref<1x256x4xbf16, #tpu.memory_space<vmem>>, vector<1x256x4xbf16>,
    return
  }
  func.func @transform_0(%arg0: i32, %arg1: i32) -> (i32, i32, i32, i32) {
    %c0_i32 = arith.constant 0 : i32
    %c0_i32_0 = arith.constant 0 : i32
    %c0_i32_1 = arith.constant 0 : i32
    %c0_i32_2 = arith.constant 0 : i32
    return %arg0, %c0_i32, %c0_i32_0, %c0_i32_1 : i32, i32, i32, i32
  }
  func.func @transform_1(%arg0: i32, %arg1: i32) -> (i32, i32) {
    %c0_i32 = arith.constant 0 : i32
    %c0_i32_0 = arith.constant 0 : i32
    %c0_i32_1 = arith.constant 0 : i32
    return %c0_i32, %c0_i32_0 : i32, i32
  }
  func.func @transform_2(%arg0: i32, %arg1: i32) -> (i32, i32) {
    %c0_i32 = arith.constant 0 : i32
    %c0_i32_0 = arith.constant 0 : i32
    %c0_i32_1 = arith.constant 0 : i32
    return %c0_i32, %c0_i32_0 : i32, i32
  }
  func.func @transform_3(%arg0: i32, %arg1: i32) -> (i32, i32, i32) {
    %c0_i32 = arith.constant 0 : i32
    %c0_i32_0 = arith.constant 0 : i32
    return %arg0, %arg1, %c0_i32 : i32, i32, i32
  }
}

module attributes {stable_mosaic.version = 11 : i64} {
  func.func @kernel(%arg0: i32, %arg1: i32, %arg2: memref<1x18x18x4xbf16, #tpu.memory_space<vmem>>, %arg3: memref<36x4xbf16, #tpu.memory_space<vmem>>, %arg4: memref<1x4xf32, #tpu.memory_space<vmem>>, %arg5: memref<1x256x4xbf16, #tpu.memory_space<vmem>>, %arg6: memref<1x256x4xf32, #tpu.memory_space<vmem>>, %arg7: memref<256x36xbf16, #tpu.memory_space<vmem>>) attributes {dimension_semantics = [#tpu.dimension_semantics<parallel>, #tpu.dimension_semantics<parallel>], iteration_bounds = array<i64: 2, 1>, scalar_prefetch = 0 : i64, scratch_operands = 1 : i64, tpu.core_type = #tpu.core_type<tc>, window_params = [{transform_indices = @transform_0, window_bounds = array<i64: 1, 18, 18, 4>}, {pipeline_mode = #tpu.pipeline_mode<synchronous>, transform_indices = @transform_1, window_bounds = array<i64: 36, 4>}, {pipeline_mode = #tpu.pipeline_mode<synchronous>, transform_indices = @transform_2, window_bounds = array<i64: 1, 4>}, {transform_indices = @transform_3, window_bounds = array<i64: 1, 256, 4>}, {transform_indices = @transform_4, window_bounds = array<i64: 1, 256, 4>}]} {
    %c16_i32 = arith.constant 16 : i32
    %0 = arith.muli %arg1, %c16_i32 : i32
    %c0_i32 = arith.constant 0 : i32
    %1 = arith.addi %0, %c0_i32 : i32
    %c0 = arith.constant 0 : index
    %2 = arith.index_cast %1 : i32 to index
    %c0_0 = arith.constant 0 : index
    %c0_1 = arith.constant 0 : index
    %3 = vector.load %arg2[%c0, %2, %c0_0, %c0_1] : memref<1x18x18x4xbf16, #tpu.memory_space<vmem>>, vector<1x16x16x4xbf16>
    %4 = vector.shape_cast %3 : vector<1x16x16x4xbf16> to vector<16x16x4xbf16>
    %5 = vector.shape_cast %4 : vector<16x16x4xbf16> to vector<256x4xbf16>
    %c0_i32_2 = arith.constant 0 : i32
    %6 = arith.addi %0, %c0_i32_2 : i32
    %c0_3 = arith.constant 0 : index
    %7 = arith.index_cast %6 : i32 to index
    %c1 = arith.constant 1 : index
    %c0_4 = arith.constant 0 : index
    %8 = vector.load %arg2[%c0_3, %7, %c1, %c0_4] : memref<1x18x18x4xbf16, #tpu.memory_space<vmem>>, vector<1x16x16x4xbf16>
    %9 = vector.shape_cast %8 : vector<1x16x16x4xbf16> to vector<16x16x4xbf16>
    %10 = vector.shape_cast %9 : vector<16x16x4xbf16> to vector<256x4xbf16>
    %c0_i32_5 = arith.constant 0 : i32
    %11 = arith.addi %0, %c0_i32_5 : i32
    %c0_6 = arith.constant 0 : index
    %12 = arith.index_cast %11 : i32 to index
    %c2 = arith.constant 2 : index
    %c0_7 = arith.constant 0 : index
    %13 = vector.load %arg2[%c0_6, %12, %c2, %c0_7] : memref<1x18x18x4xbf16, #tpu.memory_space<vmem>>, vector<1x16x16x4xbf16>
    %14 = vector.shape_cast %13 : vector<1x16x16x4xbf16> to vector<16x16x4xbf16>
    %15 = vector.shape_cast %14 : vector<16x16x4xbf16> to vector<256x4xbf16>
    %c1_i32 = arith.constant 1 : i32
    %16 = arith.addi %0, %c1_i32 : i32
    %c0_8 = arith.constant 0 : index
    %17 = arith.index_cast %16 : i32 to index
    %c0_9 = arith.constant 0 : index
    %c0_10 = arith.constant 0 : index
    %18 = vector.load %arg2[%c0_8, %17, %c0_9, %c0_10] : memref<1x18x18x4xbf16, #tpu.memory_space<vmem>>, vector<1x16x16x4xbf16>
    %19 = vector.shape_cast %18 : vector<1x16x16x4xbf16> to vector<16x16x4xbf16>
    %20 = vector.shape_cast %19 : vector<16x16x4xbf16> to vector<256x4xbf16>
    %c1_i32_11 = arith.constant 1 : i32
    %21 = arith.addi %0, %c1_i32_11 : i32
    %c0_12 = arith.constant 0 : index
    %22 = arith.index_cast %21 : i32 to index
    %c1_13 = arith.constant 1 : index
    %c0_14 = arith.constant 0 : index
    %23 = vector.load %arg2[%c0_12, %22, %c1_13, %c0_14] : memref<1x18x18x4xbf16, #tpu.memory_space<vmem>>, vector<1x16x16x4xbf16>
    %24 = vector.shape_cast %23 : vector<1x16x16x4xbf16> to vector<16x16x4xbf16>
    %25 = vector.shape_cast %24 : vector<16x16x4xbf16> to vector<256x4xbf16>
    %c1_i32_15 = arith.constant 1 : i32
    %26 = arith.addi %0, %c1_i32_15 : i32
    %c0_16 = arith.constant 0 : index
    %27 = arith.index_cast %26 : i32 to index
    %c2_17 = arith.constant 2 : index
    %c0_18 = arith.constant 0 : index
    %28 = vector.load %arg2[%c0_16, %27, %c2_17, %c0_18] : memref<1x18x18x4xbf16, #tpu.memory_space<vmem>>, vector<1x16x16x4xbf16>
    %29 = vector.shape_cast %28 : vector<1x16x16x4xbf16> to vector<16x16x4xbf16>
    %30 = vector.shape_cast %29 : vector<16x16x4xbf16> to vector<256x4xbf16>
    %c2_i32 = arith.constant 2 : i32
    %31 = arith.addi %0, %c2_i32 : i32
    %c0_19 = arith.constant 0 : index
    %32 = arith.index_cast %31 : i32 to index
    %c0_20 = arith.constant 0 : index
    %c0_21 = arith.constant 0 : index
    %33 = vector.load %arg2[%c0_19, %32, %c0_20, %c0_21] : memref<1x18x18x4xbf16, #tpu.memory_space<vmem>>, vector<1x16x16x4xbf16>
    %34 = vector.shape_cast %33 : vector<1x16x16x4xbf16> to vector<16x16x4xbf16>
    %35 = vector.shape_cast %34 : vector<16x16x4xbf16> to vector<256x4xbf16>
    %c2_i32_22 = arith.constant 2 : i32
    %36 = arith.addi %0, %c2_i32_22 : i32
    %c0_23 = arith.constant 0 : index
    %37 = arith.index_cast %36 : i32 to index
    %c1_24 = arith.constant 1 : index
    %c0_25 = arith.constant 0 : index
    %38 = vector.load %arg2[%c0_23, %37, %c1_24, %c0_25] : memref<1x18x18x4xbf16, #tpu.memory_space<vmem>>, vector<1x16x16x4xbf16>
    %39 = vector.shape_cast %38 : vector<1x16x16x4xbf16> to vector<16x16x4xbf16>
    %40 = vector.shape_cast %39 : vector<16x16x4xbf16> to vector<256x4xbf16>
    %c2_i32_26 = arith.constant 2 : i32
    %41 = arith.addi %0, %c2_i32_26 : i32
    %c0_27 = arith.constant 0 : index
    %42 = arith.index_cast %41 : i32 to index
    %c2_28 = arith.constant 2 : index
    %c0_29 = arith.constant 0 : index
    %43 = vector.load %arg2[%c0_27, %42, %c2_28, %c0_29] : memref<1x18x18x4xbf16, #tpu.memory_space<vmem>>, vector<1x16x16x4xbf16>
    %44 = vector.shape_cast %43 : vector<1x16x16x4xbf16> to vector<16x16x4xbf16>
    %45 = vector.shape_cast %44 : vector<16x16x4xbf16> to vector<256x4xbf16>
    %c0_30 = arith.constant 0 : index
    %c0_31 = arith.constant 0 : index
    %46 = vector.load %arg7[%c0_30, %c0_31] : memref<256x36xbf16, #tpu.memory_space<vmem>>, vector<256x4xbf16>
    tpu.vector_store %arg7[%c0_30, %c0_31], %5 {strides = array<i32>} : memref<256x36xbf16, #tpu.memory_space<vmem>>, vector<256x4xbf16>,
    %c0_32 = arith.constant 0 : index
    %c4 = arith.constant 4 : index
    %47 = vector.load %arg7[%c0_32, %c4] : memref<256x36xbf16, #tpu.memory_space<vmem>>, vector<256x4xbf16>
    tpu.vector_store %arg7[%c0_32, %c4], %10 {strides = array<i32>} : memref<256x36xbf16, #tpu.memory_space<vmem>>, vector<256x4xbf16>,
    %c0_33 = arith.constant 0 : index
    %c8 = arith.constant 8 : index
    %48 = vector.load %arg7[%c0_33, %c8] : memref<256x36xbf16, #tpu.memory_space<vmem>>, vector<256x4xbf16>
    tpu.vector_store %arg7[%c0_33, %c8], %15 {strides = array<i32>} : memref<256x36xbf16, #tpu.memory_space<vmem>>, vector<256x4xbf16>,
    %c0_34 = arith.constant 0 : index
    %c12 = arith.constant 12 : index
    %49 = vector.load %arg7[%c0_34, %c12] : memref<256x36xbf16, #tpu.memory_space<vmem>>, vector<256x4xbf16>
    tpu.vector_store %arg7[%c0_34, %c12], %20 {strides = array<i32>} : memref<256x36xbf16, #tpu.memory_space<vmem>>, vector<256x4xbf16>,
    %c0_35 = arith.constant 0 : index
    %c16 = arith.constant 16 : index
    %50 = vector.load %arg7[%c0_35, %c16] : memref<256x36xbf16, #tpu.memory_space<vmem>>, vector<256x4xbf16>
    tpu.vector_store %arg7[%c0_35, %c16], %25 {strides = array<i32>} : memref<256x36xbf16, #tpu.memory_space<vmem>>, vector<256x4xbf16>,
    %c0_36 = arith.constant 0 : index
    %c20 = arith.constant 20 : index
    %51 = vector.load %arg7[%c0_36, %c20] : memref<256x36xbf16, #tpu.memory_space<vmem>>, vector<256x4xbf16>
    tpu.vector_store %arg7[%c0_36, %c20], %30 {strides = array<i32>} : memref<256x36xbf16, #tpu.memory_space<vmem>>, vector<256x4xbf16>,
    %c0_37 = arith.constant 0 : index
    %c24 = arith.constant 24 : index
    %52 = vector.load %arg7[%c0_37, %c24] : memref<256x36xbf16, #tpu.memory_space<vmem>>, vector<256x4xbf16>
    tpu.vector_store %arg7[%c0_37, %c24], %35 {strides = array<i32>} : memref<256x36xbf16, #tpu.memory_space<vmem>>, vector<256x4xbf16>,
    %c0_38 = arith.constant 0 : index
    %c28 = arith.constant 28 : index
    %53 = vector.load %arg7[%c0_38, %c28] : memref<256x36xbf16, #tpu.memory_space<vmem>>, vector<256x4xbf16>
    tpu.vector_store %arg7[%c0_38, %c28], %40 {strides = array<i32>} : memref<256x36xbf16, #tpu.memory_space<vmem>>, vector<256x4xbf16>,
    %c0_39 = arith.constant 0 : index
    %c32 = arith.constant 32 : index
    %54 = vector.load %arg7[%c0_39, %c32] : memref<256x36xbf16, #tpu.memory_space<vmem>>, vector<256x4xbf16>
    tpu.vector_store %arg7[%c0_39, %c32], %45 {strides = array<i32>} : memref<256x36xbf16, #tpu.memory_space<vmem>>, vector<256x4xbf16>,
    %c0_40 = arith.constant 0 : index
    %c0_41 = arith.constant 0 : index
    %55 = vector.load %arg7[%c0_40, %c0_41] : memref<256x36xbf16, #tpu.memory_space<vmem>>, vector<256x36xbf16>
    %c0_42 = arith.constant 0 : index
    %c0_43 = arith.constant 0 : index
    %56 = vector.load %arg3[%c0_42, %c0_43] : memref<36x4xbf16, #tpu.memory_space<vmem>>, vector<36x4xbf16>
    %cst = arith.constant dense<0.000000e+00> : vector<256x4xf32>
    %57 = tpu.matmul %55, %56, %cst {dimension_numbers = #tpu.dot_dimension_numbers<[1], [0], [0], [1], [0, 0, 1, 1], [], []>} : vector<256x36xbf16>, vector<36x4xbf16>, vector<256x4xf32> -> vector<256x4xf32>
    %c0_44 = arith.constant 0 : index
    %c0_45 = arith.constant 0 : index
    %58 = vector.load %arg4[%c0_44, %c0_45] : memref<1x4xf32, #tpu.memory_space<vmem>>, vector<1x4xf32>
    %59 = vector.broadcast %58 : vector<1x4xf32> to vector<256x4xf32>
    %60 = arith.addf %57, %59 : vector<256x4xf32>
    %c0_46 = arith.constant 0 : index
    %c0_47 = arith.constant 0 : index
    %c0_48 = arith.constant 0 : index
    %61 = vector.load %arg5[%c0_46, %c0_47, %c0_48] : memref<1x256x4xbf16, #tpu.memory_space<vmem>>, vector<1x256x4xbf16>
    %62 = vector.shape_cast %61 : vector<1x256x4xbf16> to vector<256x4xbf16>
    %63 = arith.extf %62 : vector<256x4xbf16> to vector<256x4xf32>
    %64 = arith.addf %60, %63 : vector<256x4xf32>
    %cst_49 = arith.constant 0.000000e+00 : f32
    %65 = vector.broadcast %cst_49 : f32 to vector<256x4xf32>
    %66 = arith.maximumf %64, %65 : vector<256x4xf32>
    %c0_50 = arith.constant 0 : index
    %c0_51 = arith.constant 0 : index
    %c0_52 = arith.constant 0 : index
    %67 = vector.load %arg6[%c0_50, %c0_51, %c0_52] : memref<1x256x4xf32, #tpu.memory_space<vmem>>, vector<1x256x4xf32>
    %68 = vector.shape_cast %67 : vector<1x256x4xf32> to vector<256x4xf32>
    %69 = vector.shape_cast %66 : vector<256x4xf32> to vector<1x256x4xf32>
    tpu.vector_store %arg6[%c0_50, %c0_51, %c0_52], %69 {strides = array<i32>} : memref<1x256x4xf32, #tpu.memory_space<vmem>>, vector<1x256x4xf32>,
    return
  }
  func.func @transform_0(%arg0: i32, %arg1: i32) -> (i32, i32, i32, i32) {
    %c0_i32 = arith.constant 0 : i32
    %c0_i32_0 = arith.constant 0 : i32
    %c0_i32_1 = arith.constant 0 : i32
    %c0_i32_2 = arith.constant 0 : i32
    return %arg0, %c0_i32, %c0_i32_0, %c0_i32_1 : i32, i32, i32, i32
  }
  func.func @transform_1(%arg0: i32, %arg1: i32) -> (i32, i32) {
    %c0_i32 = arith.constant 0 : i32
    %c0_i32_0 = arith.constant 0 : i32
    %c0_i32_1 = arith.constant 0 : i32
    return %c0_i32, %c0_i32_0 : i32, i32
  }
  func.func @transform_2(%arg0: i32, %arg1: i32) -> (i32, i32) {
    %c0_i32 = arith.constant 0 : i32
    %c0_i32_0 = arith.constant 0 : i32
    %c0_i32_1 = arith.constant 0 : i32
    return %c0_i32, %c0_i32_0 : i32, i32
  }
  func.func @transform_3(%arg0: i32, %arg1: i32) -> (i32, i32, i32) {
    %c0_i32 = arith.constant 0 : i32
    %c0_i32_0 = arith.constant 0 : i32
    return %arg0, %arg1, %c0_i32 : i32, i32, i32
  }
  func.func @transform_4(%arg0: i32, %arg1: i32) -> (i32, i32, i32) {
    %c0_i32 = arith.constant 0 : i32
    %c0_i32_0 = arith.constant 0 : i32
    return %arg0, %arg1, %c0_i32 : i32, i32, i32
  }
}

</mosaic_0001>

<llo_original>
// kernel: basic_block_forward.3
$region0: #{basic_block_forward.3}
  #allocation0 [shape = 'u32[]', space=smem, size = 0x4, offset = 0x4, fixed_abs, tag = 'smem constant byte address 0x4 - core index']
  #allocation1 [shape = 'u32[144,128]{1,0:T(1,128)}', space=vmem, size = 0x12000, scoped, tag = 'internal scratch']
  #allocation2 [shape = 'bf16[256,36]{1,0:T(16,128)(2,1)}', space=vmem, size = 0x10000, scoped, tag = 'scratch operand']
  %s0 = inlined_call_operand.vmem [shape: bf16[2,18,18,4], index: 0, kind: input, shape index: {}]
  %s1 = inlined_call_operand.vmem [shape: bf16[36,4], index: 1, kind: input, shape index: {}]
  %s2 = inlined_call_operand.vmem [shape: f32[1,4], index: 2, kind: input, shape index: {}]
  %s3 = inlined_call_operand.vmem [shape: bf16[2,256,4], index: 3, kind: input, shape index: {}]
  %s4 = inlined_call_operand.vmem [shape: f32[2,256,4], index: 4, kind: output, shape index: {}]
  %s5 = sld [smem:[#allocation0]]
  $region49: #{basic_block_forward.3} parent=0
    _
  %s7 = ssub.s32 1, %s5
  %s8 = scalar_select 0, %s7, %s5
  loop: start=0, step=1, limit=4
  $region2: #{basic_block_forward.3} parent=0 // loop_pre_header
    _
  $region3: #{basic_block_forward.3} parent=0 // loop_header
    %s10 = sphi 0, %s14
    %p11 = scmp.ge.s32.totalorder %s10, 4
    %s17 = sphi 0, %s29
    %s18 = sphi 0, %s25
    %s19 = sphi 0, %s17
    %s20 = sphi 0, %s18
    %s21 = sphi 0, %s19
    %s22 = sphi 0, %s20
    %s32 = sphi 0, %s34
    %s35 = sphi 0, %s32
    %s36 = sphi 0, %s35
    %s52 = sphi 0, %s36
    %s56 = sphi 0, %s56
    %s58 = sphi 0, %s56
    %s59 = sphi 0, %s58
    %s73 = sphi 0, %s59
    %s77 = sphi 0, %s77
    %s79 = sphi 0, %s77
    %s80 = sphi 0, %s79
    %s94 = sphi 0, %s80
    %s102 = sphi 0, %s104
    %s105 = sphi 0, %s102
    %s106 = sphi 0, %s105
    %s122 = sphi 0, %s106
    %s130 = sphi 0, %s132
    %s133 = sphi 0, %s130
    %s134 = sphi 0, %s133
    %s150 = sphi 0, %s134
  $region4: #{basic_block_forward.3} parent=0 // loop_header_branch
    %13 = sbr.rel (%p11) target = $region8
  $region5: #{basic_block_forward.3} parent=0 // loop_body
    %s15 = ssub.s32 %s10, 1
    %s16 = ssub.s32 %s10, 2
    %s23 = sadd.s32 1, %s18
    %p24 = scmp.ge.s32.totalorder %s23, 1
    %s25 = scalar_select %p24, 0, %s23
    %s26 = sadd.s32 1, %s17
    %s27 = scalar_select %p24, %s26, %s17
    %p28 = scmp.ge.s32.totalorder %s27, 2
    %s29 = scalar_select %p28, 0, %s27
    %s30 = ssub.s32 %s17, %s29
    %p31 = scmp.eq.s32.totalorder %s30, 0
    %s33 = sadd.s32 %s32, 1
    %s34 = scalar_select %p31, %s32, %s33
    %p37 = pneg %p31
    %p38 = scmp.eq.s32.totalorder %s10, 1
    %p39 = por %p37, %p38
    %p40 = scmp.ne.s32.totalorder %s32, %s35
    %p41 = scmp.eq.s32.totalorder %s10, 0
    %p42 = por %p40, %p41
    %p43 = scmp.ne.s32.totalorder %s32, %s35
    %p44 = scmp.eq.s32.totalorder %s15, 1
    %p45 = por %p43, %p44
    %p46 = scmp.ne.s32.totalorder %s35, %s36
    %p47 = scmp.eq.s32.totalorder %s15, 0
    %p48 = por %p46, %p47
    %p49 = scmp.ne.s32.totalorder %s35, %s36
    %p50 = scmp.eq.s32.totalorder %s16, 1
    %p51 = por %p49, %p50
    %p53 = scmp.ne.s32.totalorder %s36, %s52
    %p54 = scmp.eq.s32.totalorder %s16, 0
    %p55 = por %p53, %p54
    %s57 = sadd.s32 %s56, 1
    %p60 = scmp.eq.s32.totalorder %s10, 1
    %p61 = scmp.ne.s32.totalorder %s56, %s58
    %p62 = scmp.eq.s32.totalorder %s10, 0
    %p63 = por %p61, %p62
    %p64 = scmp.ne.s32.totalorder %s56, %s58
    %p65 = scmp.eq.s32.totalorder %s15, 1
    %p66 = por %p64, %p65
    %p67 = scmp.ne.s32.totalorder %s58, %s59
    %p68 = scmp.eq.s32.totalorder %s15, 0
    %p69 = por %p67, %p68
    %p70 = scmp.ne.s32.totalorder %s58, %s59
    %p71 = scmp.eq.s32.totalorder %s16, 1
    %p72 = por %p70, %p71
    %p74 = scmp.ne.s32.totalorder %s59, %s73
    %p75 = scmp.eq.s32.totalorder %s16, 0
    %p76 = por %p74, %p75
    %s78 = sadd.s32 %s77, 1
    %p81 = scmp.eq.s32.totalorder %s10, 1
    %p82 = scmp.ne.s32.totalorder %s77, %s79
    %p83 = scmp.eq.s32.totalorder %s10, 0
    %p84 = por %p82, %p83
    %p85 = scmp.ne.s32.totalorder %s77, %s79
    %p86 = scmp.eq.s32.totalorder %s15, 1
    %p87 = por %p85, %p86
    %p88 = scmp.ne.s32.totalorder %s79, %s80
    %p89 = scmp.eq.s32.totalorder %s15, 0
    %p90 = por %p88, %p89
    %p91 = scmp.ne.s32.totalorder %s79, %s80
    %p92 = scmp.eq.s32.totalorder %s16, 1
    %p93 = por %p91, %p92
    %p95 = scmp.ne.s32.totalorder %s80, %s94
    %p96 = scmp.eq.s32.totalorder %s16, 0
    %p97 = por %p95, %p96
    %s98 = ssub.s32 %s17, %s29
    %s99 = ssub.s32 %s18, %s25
    %s100 = sor.u32 %s98, %s99
    %p101 = scmp.eq.s32.totalorder %s100, 0
    %s103 = sadd.s32 %s102, 1
    %s104 = scalar_select %p101, %s102, %s103
    %p107 = pneg %p101
    %p108 = scmp.eq.s32.totalorder %s10, 1
    %p109 = por %p107, %p108
    %p110 = scmp.ne.s32.totalorder %s102, %s105
    %p111 = scmp.eq.s32.totalorder %s10, 0
    %p112 = por %p110, %p111
    %p113 = scmp.ne.s32.totalorder %s102, %s105
    %p114 = scmp.eq.s32.totalorder %s15, 1
    %p115 = por %p113, %p114
    %p116 = scmp.ne.s32.totalorder %s105, %s106
    %p117 = scmp.eq.s32.totalorder %s15, 0
    %p118 = por %p116, %p117
    %p119 = scmp.ne.s32.totalorder %s105, %s106
    %p120 = scmp.eq.s32.totalorder %s16, 1
    %p121 = por %p119, %p120
    %p123 = scmp.ne.s32.totalorder %s106, %s122
    %p124 = scmp.eq.s32.totalorder %s16, 0
    %p125 = por %p123, %p124
    %s126 = ssub.s32 %s17, %s29
    %s127 = ssub.s32 %s18, %s25
    %s128 = sor.u32 %s126, %s127
    %p129 = scmp.eq.s32.totalorder %s128, 0
    %s131 = sadd.s32 %s130, 1
    %s132 = scalar_select %p129, %s130, %s131
    %p135 = pneg %p129
    %p136 = scmp.eq.s32.totalorder %s10, 1
    %p137 = por %p135, %p136
    %p138 = scmp.ne.s32.totalorder %s130, %s133
    %p139 = scmp.eq.s32.totalorder %s10, 0
    %p140 = por %p138, %p139
    %p141 = scmp.ne.s32.totalorder %s130, %s133
    %p142 = scmp.eq.s32.totalorder %s15, 1
    %p143 = por %p141, %p142
    %p144 = scmp.ne.s32.totalorder %s133, %s134
    %p145 = scmp.eq.s32.totalorder %s15, 0
    %p146 = por %p144, %p145
    %p147 = scmp.ne.s32.totalorder %s133, %s134
    %p148 = scmp.eq.s32.totalorder %s16, 1
    %p149 = por %p147, %p148
    %p151 = scmp.ne.s32.totalorder %s134, %s150
    %p152 = scmp.eq.s32.totalorder %s16, 0
    %p153 = por %p151, %p152
    %p154 = scmp.le.s32.totalorder 1, %s10
    %p155 = scmp.lt.s32.totalorder %s10, 3
    %p156 = pnand %p154, %p155
    %p157 = pneg %p156
    // Predicated region
    $region9: #{basic_block_forward.3} parent=5 // pred_check
      _
    $region10: #{basic_block_forward.3} parent=5 // pred_check_branch
      %159 = sbr.rel (%p156) target = $region12
    $region11: #{basic_block_forward.3} parent=5 // pred_region
      %s160 = ssub.s32 %s10, 1
      // Predicated region
      $region13: #{basic_block_forward.3} parent=11 // pred_check
        %p161 = pneg %p69
      $region14: #{basic_block_forward.3} parent=11 // pred_check_branch
        %163 = sbr.rel (%p161) target = $region16
      $region15: #{basic_block_forward.3} parent=11 // pred_region
        _
      $region16: #{basic_block_forward.3} parent=11 // pred_fallthru
        _
      // Predicated region
      $region17: #{basic_block_forward.3} parent=11 // pred_check
        %p164 = pneg %p90
      $region18: #{basic_block_forward.3} parent=11 // pred_check_branch
        %166 = sbr.rel (%p164) target = $region20
      $region19: #{basic_block_forward.3} parent=11 // pred_region
        _
      $region20: #{basic_block_forward.3} parent=11 // pred_fallthru
        _
    $region12: #{basic_block_forward.3} parent=5 // pred_fallthru
      _
    %p167 = scmp.lt.s32.totalorder %s10, 2
    // Predicated region
    $region21: #{basic_block_forward.3} parent=5 // pred_check
      %p168 = pneg %p167
    $region22: #{basic_block_forward.3} parent=5 // pred_check_branch
      %170 = sbr.rel (%p168) target = $region24
    $region23: #{basic_block_forward.3} parent=5 // pred_region
      // Predicated region
      $region25: #{basic_block_forward.3} parent=23 // pred_check
        %p171 = pneg %p42
      $region26: #{basic_block_forward.3} parent=23 // pred_check_branch
        %173 = sbr.rel (%p171) target = $region28
      $region27: #{basic_block_forward.3} parent=23 // pred_region
        %p174 = scmp.lt.s32.totalorder %s17, 1
        %s175 = scalar_select %p174, %s17, 1
        %s176 = smul.addr %s175, 54
        %s177 = smul.addr %s176, 4
        %s178 = scalar_lea.vmem %s0, %s177
      $region28: #{basic_block_forward.3} parent=23 // pred_fallthru
        _
      // Predicated region
      $region29: #{basic_block_forward.3} parent=23 // pred_check
        %p179 = pneg %p112
      $region30: #{basic_block_forward.3} parent=23 // pred_check_branch
        %181 = sbr.rel (%p179) target = $region32
      $region31: #{basic_block_forward.3} parent=23 // pred_region
        %s182 = smul.u32 32, %s18
        %p183 = scmp.lt.s32.totalorder %s17, 1
        %s184 = scalar_select %p183, %s17, 1
        %p185 = scmp.lt.s32.totalorder %s182, 31
        %s186 = scalar_select %p185, %s182, 31
        %s187 = smul.addr %s184, 32
        %s188 = sadd.s32 %s186, %s187
        %s189 = smul.addr %s188, 4
        %s190 = scalar_lea.vmem %s3, %s189
        %s191 = smul.u32 32, %s18
      $region32: #{basic_block_forward.3} parent=23 // pred_fallthru
        _
    $region24: #{basic_block_forward.3} parent=5 // pred_fallthru
      _
    %p192 = scmp.le.s32.totalorder 1, %s10
    %p193 = scmp.lt.s32.totalorder %s10, 3
    %p194 = pnand %p192, %p193
    %p195 = pneg %p194
    // Predicated region
    $region33: #{basic_block_forward.3} parent=5 // pred_check
      _
    $region34: #{basic_block_forward.3} parent=5 // pred_check_branch
      %197 = sbr.rel (%p194) target = $region36
    $region35: #{basic_block_forward.3} parent=5 // pred_region
      %s198 = ssub.s32 %s10, 1
      %p199 = scmp.lt.s32.totalorder %s19, 1
      %s200 = scalar_select %p199, %s19, 1
      %s201 = smul.addr %s200, 54
      %s202 = smul.addr %s201, 4
      %s203 = scalar_lea.vmem %s0, %s202
      %p204 = pneg %p48
      %p205 = pneg %p45
      %p206 = pneg %p69
      %p207 = pneg %p66
      %p208 = pneg %p90
      %p209 = pneg %p87
      %s210 = smul.u32 32, %s20
      %p211 = scmp.lt.s32.totalorder %s19, 1
      %s212 = scalar_select %p211, %s19, 1
      %p213 = scmp.lt.s32.totalorder %s210, 31
      %s214 = scalar_select %p213, %s210, 31
      %s215 = smul.addr %s212, 32
      %s216 = sadd.s32 %s214, %s215
      %s217 = smul.addr %s216, 4
      %s218 = scalar_lea.vmem %s3, %s217
      %p219 = pneg %p118
      %p220 = pneg %p115
      %p221 = pneg %p146
      %p222 = pneg %p143
      %s223 = smul.u32 32, %s20
      %p224 = scmp.lt.s32.totalorder %s19, 1
      %s225 = scalar_select %p224, %s19, 1
      %p226 = scmp.lt.s32.totalorder %s223, 31
      %s227 = scalar_select %p226, %s223, 31
      %s228 = smul.addr %s225, 32
      %s229 = sadd.s32 %s227, %s228
      %s230 = smul.addr %s229, 8
      %s231 = scalar_lea.vmem %s4, %s230
      %p232 = scmp.lt.s32.totalorder %s19, 1
      %s233 = scalar_select %p232, %s19, 1
      %s234 = smul.addr %s233, 54
      %s235 = smul.addr %s234, 4
      %s236 = scalar_lea.vmem %s0, %s235
      %s237 = smul.u32 32, %s20
      %p238 = scmp.lt.s32.totalorder %s19, 1
      %s239 = scalar_select %p238, %s19, 1
      %p240 = scmp.lt.s32.totalorder %s237, 31
      %s241 = scalar_select %p240, %s237, 31
      %s242 = smul.addr %s239, 32
      %s243 = sadd.s32 %s241, %s242
      %s244 = smul.addr %s243, 4
      %s245 = scalar_lea.vmem %s3, %s244
      %s246 = smul.u32 32, %s20
      %s247 = smul.u32 32, %s20
      %p248 = scmp.lt.s32.totalorder %s19, 1
      %s249 = scalar_select %p248, %s19, 1
      %p250 = scmp.lt.s32.totalorder %s247, 31
      %s251 = scalar_select %p250, %s247, 31
      %s252 = smul.addr %s249, 32
      %s253 = sadd.s32 %s251, %s252
      %s254 = smul.addr %s253, 8
      %s255 = scalar_lea.vmem %s4, %s254
      %s256 = smul.u32 32, %s20
      %s258 = smul.u32 %s20, 16
      %s259 = smul.u32 %s258, 3
      %s260 = smul.addr %s259, 4
      %s261 = scalar_lea.vmem %s236, %s260
      %v262 = vld [vmem:[%s261] sm:$0xf]
      %v263 = vld [vmem:[%s261 + $0x4] sm:$0xf]
      %v264 = vld [vmem:[%s261 + $0xc] sm:$0xf]
      %v265 = vld [vmem:[%s261 + $0x10] sm:$0xf]
      %v266 = vld [vmem:[%s261 + $0x18] sm:$0xf]
      %v267 = vld [vmem:[%s261 + $0x1c] sm:$0xf]
      %v268 = vld [vmem:[%s261 + $0x24] sm:$0xf]
      %v269 = vld [vmem:[%s261 + $0x28] sm:$0xf]
      %v270 = vld [vmem:[%s261 + $0x30] sm:$0xf]
      %v271 = vld [vmem:[%s261 + $0x34] sm:$0xf]
      %v272 = vld [vmem:[%s261 + $0x3c] sm:$0xf]
      %v273 = vld [vmem:[%s261 + $0x40] sm:$0xf]
      %v274 = vld [vmem:[%s261 + $0x48] sm:$0xf]
      %v275 = vld [vmem:[%s261 + $0x4c] sm:$0xf]
      %v276 = vld [vmem:[%s261 + $0x54] sm:$0xf]
      %v277 = vld [vmem:[%s261 + $0x58] sm:$0xf]
      %v278 = vld [vmem:[%s261 + $0x60] sm:$0xf]
      %v279 = vld [vmem:[%s261 + $0x64] sm:$0xf]
      %v280 = vld [vmem:[%s261 + $0x6c] sm:$0xf]
      %v281 = vld [vmem:[%s261 + $0x70] sm:$0xf]
      %v282 = vld [vmem:[%s261 + $0x78] sm:$0xf]
      %v283 = vld [vmem:[%s261 + $0x7c] sm:$0xf]
      %v284 = vld [vmem:[%s261 + $0x84] sm:$0xf]
      %v285 = vld [vmem:[%s261 + $0x88] sm:$0xf]
      %v286 = vld [vmem:[%s261 + $0x90] sm:$0xf]
      %v287 = vld [vmem:[%s261 + $0x94] sm:$0xf]
      %v288 = vld [vmem:[%s261 + $0x9c] sm:$0xf]
      %v289 = vld [vmem:[%s261 + $0xa0] sm:$0xf]
      %v290 = vld [vmem:[%s261 + $0xa8] sm:$0xf]
      %v291 = vld [vmem:[%s261 + $0xac] sm:$0xf]
      %v292 = vld [vmem:[%s261 + $0xb4] sm:$0xf]
      %v293 = vld [vmem:[%s261 + $0xb8] sm:$0xf]
      %v294 = vld [vmem:[%s261 + $0x8] sm:$0x1]
      %v295 = vld [vmem:[%s261 + $0x14] sm:$0x1]
      %v296 = vld [vmem:[%s261 + $0x20] sm:$0x1]
      %v297 = vld [vmem:[%s261 + $0x2c] sm:$0x1]
      %v298 = vld [vmem:[%s261 + $0x38] sm:$0x1]
      %v299 = vld [vmem:[%s261 + $0x44] sm:$0x1]
      %v300 = vld [vmem:[%s261 + $0x50] sm:$0x1]
      %v301 = vld [vmem:[%s261 + $0x5c] sm:$0x1]
      %v302 = vld [vmem:[%s261 + $0x68] sm:$0x1]
      %v303 = vld [vmem:[%s261 + $0x74] sm:$0x1]
      %v304 = vld [vmem:[%s261 + $0x80] sm:$0x1]
      %v305 = vld [vmem:[%s261 + $0x8c] sm:$0x1]
      %v306 = vld [vmem:[%s261 + $0x98] sm:$0x1]
      %v307 = vld [vmem:[%s261 + $0xa4] sm:$0x1]
      %v308 = vld [vmem:[%s261 + $0xb0] sm:$0x1]
      %v309 = vld [vmem:[%s261 + $0xbc] sm:$0x1]
      %vm310 = vsmask.f32 3328
      %vm311 = vsmask.f32 7440
      %vm312 = vmor %vm310, %vm311
      %v314 = vshrl.u32 %v262, 16
      %v316 = vrot.slane %v314, 4
      %v317 = vshll.u32 %v262, 16
      %v319 = vrot.slane %v317, 5
      %v320 = vor.u32 %v316, %v319
      %v321 = vrot.slane %v320, 4
      %v323 = vshll.u32 %v263, 16
      %v325 = vrot.slane %v323, 5
      %v326 = vsel %vm312, %v321, %v325
      %v327 = vshrl.u32 %v263, 16
      %v329 = vrot.slane %v327, 4
      %v330 = vor.u32 %v329, %v325
      %v331 = vrot.slane %v330, 4
      %v333 = vshll.u32 %v294, 16
      %v335 = vrot.slane %v333, 5
      %v336 = vsel %vm312, %v331, %v335
      %v338 = vshrl.u32 %v264, 16
      %v340 = vrot.slane %v338, 4
      %v341 = vshll.u32 %v264, 16
      %v343 = vrot.slane %v341, 5
      %v344 = vor.u32 %v340, %v343
      %v345 = vrot.slane %v344, 4
      %v347 = vshll.u32 %v265, 16
      %v349 = vrot.slane %v347, 5
      %v350 = vsel %vm312, %v345, %v349
      %v351 = vshrl.u32 %v265, 16
      %v353 = vrot.slane %v351, 4
      %v354 = vor.u32 %v353, %v349
      %v355 = vrot.slane %v354, 4
      %v357 = vshll.u32 %v295, 16
      %v359 = vrot.slane %v357, 5
      %v360 = vsel %vm312, %v355, %v359
      %v362 = vshrl.u32 %v266, 16
      %v364 = vrot.slane %v362, 4
      %v365 = vshll.u32 %v266, 16
      %v367 = vrot.slane %v365, 5
      %v368 = vor.u32 %v364, %v367
      %v369 = vrot.slane %v368, 4
      %v371 = vshll.u32 %v267, 16
      %v373 = vrot.slane %v371, 5
      %v374 = vsel %vm312, %v369, %v373
      %v375 = vshrl.u32 %v267, 16
      %v377 = vrot.slane %v375, 4
      %v378 = vor.u32 %v377, %v373
      %v379 = vrot.slane %v378, 4
      %v381 = vshll.u32 %v296, 16
      %v383 = vrot.slane %v381, 5
      %v384 = vsel %vm312, %v379, %v383
      %v386 = vshrl.u32 %v268, 16
      %v388 = vrot.slane %v386, 4
      %v389 = vshll.u32 %v268, 16
      %v391 = vrot.slane %v389, 5
      %v392 = vor.u32 %v388, %v391
      %v393 = vrot.slane %v392, 4
      %v395 = vshll.u32 %v269, 16
      %v397 = vrot.slane %v395, 5
      %v398 = vsel %vm312, %v393, %v397
      %v399 = vshrl.u32 %v269, 16
      %v401 = vrot.slane %v399, 4
      %v402 = vor.u32 %v401, %v397
      %v403 = vrot.slane %v402, 4
      %v405 = vshll.u32 %v297, 16
      %v407 = vrot.slane %v405, 5
      %v408 = vsel %vm312, %v403, %v407
      %v410 = vshrl.u32 %v270, 16
      %v412 = vrot.slane %v410, 4
      %v413 = vshll.u32 %v270, 16
      %v415 = vrot.slane %v413, 5
      %v416 = vor.u32 %v412, %v415
      %v417 = vrot.slane %v416, 4
      %v419 = vshll.u32 %v271, 16
      %v421 = vrot.slane %v419, 5
      %v422 = vsel %vm312, %v417, %v421
      %v423 = vshrl.u32 %v271, 16
      %v425 = vrot.slane %v423, 4
      %v426 = vor.u32 %v425, %v421
      %v427 = vrot.slane %v426, 4
      %v429 = vshll.u32 %v298, 16
      %v431 = vrot.slane %v429, 5
      %v432 = vsel %vm312, %v427, %v431
      %v434 = vshrl.u32 %v272, 16
      %v436 = vrot.slane %v434, 4
      %v437 = vshll.u32 %v272, 16
      %v439 = vrot.slane %v437, 5
      %v440 = vor.u32 %v436, %v439
      %v441 = vrot.slane %v440, 4
      %v443 = vshll.u32 %v273, 16
      %v445 = vrot.slane %v443, 5
      %v446 = vsel %vm312, %v441, %v445
      %v447 = vshrl.u32 %v273, 16
      %v449 = vrot.slane %v447, 4
      %v450 = vor.u32 %v449, %v445
      %v451 = vrot.slane %v450, 4
      %v453 = vshll.u32 %v299, 16
      %v455 = vrot.slane %v453, 5
      %v456 = vsel %vm312, %v451, %v455
      %v458 = vshrl.u32 %v274, 16
      %v460 = vrot.slane %v458, 4
      %v461 = vshll.u32 %v274, 16
      %v463 = vrot.slane %v461, 5
      %v464 = vor.u32 %v460, %v463
      %v465 = vrot.slane %v464, 4
      %v467 = vshll.u32 %v275, 16
      %v469 = vrot.slane %v467, 5
      %v470 = vsel %vm312, %v465, %v469
      %v471 = vshrl.u32 %v275, 16
      %v473 = vrot.slane %v471, 4
      %v474 = vor.u32 %v473, %v469
      %v475 = vrot.slane %v474, 4
      %v477 = vshll.u32 %v300, 16
      %v479 = vrot.slane %v477, 5
      %v480 = vsel %vm312, %v475, %v479
      %v482 = vshrl.u32 %v276, 16
      %v484 = vrot.slane %v482, 4
      %v485 = vshll.u32 %v276, 16
      %v487 = vrot.slane %v485, 5
      %v488 = vor.u32 %v484, %v487
      %v489 = vrot.slane %v488, 4
      %v491 = vshll.u32 %v277, 16
      %v493 = vrot.slane %v491, 5
      %v494 = vsel %vm312, %v489, %v493
      %v495 = vshrl.u32 %v277, 16
      %v497 = vrot.slane %v495, 4
      %v498 = vor.u32 %v497, %v493
      %v499 = vrot.slane %v498, 4
      %v501 = vshll.u32 %v301, 16
      %v503 = vrot.slane %v501, 5
      %v504 = vsel %vm312, %v499, %v503
      %v506 = vshrl.u32 %v278, 16
      %v508 = vrot.slane %v506, 4
      %v509 = vshll.u32 %v278, 16
      %v511 = vrot.slane %v509, 5
      %v512 = vor.u32 %v508, %v511
      %v513 = vrot.slane %v512, 4
      %v515 = vshll.u32 %v279, 16
      %v517 = vrot.slane %v515, 5
      %v518 = vsel %vm312, %v513, %v517
      %v519 = vshrl.u32 %v279, 16
      %v521 = vrot.slane %v519, 4
      %v522 = vor.u32 %v521, %v517
      %v523 = vrot.slane %v522, 4
      %v525 = vshll.u32 %v302, 16
      %v527 = vrot.slane %v525, 5
      %v528 = vsel %vm312, %v523, %v527
      %v530 = vshrl.u32 %v280, 16
      %v532 = vrot.slane %v530, 4
      %v533 = vshll.u32 %v280, 16
      %v535 = vrot.slane %v533, 5
      %v536 = vor.u32 %v532, %v535
      %v537 = vrot.slane %v536, 4
      %v539 = vshll.u32 %v281, 16
      %v541 = vrot.slane %v539, 5
      %v542 = vsel %vm312, %v537, %v541
      %v543 = vshrl.u32 %v281, 16
      %v545 = vrot.slane %v543, 4
      %v546 = vor.u32 %v545, %v541
      %v547 = vrot.slane %v546, 4
      %v549 = vshll.u32 %v303, 16
      %v551 = vrot.slane %v549, 5
      %v552 = vsel %vm312, %v547, %v551
      %v554 = vshrl.u32 %v282, 16
      %v556 = vrot.slane %v554, 4
      %v557 = vshll.u32 %v282, 16
      %v559 = vrot.slane %v557, 5
      %v560 = vor.u32 %v556, %v559
      %v561 = vrot.slane %v560, 4
      %v563 = vshll.u32 %v283, 16
      %v565 = vrot.slane %v563, 5
      %v566 = vsel %vm312, %v561, %v565
      %v567 = vshrl.u32 %v283, 16
      %v569 = vrot.slane %v567, 4
      %v570 = vor.u32 %v569, %v565
      %v571 = vrot.slane %v570, 4
      %v573 = vshll.u32 %v304, 16
      %v575 = vrot.slane %v573, 5
      %v576 = vsel %vm312, %v571, %v575
      %v578 = vshrl.u32 %v284, 16
      %v580 = vrot.slane %v578, 4
      %v581 = vshll.u32 %v284, 16
      %v583 = vrot.slane %v581, 5
      %v584 = vor.u32 %v580, %v583
      %v585 = vrot.slane %v584, 4
      %v587 = vshll.u32 %v285, 16
      %v589 = vrot.slane %v587, 5
      %v590 = vsel %vm312, %v585, %v589
      %v591 = vshrl.u32 %v285, 16
      %v593 = vrot.slane %v591, 4
      %v594 = vor.u32 %v593, %v589
      %v595 = vrot.slane %v594, 4
      %v597 = vshll.u32 %v305, 16
      %v599 = vrot.slane %v597, 5
      %v600 = vsel %vm312, %v595, %v599
      %v602 = vshrl.u32 %v286, 16
      %v604 = vrot.slane %v602, 4
      %v605 = vshll.u32 %v286, 16
      %v607 = vrot.slane %v605, 5
      %v608 = vor.u32 %v604, %v607
      %v609 = vrot.slane %v608, 4
      %v611 = vshll.u32 %v287, 16
      %v613 = vrot.slane %v611, 5
      %v614 = vsel %vm312, %v609, %v613
      %v615 = vshrl.u32 %v287, 16
      %v617 = vrot.slane %v615, 4
      %v618 = vor.u32 %v617, %v613
      %v619 = vrot.slane %v618, 4
      %v621 = vshll.u32 %v306, 16
      %v623 = vrot.slane %v621, 5
      %v624 = vsel %vm312, %v619, %v623
      %v626 = vshrl.u32 %v288, 16
      %v628 = vrot.slane %v626, 4
      %v629 = vshll.u32 %v288, 16
      %v631 = vrot.slane %v629, 5
      %v632 = vor.u32 %v628, %v631
      %v633 = vrot.slane %v632, 4
      %v635 = vshll.u32 %v289, 16
      %v637 = vrot.slane %v635, 5
      %v638 = vsel %vm312, %v633, %v637
      %v639 = vshrl.u32 %v289, 16
      %v641 = vrot.slane %v639, 4
      %v642 = vor.u32 %v641, %v637
      %v643 = vrot.slane %v642, 4
      %v645 = vshll.u32 %v307, 16
      %v647 = vrot.slane %v645, 5
      %v648 = vsel %vm312, %v643, %v647
      %v650 = vshrl.u32 %v290, 16
      %v652 = vrot.slane %v650, 4
      %v653 = vshll.u32 %v290, 16
      %v655 = vrot.slane %v653, 5
      %v656 = vor.u32 %v652, %v655
      %v657 = vrot.slane %v656, 4
      %v659 = vshll.u32 %v291, 16
      %v661 = vrot.slane %v659, 5
      %v662 = vsel %vm312, %v657, %v661
      %v663 = vshrl.u32 %v291, 16
      %v665 = vrot.slane %v663, 4
      %v666 = vor.u32 %v665, %v661
      %v667 = vrot.slane %v666, 4
      %v669 = vshll.u32 %v308, 16
      %v671 = vrot.slane %v669, 5
      %v672 = vsel %vm312, %v667, %v671
      %v674 = vshrl.u32 %v292, 16
      %v676 = vrot.slane %v674, 4
      %v677 = vshll.u32 %v292, 16
      %v679 = vrot.slane %v677, 5
      %v680 = vor.u32 %v676, %v679
      %v681 = vrot.slane %v680, 4
      %v683 = vshll.u32 %v293, 16
      %v685 = vrot.slane %v683, 5
      %v686 = vsel %vm312, %v681, %v685
      %v687 = vshrl.u32 %v293, 16
      %v689 = vrot.slane %v687, 4
      %v690 = vor.u32 %v689, %v685
      %v691 = vrot.slane %v690, 4
      %v693 = vshll.u32 %v309, 16
      %v695 = vrot.slane %v693, 5
      %v696 = vsel %vm312, %v691, %v695
      %v697 = vld [vmem:[%s261] sm:$0xe]
      %v698 = vld [vmem:[%s261 + $0xc] sm:$0xe]
      %v699 = vld [vmem:[%s261 + $0x18] sm:$0xe]
      %v700 = vld [vmem:[%s261 + $0x24] sm:$0xe]
      %v701 = vld [vmem:[%s261 + $0x30] sm:$0xe]
      %v702 = vld [vmem:[%s261 + $0x3c] sm:$0xe]
      %v703 = vld [vmem:[%s261 + $0x48] sm:$0xe]
      %v704 = vld [vmem:[%s261 + $0x54] sm:$0xe]
      %v705 = vld [vmem:[%s261 + $0x60] sm:$0xe]
      %v706 = vld [vmem:[%s261 + $0x6c] sm:$0xe]
      %v707 = vld [vmem:[%s261 + $0x78] sm:$0xe]
      %v708 = vld [vmem:[%s261 + $0x84] sm:$0xe]
      %v709 = vld [vmem:[%s261 + $0x90] sm:$0xe]
      %v710 = vld [vmem:[%s261 + $0x9c] sm:$0xe]
      %v711 = vld [vmem:[%s261 + $0xa8] sm:$0xe]
      %v712 = vld [vmem:[%s261 + $0xb4] sm:$0xe]
      %vm761 = vcmask 1042432
      %vm762 = vcmask 1046532
      %vm763 = vmor %vm761, %vm762
      %v764 = vrot.slane %v697, 5
      %v765 = vrot.slane %v764, 4
      %v766 = vrot.slane %v263, 5
      %v767 = vsel %vm763, %v765, %v766
      %v768 = vrot.slane %v766, 4
      %v769 = vrot.slane %v294, 5
      %v770 = vsel %vm763, %v768, %v769
      %v771 = vrot.slane %v698, 5
      %v772 = vrot.slane %v771, 4
      %v773 = vrot.slane %v265, 5
      %v774 = vsel %vm763, %v772, %v773
      %v775 = vrot.slane %v773, 4
      %v776 = vrot.slane %v295, 5
      %v777 = vsel %vm763, %v775, %v776
      %v778 = vrot.slane %v699, 5
      %v779 = vrot.slane %v778, 4
      %v780 = vrot.slane %v267, 5
      %v781 = vsel %vm763, %v779, %v780
      %v782 = vrot.slane %v780, 4
      %v783 = vrot.slane %v296, 5
      %v784 = vsel %vm763, %v782, %v783
      %v785 = vrot.slane %v700, 5
      %v786 = vrot.slane %v785, 4
      %v787 = vrot.slane %v269, 5
      %v788 = vsel %vm763, %v786, %v787
      %v789 = vrot.slane %v787, 4
      %v790 = vrot.slane %v297, 5
      %v791 = vsel %vm763, %v789, %v790
      %v792 = vrot.slane %v701, 5
      %v793 = vrot.slane %v792, 4
      %v794 = vrot.slane %v271, 5
      %v795 = vsel %vm763, %v793, %v794
      %v796 = vrot.slane %v794, 4
      %v797 = vrot.slane %v298, 5
      %v798 = vsel %vm763, %v796, %v797
      %v799 = vrot.slane %v702, 5
      %v800 = vrot.slane %v799, 4
      %v801 = vrot.slane %v273, 5
      %v802 = vsel %vm763, %v800, %v801
      %v803 = vrot.slane %v801, 4
      %v804 = vrot.slane %v299, 5
      %v805 = vsel %vm763, %v803, %v804
      %v806 = vrot.slane %v703, 5
      %v807 = vrot.slane %v806, 4
      %v808 = vrot.slane %v275, 5
      %v809 = vsel %vm763, %v807, %v808
      %v810 = vrot.slane %v808, 4
      %v811 = vrot.slane %v300, 5
      %v812 = vsel %vm763, %v810, %v811
      %v813 = vrot.slane %v704, 5
      %v814 = vrot.slane %v813, 4
      %v815 = vrot.slane %v277, 5
      %v816 = vsel %vm763, %v814, %v815
      %v817 = vrot.slane %v815, 4
      %v818 = vrot.slane %v301, 5
      %v819 = vsel %vm763, %v817, %v818
      %v820 = vrot.slane %v705, 5
      %v821 = vrot.slane %v820, 4
      %v822 = vrot.slane %v279, 5
      %v823 = vsel %vm763, %v821, %v822
      %v824 = vrot.slane %v822, 4
      %v825 = vrot.slane %v302, 5
      %v826 = vsel %vm763, %v824, %v825
      %v827 = vrot.slane %v706, 5
      %v828 = vrot.slane %v827, 4
      %v829 = vrot.slane %v281, 5
      %v830 = vsel %vm763, %v828, %v829
      %v831 = vrot.slane %v829, 4
      %v832 = vrot.slane %v303, 5
      %v833 = vsel %vm763, %v831, %v832
      %v834 = vrot.slane %v707, 5
      %v835 = vrot.slane %v834, 4
      %v836 = vrot.slane %v283, 5
      %v837 = vsel %vm763, %v835, %v836
      %v838 = vrot.slane %v836, 4
      %v839 = vrot.slane %v304, 5
      %v840 = vsel %vm763, %v838, %v839
      %v841 = vrot.slane %v708, 5
      %v842 = vrot.slane %v841, 4
      %v843 = vrot.slane %v285, 5
      %v844 = vsel %vm763, %v842, %v843
      %v845 = vrot.slane %v843, 4
      %v846 = vrot.slane %v305, 5
      %v847 = vsel %vm763, %v845, %v846
      %v848 = vrot.slane %v709, 5
      %v849 = vrot.slane %v848, 4
      %v850 = vrot.slane %v287, 5
      %v851 = vsel %vm763, %v849, %v850
      %v852 = vrot.slane %v850, 4
      %v853 = vrot.slane %v306, 5
      %v854 = vsel %vm763, %v852, %v853
      %v855 = vrot.slane %v710, 5
      %v856 = vrot.slane %v855, 4
      %v857 = vrot.slane %v289, 5
      %v858 = vsel %vm763, %v856, %v857
      %v859 = vrot.slane %v857, 4
      %v860 = vrot.slane %v307, 5
      %v861 = vsel %vm763, %v859, %v860
      %v862 = vrot.slane %v711, 5
      %v863 = vrot.slane %v862, 4
      %v864 = vrot.slane %v291, 5
      %v865 = vsel %vm763, %v863, %v864
      %v866 = vrot.slane %v864, 4
      %v867 = vrot.slane %v308, 5
      %v868 = vsel %vm763, %v866, %v867
      %v869 = vrot.slane %v712, 5
      %v870 = vrot.slane %v869, 4
      %v871 = vrot.slane %v293, 5
      %v872 = vsel %vm763, %v870, %v871
      %v873 = vrot.slane %v871, 4
      %v874 = vrot.slane %v309, 5
      %v875 = vsel %vm763, %v873, %v874
      %s876 = sadd.s32 %s258, 1
      %s877 = smul.u32 %s876, 3
      %s878 = smul.addr %s877, 4
      %s879 = scalar_lea.vmem %s236, %s878
      %v880 = vld [vmem:[%s879] sm:$0xf]
      %v881 = vld [vmem:[%s879 + $0x4] sm:$0xf]
      %v882 = vld [vmem:[%s879 + $0xc] sm:$0xf]
      %v883 = vld [vmem:[%s879 + $0x10] sm:$0xf]
      %v884 = vld [vmem:[%s879 + $0x18] sm:$0xf]
      %v885 = vld [vmem:[%s879 + $0x1c] sm:$0xf]
      %v886 = vld [vmem:[%s879 + $0x24] sm:$0xf]
      %v887 = vld [vmem:[%s879 + $0x28] sm:$0xf]
      %v888 = vld [vmem:[%s879 + $0x30] sm:$0xf]
      %v889 = vld [vmem:[%s879 + $0x34] sm:$0xf]
      %v890 = vld [vmem:[%s879 + $0x3c] sm:$0xf]
      %v891 = vld [vmem:[%s879 + $0x40] sm:$0xf]
      %v892 = vld [vmem:[%s879 + $0x48] sm:$0xf]
      %v893 = vld [vmem:[%s879 + $0x4c] sm:$0xf]
      %v894 = vld [vmem:[%s879 + $0x54] sm:$0xf]
      %v895 = vld [vmem:[%s879 + $0x58] sm:$0xf]
      %v896 = vld [vmem:[%s879 + $0x60] sm:$0xf]
      %v897 = vld [vmem:[%s879 + $0x64] sm:$0xf]
      %v898 = vld [vmem:[%s879 + $0x6c] sm:$0xf]
      %v899 = vld [vmem:[%s879 + $0x70] sm:$0xf]
      %v900 = vld [vmem:[%s879 + $0x78] sm:$0xf]
      %v901 = vld [vmem:[%s879 + $0x7c] sm:$0xf]
      %v902 = vld [vmem:[%s879 + $0x84] sm:$0xf]
      %v903 = vld [vmem:[%s879 + $0x88] sm:$0xf]
      %v904 = vld [vmem:[%s879 + $0x90] sm:$0xf]
      %v905 = vld [vmem:[%s879 + $0x94] sm:$0xf]
      %v906 = vld [vmem:[%s879 + $0x9c] sm:$0xf]
      %v907 = vld [vmem:[%s879 + $0xa0] sm:$0xf]
      %v908 = vld [vmem:[%s879 + $0xa8] sm:$0xf]
      %v909 = vld [vmem:[%s879 + $0xac] sm:$0xf]
      %v910 = vld [vmem:[%s879 + $0xb4] sm:$0xf]
      %v911 = vld [vmem:[%s879 + $0xb8] sm:$0xf]
      %v912 = vld [vmem:[%s879 + $0x8] sm:$0x1]
      %v913 = vld [vmem:[%s879 + $0x14] sm:$0x1]
      %v914 = vld [vmem:[%s879 + $0x20] sm:$0x1]
      %v915 = vld [vmem:[%s879 + $0x2c] sm:$0x1]
      %v916 = vld [vmem:[%s879 + $0x38] sm:$0x1]
      %v917 = vld [vmem:[%s879 + $0x44] sm:$0x1]
      %v918 = vld [vmem:[%s879 + $0x50] sm:$0x1]
      %v919 = vld [vmem:[%s879 + $0x5c] sm:$0x1]
      %v920 = vld [vmem:[%s879 + $0x68] sm:$0x1]
      %v921 = vld [vmem:[%s879 + $0x74] sm:$0x1]
      %v922 = vld [vmem:[%s879 + $0x80] sm:$0x1]
      %v923 = vld [vmem:[%s879 + $0x8c] sm:$0x1]
      %v924 = vld [vmem:[%s879 + $0x98] sm:$0x1]
      %v925 = vld [vmem:[%s879 + $0xa4] sm:$0x1]
      %v926 = vld [vmem:[%s879 + $0xb0] sm:$0x1]
      %v927 = vld [vmem:[%s879 + $0xbc] sm:$0x1]
      %v929 = vshrl.u32 %v880, 16
      %v931 = vrot.slane %v929, 4
      %v932 = vshll.u32 %v880, 16
      %v934 = vrot.slane %v932, 5
      %v935 = vor.u32 %v931, %v934
      %v936 = vrot.slane %v935, 4
      %v938 = vshll.u32 %v881, 16
      %v940 = vrot.slane %v938, 5
      %v941 = vsel %vm312, %v936, %v940
      %v942 = vshrl.u32 %v881, 16
      %v944 = vrot.slane %v942, 4
      %v945 = vor.u32 %v944, %v940
      %v946 = vrot.slane %v945, 4
      %v948 = vshll.u32 %v912, 16
      %v950 = vrot.slane %v948, 5
      %v951 = vsel %vm312, %v946, %v950
      %v953 = vshrl.u32 %v882, 16
      %v955 = vrot.slane %v953, 4
      %v956 = vshll.u32 %v882, 16
      %v958 = vrot.slane %v956, 5
      %v959 = vor.u32 %v955, %v958
      %v960 = vrot.slane %v959, 4
      %v962 = vshll.u32 %v883, 16
      %v964 = vrot.slane %v962, 5
      %v965 = vsel %vm312, %v960, %v964
      %v966 = vshrl.u32 %v883, 16
      %v968 = vrot.slane %v966, 4
      %v969 = vor.u32 %v968, %v964
      %v970 = vrot.slane %v969, 4
      %v972 = vshll.u32 %v913, 16
      %v974 = vrot.slane %v972, 5
      %v975 = vsel %vm312, %v970, %v974
      %v977 = vshrl.u32 %v884, 16
      %v979 = vrot.slane %v977, 4
      %v980 = vshll.u32 %v884, 16
      %v982 = vrot.slane %v980, 5
      %v983 = vor.u32 %v979, %v982
      %v984 = vrot.slane %v983, 4
      %v986 = vshll.u32 %v885, 16
      %v988 = vrot.slane %v986, 5
      %v989 = vsel %vm312, %v984, %v988
      %v990 = vshrl.u32 %v885, 16
      %v992 = vrot.slane %v990, 4
      %v993 = vor.u32 %v992, %v988
      %v994 = vrot.slane %v993, 4
      %v996 = vshll.u32 %v914, 16
      %v998 = vrot.slane %v996, 5
      %v999 = vsel %vm312, %v994, %v998
      %v1001 = vshrl.u32 %v886, 16
      %v1003 = vrot.slane %v1001, 4
      %v1004 = vshll.u32 %v886, 16
      %v1006 = vrot.slane %v1004, 5
      %v1007 = vor.u32 %v1003, %v1006
      %v1008 = vrot.slane %v1007, 4
      %v1010 = vshll.u32 %v887, 16
      %v1012 = vrot.slane %v1010, 5
      %v1013 = vsel %vm312, %v1008, %v1012
      %v1014 = vshrl.u32 %v887, 16
      %v1016 = vrot.slane %v1014, 4
      %v1017 = vor.u32 %v1016, %v1012
      %v1018 = vrot.slane %v1017, 4
      %v1020 = vshll.u32 %v915, 16
      %v1022 = vrot.slane %v1020, 5
      %v1023 = vsel %vm312, %v1018, %v1022
      %v1025 = vshrl.u32 %v888, 16
      %v1027 = vrot.slane %v1025, 4
      %v1028 = vshll.u32 %v888, 16
      %v1030 = vrot.slane %v1028, 5
      %v1031 = vor.u32 %v1027, %v1030
      %v1032 = vrot.slane %v1031, 4
      %v1034 = vshll.u32 %v889, 16
      %v1036 = vrot.slane %v1034, 5
      %v1037 = vsel %vm312, %v1032, %v1036
      %v1038 = vshrl.u32 %v889, 16
      %v1040 = vrot.slane %v1038, 4
      %v1041 = vor.u32 %v1040, %v1036
      %v1042 = vrot.slane %v1041, 4
      %v1044 = vshll.u32 %v916, 16
      %v1046 = vrot.slane %v1044, 5
      %v1047 = vsel %vm312, %v1042, %v1046
      %v1049 = vshrl.u32 %v890, 16
      %v1051 = vrot.slane %v1049, 4
      %v1052 = vshll.u32 %v890, 16
      %v1054 = vrot.slane %v1052, 5
      %v1055 = vor.u32 %v1051, %v1054
      %v1056 = vrot.slane %v1055, 4
      %v1058 = vshll.u32 %v891, 16
      %v1060 = vrot.slane %v1058, 5
      %v1061 = vsel %vm312, %v1056, %v1060
      %v1062 = vshrl.u32 %v891, 16
      %v1064 = vrot.slane %v1062, 4
      %v1065 = vor.u32 %v1064, %v1060
      %v1066 = vrot.slane %v1065, 4
      %v1068 = vshll.u32 %v917, 16
      %v1070 = vrot.slane %v1068, 5
      %v1071 = vsel %vm312, %v1066, %v1070
      %v1073 = vshrl.u32 %v892, 16
      %v1075 = vrot.slane %v1073, 4
      %v1076 = vshll.u32 %v892, 16
      %v1078 = vrot.slane %v1076, 5
      %v1079 = vor.u32 %v1075, %v1078
      %v1080 = vrot.slane %v1079, 4
      %v1082 = vshll.u32 %v893, 16
      %v1084 = vrot.slane %v1082, 5
      %v1085 = vsel %vm312, %v1080, %v1084
      %v1086 = vshrl.u32 %v893, 16
      %v1088 = vrot.slane %v1086, 4
      %v1089 = vor.u32 %v1088, %v1084
      %v1090 = vrot.slane %v1089, 4
      %v1092 = vshll.u32 %v918, 16
      %v1094 = vrot.slane %v1092, 5
      %v1095 = vsel %vm312, %v1090, %v1094
      %v1097 = vshrl.u32 %v894, 16
      %v1099 = vrot.slane %v1097, 4
      %v1100 = vshll.u32 %v894, 16
      %v1102 = vrot.slane %v1100, 5
      %v1103 = vor.u32 %v1099, %v1102
      %v1104 = vrot.slane %v1103, 4
      %v1106 = vshll.u32 %v895, 16
      %v1108 = vrot.slane %v1106, 5
      %v1109 = vsel %vm312, %v1104, %v1108
      %v1110 = vshrl.u32 %v895, 16
      %v1112 = vrot.slane %v1110, 4
      %v1113 = vor.u32 %v1112, %v1108
      %v1114 = vrot.slane %v1113, 4
      %v1116 = vshll.u32 %v919, 16
      %v1118 = vrot.slane %v1116, 5
      %v1119 = vsel %vm312, %v1114, %v1118
      %v1121 = vshrl.u32 %v896, 16
      %v1123 = vrot.slane %v1121, 4
      %v1124 = vshll.u32 %v896, 16
      %v1126 = vrot.slane %v1124, 5
      %v1127 = vor.u32 %v1123, %v1126
      %v1128 = vrot.slane %v1127, 4
      %v1130 = vshll.u32 %v897, 16
      %v1132 = vrot.slane %v1130, 5
      %v1133 = vsel %vm312, %v1128, %v1132
      %v1134 = vshrl.u32 %v897, 16
      %v1136 = vrot.slane %v1134, 4
      %v1137 = vor.u32 %v1136, %v1132
      %v1138 = vrot.slane %v1137, 4
      %v1140 = vshll.u32 %v920, 16
      %v1142 = vrot.slane %v1140, 5
      %v1143 = vsel %vm312, %v1138, %v1142
      %v1145 = vshrl.u32 %v898, 16
      %v1147 = vrot.slane %v1145, 4
      %v1148 = vshll.u32 %v898, 16
      %v1150 = vrot.slane %v1148, 5
      %v1151 = vor.u32 %v1147, %v1150
      %v1152 = vrot.slane %v1151, 4
      %v1154 = vshll.u32 %v899, 16
      %v1156 = vrot.slane %v1154, 5
      %v1157 = vsel %vm312, %v1152, %v1156
      %v1158 = vshrl.u32 %v899, 16
      %v1160 = vrot.slane %v1158, 4
      %v1161 = vor.u32 %v1160, %v1156
      %v1162 = vrot.slane %v1161, 4
      %v1164 = vshll.u32 %v921, 16
      %v1166 = vrot.slane %v1164, 5
      %v1167 = vsel %vm312, %v1162, %v1166
      %v1169 = vshrl.u32 %v900, 16
      %v1171 = vrot.slane %v1169, 4
      %v1172 = vshll.u32 %v900, 16
      %v1174 = vrot.slane %v1172, 5
      %v1175 = vor.u32 %v1171, %v1174
      %v1176 = vrot.slane %v1175, 4
      %v1178 = vshll.u32 %v901, 16
      %v1180 = vrot.slane %v1178, 5
      %v1181 = vsel %vm312, %v1176, %v1180
      %v1182 = vshrl.u32 %v901, 16
      %v1184 = vrot.slane %v1182, 4
      %v1185 = vor.u32 %v1184, %v1180
      %v1186 = vrot.slane %v1185, 4
      %v1188 = vshll.u32 %v922, 16
      %v1190 = vrot.slane %v1188, 5
      %v1191 = vsel %vm312, %v1186, %v1190
      %v1193 = vshrl.u32 %v902, 16
      %v1195 = vrot.slane %v1193, 4
      %v1196 = vshll.u32 %v902, 16
      %v1198 = vrot.slane %v1196, 5
      %v1199 = vor.u32 %v1195, %v1198
      %v1200 = vrot.slane %v1199, 4
      %v1202 = vshll.u32 %v903, 16
      %v1204 = vrot.slane %v1202, 5
      %v1205 = vsel %vm312, %v1200, %v1204
      %v1206 = vshrl.u32 %v903, 16
      %v1208 = vrot.slane %v1206, 4
      %v1209 = vor.u32 %v1208, %v1204
      %v1210 = vrot.slane %v1209, 4
      %v1212 = vshll.u32 %v923, 16
      %v1214 = vrot.slane %v1212, 5
      %v1215 = vsel %vm312, %v1210, %v1214
      %v1217 = vshrl.u32 %v904, 16
      %v1219 = vrot.slane %v1217, 4
      %v1220 = vshll.u32 %v904, 16
      %v1222 = vrot.slane %v1220, 5
      %v1223 = vor.u32 %v1219, %v1222
      %v1224 = vrot.slane %v1223, 4
      %v1226 = vshll.u32 %v905, 16
      %v1228 = vrot.slane %v1226, 5
      %v1229 = vsel %vm312, %v1224, %v1228
      %v1230 = vshrl.u32 %v905, 16
      %v1232 = vrot.slane %v1230, 4
      %v1233 = vor.u32 %v1232, %v1228
      %v1234 = vrot.slane %v1233, 4
      %v1236 = vshll.u32 %v924, 16
      %v1238 = vrot.slane %v1236, 5
      %v1239 = vsel %vm312, %v1234, %v1238
      %v1241 = vshrl.u32 %v906, 16
      %v1243 = vrot.slane %v1241, 4
      %v1244 = vshll.u32 %v906, 16
      %v1246 = vrot.slane %v1244, 5
      %v1247 = vor.u32 %v1243, %v1246
      %v1248 = vrot.slane %v1247, 4
      %v1250 = vshll.u32 %v907, 16
      %v1252 = vrot.slane %v1250, 5
      %v1253 = vsel %vm312, %v1248, %v1252
      %v1254 = vshrl.u32 %v907, 16
      %v1256 = vrot.slane %v1254, 4
      %v1257 = vor.u32 %v1256, %v1252
      %v1258 = vrot.slane %v1257, 4
      %v1260 = vshll.u32 %v925, 16
      %v1262 = vrot.slane %v1260, 5
      %v1263 = vsel %vm312, %v1258, %v1262
      %v1265 = vshrl.u32 %v908, 16
      %v1267 = vrot.slane %v1265, 4
      %v1268 = vshll.u32 %v908, 16
      %v1270 = vrot.slane %v1268, 5
      %v1271 = vor.u32 %v1267, %v1270
      %v1272 = vrot.slane %v1271, 4
      %v1274 = vshll.u32 %v909, 16
      %v1276 = vrot.slane %v1274, 5
      %v1277 = vsel %vm312, %v1272, %v1276
      %v1278 = vshrl.u32 %v909, 16
      %v1280 = vrot.slane %v1278, 4
      %v1281 = vor.u32 %v1280, %v1276
      %v1282 = vrot.slane %v1281, 4
      %v1284 = vshll.u32 %v926, 16
      %v1286 = vrot.slane %v1284, 5
      %v1287 = vsel %vm312, %v1282, %v1286
      %v1289 = vshrl.u32 %v910, 16
      %v1291 = vrot.slane %v1289, 4
      %v1292 = vshll.u32 %v910, 16
      %v1294 = vrot.slane %v1292, 5
      %v1295 = vor.u32 %v1291, %v1294
      %v1296 = vrot.slane %v1295, 4
      %v1298 = vshll.u32 %v911, 16
      %v1300 = vrot.slane %v1298, 5
      %v1301 = vsel %vm312, %v1296, %v1300
      %v1302 = vshrl.u32 %v911, 16
      %v1304 = vrot.slane %v1302, 4
      %v1305 = vor.u32 %v1304, %v1300
      %v1306 = vrot.slane %v1305, 4
      %v1308 = vshll.u32 %v927, 16
      %v1310 = vrot.slane %v1308, 5
      %v1311 = vsel %vm312, %v1306, %v1310
      %v1312 = vld [vmem:[%s879] sm:$0xe]
      %v1313 = vld [vmem:[%s879 + $0xc] sm:$0xe]
      %v1314 = vld [vmem:[%s879 + $0x18] sm:$0xe]
      %v1315 = vld [vmem:[%s879 + $0x24] sm:$0xe]
      %v1316 = vld [vmem:[%s879 + $0x30] sm:$0xe]
      %v1317 = vld [vmem:[%s879 + $0x3c] sm:$0xe]
      %v1318 = vld [vmem:[%s879 + $0x48] sm:$0xe]
      %v1319 = vld [vmem:[%s879 + $0x54] sm:$0xe]
      %v1320 = vld [vmem:[%s879 + $0x60] sm:$0xe]
      %v1321 = vld [vmem:[%s879 + $0x6c] sm:$0xe]
      %v1322 = vld [vmem:[%s879 + $0x78] sm:$0xe]
      %v1323 = vld [vmem:[%s879 + $0x84] sm:$0xe]
      %v1324 = vld [vmem:[%s879 + $0x90] sm:$0xe]
      %v1325 = vld [vmem:[%s879 + $0x9c] sm:$0xe]
      %v1326 = vld [vmem:[%s879 + $0xa8] sm:$0xe]
      %v1327 = vld [vmem:[%s879 + $0xb4] sm:$0xe]
      %v1376 = vrot.slane %v1312, 5
      %v1377 = vrot.slane %v1376, 4
      %v1378 = vrot.slane %v881, 5
      %v1379 = vsel %vm763, %v1377, %v1378
      %v1380 = vrot.slane %v1378, 4
      %v1381 = vrot.slane %v912, 5
      %v1382 = vsel %vm763, %v1380, %v1381
      %v1383 = vrot.slane %v1313, 5
      %v1384 = vrot.slane %v1383, 4
      %v1385 = vrot.slane %v883, 5
      %v1386 = vsel %vm763, %v1384, %v1385
      %v1387 = vrot.slane %v1385, 4
      %v1388 = vrot.slane %v913, 5
      %v1389 = vsel %vm763, %v1387, %v1388
      %v1390 = vrot.slane %v1314, 5
      %v1391 = vrot.slane %v1390, 4
      %v1392 = vrot.slane %v885, 5
      %v1393 = vsel %vm763, %v1391, %v1392
      %v1394 = vrot.slane %v1392, 4
      %v1395 = vrot.slane %v914, 5
      %v1396 = vsel %vm763, %v1394, %v1395
      %v1397 = vrot.slane %v1315, 5
      %v1398 = vrot.slane %v1397, 4
      %v1399 = vrot.slane %v887, 5
      %v1400 = vsel %vm763, %v1398, %v1399
      %v1401 = vrot.slane %v1399, 4
      %v1402 = vrot.slane %v915, 5
      %v1403 = vsel %vm763, %v1401, %v1402
      %v1404 = vrot.slane %v1316, 5
      %v1405 = vrot.slane %v1404, 4
      %v1406 = vrot.slane %v889, 5
      %v1407 = vsel %vm763, %v1405, %v1406
      %v1408 = vrot.slane %v1406, 4
      %v1409 = vrot.slane %v916, 5
      %v1410 = vsel %vm763, %v1408, %v1409
      %v1411 = vrot.slane %v1317, 5
      %v1412 = vrot.slane %v1411, 4
      %v1413 = vrot.slane %v891, 5
      %v1414 = vsel %vm763, %v1412, %v1413
      %v1415 = vrot.slane %v1413, 4
      %v1416 = vrot.slane %v917, 5
      %v1417 = vsel %vm763, %v1415, %v1416
      %v1418 = vrot.slane %v1318, 5
      %v1419 = vrot.slane %v1418, 4
      %v1420 = vrot.slane %v893, 5
      %v1421 = vsel %vm763, %v1419, %v1420
      %v1422 = vrot.slane %v1420, 4
      %v1423 = vrot.slane %v918, 5
      %v1424 = vsel %vm763, %v1422, %v1423
      %v1425 = vrot.slane %v1319, 5
      %v1426 = vrot.slane %v1425, 4
      %v1427 = vrot.slane %v895, 5
      %v1428 = vsel %vm763, %v1426, %v1427
      %v1429 = vrot.slane %v1427, 4
      %v1430 = vrot.slane %v919, 5
      %v1431 = vsel %vm763, %v1429, %v1430
      %v1432 = vrot.slane %v1320, 5
      %v1433 = vrot.slane %v1432, 4
      %v1434 = vrot.slane %v897, 5
      %v1435 = vsel %vm763, %v1433, %v1434
      %v1436 = vrot.slane %v1434, 4
      %v1437 = vrot.slane %v920, 5
      %v1438 = vsel %vm763, %v1436, %v1437
      %v1439 = vrot.slane %v1321, 5
      %v1440 = vrot.slane %v1439, 4
      %v1441 = vrot.slane %v899, 5
      %v1442 = vsel %vm763, %v1440, %v1441
      %v1443 = vrot.slane %v1441, 4
      %v1444 = vrot.slane %v921, 5
      %v1445 = vsel %vm763, %v1443, %v1444
      %v1446 = vrot.slane %v1322, 5
      %v1447 = vrot.slane %v1446, 4
      %v1448 = vrot.slane %v901, 5
      %v1449 = vsel %vm763, %v1447, %v1448
      %v1450 = vrot.slane %v1448, 4
      %v1451 = vrot.slane %v922, 5
      %v1452 = vsel %vm763, %v1450, %v1451
      %v1453 = vrot.slane %v1323, 5
      %v1454 = vrot.slane %v1453, 4
      %v1455 = vrot.slane %v903, 5
      %v1456 = vsel %vm763, %v1454, %v1455
      %v1457 = vrot.slane %v1455, 4
      %v1458 = vrot.slane %v923, 5
      %v1459 = vsel %vm763, %v1457, %v1458
      %v1460 = vrot.slane %v1324, 5
      %v1461 = vrot.slane %v1460, 4
      %v1462 = vrot.slane %v905, 5
      %v1463 = vsel %vm763, %v1461, %v1462
      %v1464 = vrot.slane %v1462, 4
      %v1465 = vrot.slane %v924, 5
      %v1466 = vsel %vm763, %v1464, %v1465
      %v1467 = vrot.slane %v1325, 5
      %v1468 = vrot.slane %v1467, 4
      %v1469 = vrot.slane %v907, 5
      %v1470 = vsel %vm763, %v1468, %v1469
      %v1471 = vrot.slane %v1469, 4
      %v1472 = vrot.slane %v925, 5
      %v1473 = vsel %vm763, %v1471, %v1472
      %v1474 = vrot.slane %v1326, 5
      %v1475 = vrot.slane %v1474, 4
      %v1476 = vrot.slane %v909, 5
      %v1477 = vsel %vm763, %v1475, %v1476
      %v1478 = vrot.slane %v1476, 4
      %v1479 = vrot.slane %v926, 5
      %v1480 = vsel %vm763, %v1478, %v1479
      %v1481 = vrot.slane %v1327, 5
      %v1482 = vrot.slane %v1481, 4
      %v1483 = vrot.slane %v911, 5
      %v1484 = vsel %vm763, %v1482, %v1483
      %v1485 = vrot.slane %v1483, 4
      %v1486 = vrot.slane %v927, 5
      %v1487 = vsel %vm763, %v1485, %v1486
      %s1488 = sadd.s32 %s258, 2
      %s1489 = smul.u32 %s1488, 3
      %s1490 = smul.addr %s1489, 4
      %s1491 = scalar_lea.vmem %s236, %s1490
      %v1492 = vld [vmem:[%s1491] sm:$0xf]
      %v1493 = vld [vmem:[%s1491 + $0x4] sm:$0xf]
      %v1494 = vld [vmem:[%s1491 + $0xc] sm:$0xf]
      %v1495 = vld [vmem:[%s1491 + $0x10] sm:$0xf]
      %v1496 = vld [vmem:[%s1491 + $0x18] sm:$0xf]
      %v1497 = vld [vmem:[%s1491 + $0x1c] sm:$0xf]
      %v1498 = vld [vmem:[%s1491 + $0x24] sm:$0xf]
      %v1499 = vld [vmem:[%s1491 + $0x28] sm:$0xf]
      %v1500 = vld [vmem:[%s1491 + $0x30] sm:$0xf]
      %v1501 = vld [vmem:[%s1491 + $0x34] sm:$0xf]
      %v1502 = vld [vmem:[%s1491 + $0x3c] sm:$0xf]
      %v1503 = vld [vmem:[%s1491 + $0x40] sm:$0xf]
      %v1504 = vld [vmem:[%s1491 + $0x48] sm:$0xf]
      %v1505 = vld [vmem:[%s1491 + $0x4c] sm:$0xf]
      %v1506 = vld [vmem:[%s1491 + $0x54] sm:$0xf]
      %v1507 = vld [vmem:[%s1491 + $0x58] sm:$0xf]
      %v1508 = vld [vmem:[%s1491 + $0x60] sm:$0xf]
      %v1509 = vld [vmem:[%s1491 + $0x64] sm:$0xf]
      %v1510 = vld [vmem:[%s1491 + $0x6c] sm:$0xf]
      %v1511 = vld [vmem:[%s1491 + $0x70] sm:$0xf]
      %v1512 = vld [vmem:[%s1491 + $0x78] sm:$0xf]
      %v1513 = vld [vmem:[%s1491 + $0x7c] sm:$0xf]
      %v1514 = vld [vmem:[%s1491 + $0x84] sm:$0xf]
      %v1515 = vld [vmem:[%s1491 + $0x88] sm:$0xf]
      %v1516 = vld [vmem:[%s1491 + $0x90] sm:$0xf]
      %v1517 = vld [vmem:[%s1491 + $0x94] sm:$0xf]
      %v1518 = vld [vmem:[%s1491 + $0x9c] sm:$0xf]
      %v1519 = vld [vmem:[%s1491 + $0xa0] sm:$0xf]
      %v1520 = vld [vmem:[%s1491 + $0xa8] sm:$0xf]
      %v1521 = vld [vmem:[%s1491 + $0xac] sm:$0xf]
      %v1522 = vld [vmem:[%s1491 + $0xb4] sm:$0xf]
      %v1523 = vld [vmem:[%s1491 + $0xb8] sm:$0xf]
      %v1524 = vld [vmem:[%s1491 + $0x8] sm:$0x1]
      %v1525 = vld [vmem:[%s1491 + $0x14] sm:$0x1]
      %v1526 = vld [vmem:[%s1491 + $0x20] sm:$0x1]
      %v1527 = vld [vmem:[%s1491 + $0x2c] sm:$0x1]
      %v1528 = vld [vmem:[%s1491 + $0x38] sm:$0x1]
      %v1529 = vld [vmem:[%s1491 + $0x44] sm:$0x1]
      %v1530 = vld [vmem:[%s1491 + $0x50] sm:$0x1]
      %v1531 = vld [vmem:[%s1491 + $0x5c] sm:$0x1]
      %v1532 = vld [vmem:[%s1491 + $0x68] sm:$0x1]
      %v1533 = vld [vmem:[%s1491 + $0x74] sm:$0x1]
      %v1534 = vld [vmem:[%s1491 + $0x80] sm:$0x1]
      %v1535 = vld [vmem:[%s1491 + $0x8c] sm:$0x1]
      %v1536 = vld [vmem:[%s1491 + $0x98] sm:$0x1]
      %v1537 = vld [vmem:[%s1491 + $0xa4] sm:$0x1]
      %v1538 = vld [vmem:[%s1491 + $0xb0] sm:$0x1]
      %v1539 = vld [vmem:[%s1491 + $0xbc] sm:$0x1]
      %v1541 = vshrl.u32 %v1492, 16
      %v1543 = vrot.slane %v1541, 4
      %v1544 = vshll.u32 %v1492, 16
      %v1546 = vrot.slane %v1544, 5
      %v1547 = vor.u32 %v1543, %v1546
      %v1548 = vrot.slane %v1547, 4
      %v1550 = vshll.u32 %v1493, 16
      %v1552 = vrot.slane %v1550, 5
      %v1553 = vsel %vm312, %v1548, %v1552
      %v1554 = vshrl.u32 %v1493, 16
      %v1556 = vrot.slane %v1554, 4
      %v1557 = vor.u32 %v1556, %v1552
      %v1558 = vrot.slane %v1557, 4
      %v1560 = vshll.u32 %v1524, 16
      %v1562 = vrot.slane %v1560, 5
      %v1563 = vsel %vm312, %v1558, %v1562
      %v1565 = vshrl.u32 %v1494, 16
      %v1567 = vrot.slane %v1565, 4
      %v1568 = vshll.u32 %v1494, 16
      %v1570 = vrot.slane %v1568, 5
      %v1571 = vor.u32 %v1567, %v1570
      %v1572 = vrot.slane %v1571, 4
      %v1574 = vshll.u32 %v1495, 16
      %v1576 = vrot.slane %v1574, 5
      %v1577 = vsel %vm312, %v1572, %v1576
      %v1578 = vshrl.u32 %v1495, 16
      %v1580 = vrot.slane %v1578, 4
      %v1581 = vor.u32 %v1580, %v1576
      %v1582 = vrot.slane %v1581, 4
      %v1584 = vshll.u32 %v1525, 16
      %v1586 = vrot.slane %v1584, 5
      %v1587 = vsel %vm312, %v1582, %v1586
      %v1589 = vshrl.u32 %v1496, 16
      %v1591 = vrot.slane %v1589, 4
      %v1592 = vshll.u32 %v1496, 16
      %v1594 = vrot.slane %v1592, 5
      %v1595 = vor.u32 %v1591, %v1594
      %v1596 = vrot.slane %v1595, 4
      %v1598 = vshll.u32 %v1497, 16
      %v1600 = vrot.slane %v1598, 5
      %v1601 = vsel %vm312, %v1596, %v1600
      %v1602 = vshrl.u32 %v1497, 16
      %v1604 = vrot.slane %v1602, 4
      %v1605 = vor.u32 %v1604, %v1600
      %v1606 = vrot.slane %v1605, 4
      %v1608 = vshll.u32 %v1526, 16
      %v1610 = vrot.slane %v1608, 5
      %v1611 = vsel %vm312, %v1606, %v1610
      %v1613 = vshrl.u32 %v1498, 16
      %v1615 = vrot.slane %v1613, 4
      %v1616 = vshll.u32 %v1498, 16
      %v1618 = vrot.slane %v1616, 5
      %v1619 = vor.u32 %v1615, %v1618
      %v1620 = vrot.slane %v1619, 4
      %v1622 = vshll.u32 %v1499, 16
      %v1624 = vrot.slane %v1622, 5
      %v1625 = vsel %vm312, %v1620, %v1624
      %v1626 = vshrl.u32 %v1499, 16
      %v1628 = vrot.slane %v1626, 4
      %v1629 = vor.u32 %v1628, %v1624
      %v1630 = vrot.slane %v1629, 4
      %v1632 = vshll.u32 %v1527, 16
      %v1634 = vrot.slane %v1632, 5
      %v1635 = vsel %vm312, %v1630, %v1634
      %v1637 = vshrl.u32 %v1500, 16
      %v1639 = vrot.slane %v1637, 4
      %v1640 = vshll.u32 %v1500, 16
      %v1642 = vrot.slane %v1640, 5
      %v1643 = vor.u32 %v1639, %v1642
      %v1644 = vrot.slane %v1643, 4
      %v1646 = vshll.u32 %v1501, 16
      %v1648 = vrot.slane %v1646, 5
      %v1649 = vsel %vm312, %v1644, %v1648
      %v1650 = vshrl.u32 %v1501, 16
      %v1652 = vrot.slane %v1650, 4
      %v1653 = vor.u32 %v1652, %v1648
      %v1654 = vrot.slane %v1653, 4
      %v1656 = vshll.u32 %v1528, 16
      %v1658 = vrot.slane %v1656, 5
      %v1659 = vsel %vm312, %v1654, %v1658
      %v1661 = vshrl.u32 %v1502, 16
      %v1663 = vrot.slane %v1661, 4
      %v1664 = vshll.u32 %v1502, 16
      %v1666 = vrot.slane %v1664, 5
      %v1667 = vor.u32 %v1663, %v1666
      %v1668 = vrot.slane %v1667, 4
      %v1670 = vshll.u32 %v1503, 16
      %v1672 = vrot.slane %v1670, 5
      %v1673 = vsel %vm312, %v1668, %v1672
      %v1674 = vshrl.u32 %v1503, 16
      %v1676 = vrot.slane %v1674, 4
      %v1677 = vor.u32 %v1676, %v1672
      %v1678 = vrot.slane %v1677, 4
      %v1680 = vshll.u32 %v1529, 16
      %v1682 = vrot.slane %v1680, 5
      %v1683 = vsel %vm312, %v1678, %v1682
      %v1685 = vshrl.u32 %v1504, 16
      %v1687 = vrot.slane %v1685, 4
      %v1688 = vshll.u32 %v1504, 16
      %v1690 = vrot.slane %v1688, 5
      %v1691 = vor.u32 %v1687, %v1690
      %v1692 = vrot.slane %v1691, 4
      %v1694 = vshll.u32 %v1505, 16
      %v1696 = vrot.slane %v1694, 5
      %v1697 = vsel %vm312, %v1692, %v1696
      %v1698 = vshrl.u32 %v1505, 16
      %v1700 = vrot.slane %v1698, 4
      %v1701 = vor.u32 %v1700, %v1696
      %v1702 = vrot.slane %v1701, 4
      %v1704 = vshll.u32 %v1530, 16
      %v1706 = vrot.slane %v1704, 5
      %v1707 = vsel %vm312, %v1702, %v1706
      %v1709 = vshrl.u32 %v1506, 16
      %v1711 = vrot.slane %v1709, 4
      %v1712 = vshll.u32 %v1506, 16
      %v1714 = vrot.slane %v1712, 5
      %v1715 = vor.u32 %v1711, %v1714
      %v1716 = vrot.slane %v1715, 4
      %v1718 = vshll.u32 %v1507, 16
      %v1720 = vrot.slane %v1718, 5
      %v1721 = vsel %vm312, %v1716, %v1720
      %v1722 = vshrl.u32 %v1507, 16
      %v1724 = vrot.slane %v1722, 4
      %v1725 = vor.u32 %v1724, %v1720
      %v1726 = vrot.slane %v1725, 4
      %v1728 = vshll.u32 %v1531, 16
      %v1730 = vrot.slane %v1728, 5
      %v1731 = vsel %vm312, %v1726, %v1730
      %v1733 = vshrl.u32 %v1508, 16
      %v1735 = vrot.slane %v1733, 4
      %v1736 = vshll.u32 %v1508, 16
      %v1738 = vrot.slane %v1736, 5
      %v1739 = vor.u32 %v1735, %v1738
      %v1740 = vrot.slane %v1739, 4
      %v1742 = vshll.u32 %v1509, 16
      %v1744 = vrot.slane %v1742, 5
      %v1745 = vsel %vm312, %v1740, %v1744
      %v1746 = vshrl.u32 %v1509, 16
      %v1748 = vrot.slane %v1746, 4
      %v1749 = vor.u32 %v1748, %v1744
      %v1750 = vrot.slane %v1749, 4
      %v1752 = vshll.u32 %v1532, 16
      %v1754 = vrot.slane %v1752, 5
      %v1755 = vsel %vm312, %v1750, %v1754
      %v1757 = vshrl.u32 %v1510, 16
      %v1759 = vrot.slane %v1757, 4
      %v1760 = vshll.u32 %v1510, 16
      %v1762 = vrot.slane %v1760, 5
      %v1763 = vor.u32 %v1759, %v1762
      %v1764 = vrot.slane %v1763, 4
      %v1766 = vshll.u32 %v1511, 16
      %v1768 = vrot.slane %v1766, 5
      %v1769 = vsel %vm312, %v1764, %v1768
      %v1770 = vshrl.u32 %v1511, 16
      %v1772 = vrot.slane %v1770, 4
      %v1773 = vor.u32 %v1772, %v1768
      %v1774 = vrot.slane %v1773, 4
      %v1776 = vshll.u32 %v1533, 16
      %v1778 = vrot.slane %v1776, 5
      %v1779 = vsel %vm312, %v1774, %v1778
      %v1781 = vshrl.u32 %v1512, 16
      %v1783 = vrot.slane %v1781, 4
      %v1784 = vshll.u32 %v1512, 16
      %v1786 = vrot.slane %v1784, 5
      %v1787 = vor.u32 %v1783, %v1786
      %v1788 = vrot.slane %v1787, 4
      %v1790 = vshll.u32 %v1513, 16
      %v1792 = vrot.slane %v1790, 5
      %v1793 = vsel %vm312, %v1788, %v1792
      %v1794 = vshrl.u32 %v1513, 16
      %v1796 = vrot.slane %v1794, 4
      %v1797 = vor.u32 %v1796, %v1792
      %v1798 = vrot.slane %v1797, 4
      %v1800 = vshll.u32 %v1534, 16
      %v1802 = vrot.slane %v1800, 5
      %v1803 = vsel %vm312, %v1798, %v1802
      %v1805 = vshrl.u32 %v1514, 16
      %v1807 = vrot.slane %v1805, 4
      %v1808 = vshll.u32 %v1514, 16
      %v1810 = vrot.slane %v1808, 5
      %v1811 = vor.u32 %v1807, %v1810
      %v1812 = vrot.slane %v1811, 4
      %v1814 = vshll.u32 %v1515, 16
      %v1816 = vrot.slane %v1814, 5
      %v1817 = vsel %vm312, %v1812, %v1816
      %v1818 = vshrl.u32 %v1515, 16
      %v1820 = vrot.slane %v1818, 4
      %v1821 = vor.u32 %v1820, %v1816
      %v1822 = vrot.slane %v1821, 4
      %v1824 = vshll.u32 %v1535, 16
      %v1826 = vrot.slane %v1824, 5
      %v1827 = vsel %vm312, %v1822, %v1826
      %v1829 = vshrl.u32 %v1516, 16
      %v1831 = vrot.slane %v1829, 4
      %v1832 = vshll.u32 %v1516, 16
      %v1834 = vrot.slane %v1832, 5
      %v1835 = vor.u32 %v1831, %v1834
      %v1836 = vrot.slane %v1835, 4
      %v1838 = vshll.u32 %v1517, 16
      %v1840 = vrot.slane %v1838, 5
      %v1841 = vsel %vm312, %v1836, %v1840
      %v1842 = vshrl.u32 %v1517, 16
      %v1844 = vrot.slane %v1842, 4
      %v1845 = vor.u32 %v1844, %v1840
      %v1846 = vrot.slane %v1845, 4
      %v1848 = vshll.u32 %v1536, 16
      %v1850 = vrot.slane %v1848, 5
      %v1851 = vsel %vm312, %v1846, %v1850
      %v1853 = vshrl.u32 %v1518, 16
      %v1855 = vrot.slane %v1853, 4
      %v1856 = vshll.u32 %v1518, 16
      %v1858 = vrot.slane %v1856, 5
      %v1859 = vor.u32 %v1855, %v1858
      %v1860 = vrot.slane %v1859, 4
      %v1862 = vshll.u32 %v1519, 16
      %v1864 = vrot.slane %v1862, 5
      %v1865 = vsel %vm312, %v1860, %v1864
      %v1866 = vshrl.u32 %v1519, 16
      %v1868 = vrot.slane %v1866, 4
      %v1869 = vor.u32 %v1868, %v1864
      %v1870 = vrot.slane %v1869, 4
      %v1872 = vshll.u32 %v1537, 16
      %v1874 = vrot.slane %v1872, 5
      %v1875 = vsel %vm312, %v1870, %v1874
      %v1877 = vshrl.u32 %v1520, 16
      %v1879 = vrot.slane %v1877, 4
      %v1880 = vshll.u32 %v1520, 16
      %v1882 = vrot.slane %v1880, 5
      %v1883 = vor.u32 %v1879, %v1882
      %v1884 = vrot.slane %v1883, 4
      %v1886 = vshll.u32 %v1521, 16
      %v1888 = vrot.slane %v1886, 5
      %v1889 = vsel %vm312, %v1884, %v1888
      %v1890 = vshrl.u32 %v1521, 16
      %v1892 = vrot.slane %v1890, 4
      %v1893 = vor.u32 %v1892, %v1888
      %v1894 = vrot.slane %v1893, 4
      %v1896 = vshll.u32 %v1538, 16
      %v1898 = vrot.slane %v1896, 5
      %v1899 = vsel %vm312, %v1894, %v1898
      %v1901 = vshrl.u32 %v1522, 16
      %v1903 = vrot.slane %v1901, 4
      %v1904 = vshll.u32 %v1522, 16
      %v1906 = vrot.slane %v1904, 5
      %v1907 = vor.u32 %v1903, %v1906
      %v1908 = vrot.slane %v1907, 4
      %v1910 = vshll.u32 %v1523, 16
      %v1912 = vrot.slane %v1910, 5
      %v1913 = vsel %vm312, %v1908, %v1912
      %v1914 = vshrl.u32 %v1523, 16
      %v1916 = vrot.slane %v1914, 4
      %v1917 = vor.u32 %v1916, %v1912
      %v1918 = vrot.slane %v1917, 4
      %v1920 = vshll.u32 %v1539, 16
      %v1922 = vrot.slane %v1920, 5
      %v1923 = vsel %vm312, %v1918, %v1922
      %v1924 = vld [vmem:[%s1491] sm:$0xe]
      %v1925 = vld [vmem:[%s1491 + $0xc] sm:$0xe]
      %v1926 = vld [vmem:[%s1491 + $0x18] sm:$0xe]
      %v1927 = vld [vmem:[%s1491 + $0x24] sm:$0xe]
      %v1928 = vld [vmem:[%s1491 + $0x30] sm:$0xe]
      %v1929 = vld [vmem:[%s1491 + $0x3c] sm:$0xe]
      %v1930 = vld [vmem:[%s1491 + $0x48] sm:$0xe]
      %v1931 = vld [vmem:[%s1491 + $0x54] sm:$0xe]
      %v1932 = vld [vmem:[%s1491 + $0x60] sm:$0xe]
      %v1933 = vld [vmem:[%s1491 + $0x6c] sm:$0xe]
      %v1934 = vld [vmem:[%s1491 + $0x78] sm:$0xe]
      %v1935 = vld [vmem:[%s1491 + $0x84] sm:$0xe]
      %v1936 = vld [vmem:[%s1491 + $0x90] sm:$0xe]
      %v1937 = vld [vmem:[%s1491 + $0x9c] sm:$0xe]
      %v1938 = vld [vmem:[%s1491 + $0xa8] sm:$0xe]
      %v1939 = vld [vmem:[%s1491 + $0xb4] sm:$0xe]
      %v1988 = vrot.slane %v1924, 5
      %v1989 = vrot.slane %v1988, 4
      %v1990 = vrot.slane %v1493, 5
      %v1991 = vsel %vm763, %v1989, %v1990
      %v1992 = vrot.slane %v1990, 4
      %v1993 = vrot.slane %v1524, 5
      %v1994 = vsel %vm763, %v1992, %v1993
      %v1995 = vrot.slane %v1925, 5
      %v1996 = vrot.slane %v1995, 4
      %v1997 = vrot.slane %v1495, 5
      %v1998 = vsel %vm763, %v1996, %v1997
      %v1999 = vrot.slane %v1997, 4
      %v2000 = vrot.slane %v1525, 5
      %v2001 = vsel %vm763, %v1999, %v2000
      %v2002 = vrot.slane %v1926, 5
      %v2003 = vrot.slane %v2002, 4
      %v2004 = vrot.slane %v1497, 5
      %v2005 = vsel %vm763, %v2003, %v2004
      %v2006 = vrot.slane %v2004, 4
      %v2007 = vrot.slane %v1526, 5
      %v2008 = vsel %vm763, %v2006, %v2007
      %v2009 = vrot.slane %v1927, 5
      %v2010 = vrot.slane %v2009, 4
      %v2011 = vrot.slane %v1499, 5
      %v2012 = vsel %vm763, %v2010, %v2011
      %v2013 = vrot.slane %v2011, 4
      %v2014 = vrot.slane %v1527, 5
      %v2015 = vsel %vm763, %v2013, %v2014
      %v2016 = vrot.slane %v1928, 5
      %v2017 = vrot.slane %v2016, 4
      %v2018 = vrot.slane %v1501, 5
      %v2019 = vsel %vm763, %v2017, %v2018
      %v2020 = vrot.slane %v2018, 4
      %v2021 = vrot.slane %v1528, 5
      %v2022 = vsel %vm763, %v2020, %v2021
      %v2023 = vrot.slane %v1929, 5
      %v2024 = vrot.slane %v2023, 4
      %v2025 = vrot.slane %v1503, 5
      %v2026 = vsel %vm763, %v2024, %v2025
      %v2027 = vrot.slane %v2025, 4
      %v2028 = vrot.slane %v1529, 5
      %v2029 = vsel %vm763, %v2027, %v2028
      %v2030 = vrot.slane %v1930, 5
      %v2031 = vrot.slane %v2030, 4
      %v2032 = vrot.slane %v1505, 5
      %v2033 = vsel %vm763, %v2031, %v2032
      %v2034 = vrot.slane %v2032, 4
      %v2035 = vrot.slane %v1530, 5
      %v2036 = vsel %vm763, %v2034, %v2035
      %v2037 = vrot.slane %v1931, 5
      %v2038 = vrot.slane %v2037, 4
      %v2039 = vrot.slane %v1507, 5
      %v2040 = vsel %vm763, %v2038, %v2039
      %v2041 = vrot.slane %v2039, 4
      %v2042 = vrot.slane %v1531, 5
      %v2043 = vsel %vm763, %v2041, %v2042
      %v2044 = vrot.slane %v1932, 5
      %v2045 = vrot.slane %v2044, 4
      %v2046 = vrot.slane %v1509, 5
      %v2047 = vsel %vm763, %v2045, %v2046
      %v2048 = vrot.slane %v2046, 4
      %v2049 = vrot.slane %v1532, 5
      %v2050 = vsel %vm763, %v2048, %v2049
      %v2051 = vrot.slane %v1933, 5
      %v2052 = vrot.slane %v2051, 4
      %v2053 = vrot.slane %v1511, 5
      %v2054 = vsel %vm763, %v2052, %v2053
      %v2055 = vrot.slane %v2053, 4
      %v2056 = vrot.slane %v1533, 5
      %v2057 = vsel %vm763, %v2055, %v2056
      %v2058 = vrot.slane %v1934, 5
      %v2059 = vrot.slane %v2058, 4
      %v2060 = vrot.slane %v1513, 5
      %v2061 = vsel %vm763, %v2059, %v2060
      %v2062 = vrot.slane %v2060, 4
      %v2063 = vrot.slane %v1534, 5
      %v2064 = vsel %vm763, %v2062, %v2063
      %v2065 = vrot.slane %v1935, 5
      %v2066 = vrot.slane %v2065, 4
      %v2067 = vrot.slane %v1515, 5
      %v2068 = vsel %vm763, %v2066, %v2067
      %v2069 = vrot.slane %v2067, 4
      %v2070 = vrot.slane %v1535, 5
      %v2071 = vsel %vm763, %v2069, %v2070
      %v2072 = vrot.slane %v1936, 5
      %v2073 = vrot.slane %v2072, 4
      %v2074 = vrot.slane %v1517, 5
      %v2075 = vsel %vm763, %v2073, %v2074
      %v2076 = vrot.slane %v2074, 4
      %v2077 = vrot.slane %v1536, 5
      %v2078 = vsel %vm763, %v2076, %v2077
      %v2079 = vrot.slane %v1937, 5
      %v2080 = vrot.slane %v2079, 4
      %v2081 = vrot.slane %v1519, 5
      %v2082 = vsel %vm763, %v2080, %v2081
      %v2083 = vrot.slane %v2081, 4
      %v2084 = vrot.slane %v1537, 5
      %v2085 = vsel %vm763, %v2083, %v2084
      %v2086 = vrot.slane %v1938, 5
      %v2087 = vrot.slane %v2086, 4
      %v2088 = vrot.slane %v1521, 5
      %v2089 = vsel %vm763, %v2087, %v2088
      %v2090 = vrot.slane %v2088, 4
      %v2091 = vrot.slane %v1538, 5
      %v2092 = vsel %vm763, %v2090, %v2091
      %v2093 = vrot.slane %v1939, 5
      %v2094 = vrot.slane %v2093, 4
      %v2095 = vrot.slane %v1523, 5
      %v2096 = vsel %vm763, %v2094, %v2095
      %v2097 = vrot.slane %v2095, 4
      %v2098 = vrot.slane %v1539, 5
      %v2099 = vsel %vm763, %v2097, %v2098
      %v2116 = vunpack.c.l.b16 %v262
      %v2117 = vunpack.c.l.b16 %v263
      %v2118 = vunpack.c.l.b16 %v264
      %v2119 = vunpack.c.l.b16 %v265
      %v2120 = vunpack.c.l.b16 %v266
      %v2121 = vunpack.c.l.b16 %v267
      %v2122 = vunpack.c.l.b16 %v268
      %v2123 = vunpack.c.l.b16 %v269
      %v2124 = vunpack.c.l.b16 %v270
      %v2125 = vunpack.c.l.b16 %v271
      %v2126 = vunpack.c.l.b16 %v272
      %v2127 = vunpack.c.l.b16 %v273
      %v2128 = vunpack.c.l.b16 %v274
      %v2129 = vunpack.c.l.b16 %v275
      %v2130 = vunpack.c.l.b16 %v276
      %v2131 = vunpack.c.l.b16 %v277
      %v2132 = vunpack.c.l.b16 %v278
      %v2133 = vunpack.c.l.b16 %v279
      %v2134 = vunpack.c.l.b16 %v280
      %v2135 = vunpack.c.l.b16 %v281
      %v2136 = vunpack.c.l.b16 %v282
      %v2137 = vunpack.c.l.b16 %v283
      %v2138 = vunpack.c.l.b16 %v284
      %v2139 = vunpack.c.l.b16 %v285
      %v2140 = vunpack.c.l.b16 %v286
      %v2141 = vunpack.c.l.b16 %v287
      %v2142 = vunpack.c.l.b16 %v288
      %v2143 = vunpack.c.l.b16 %v289
      %v2144 = vunpack.c.l.b16 %v290
      %v2145 = vunpack.c.l.b16 %v291
      %v2146 = vunpack.c.l.b16 %v292
      %v2147 = vunpack.c.l.b16 %v293
      %v2148 = vpack.c.b16 %v2117, %v2116
      %v2149 = vpack.c.b16 %v2119, %v2118
      %v2150 = vpack.c.b16 %v2121, %v2120
      %v2151 = vpack.c.b16 %v2123, %v2122
      %v2152 = vpack.c.b16 %v2125, %v2124
      %v2153 = vpack.c.b16 %v2127, %v2126
      %v2154 = vpack.c.b16 %v2129, %v2128
      %v2155 = vpack.c.b16 %v2131, %v2130
      %v2156 = vpack.c.b16 %v2133, %v2132
      %v2157 = vpack.c.b16 %v2135, %v2134
      %v2158 = vpack.c.b16 %v2137, %v2136
      %v2159 = vpack.c.b16 %v2139, %v2138
      %v2160 = vpack.c.b16 %v2141, %v2140
      %v2161 = vpack.c.b16 %v2143, %v2142
      %v2162 = vpack.c.b16 %v2145, %v2144
      %v2163 = vpack.c.b16 %v2147, %v2146
      %vm2180 = vcmask 31744
      %2181 = vst.msk [vmem:[#allocation2] sm:$0xff] %vm2180, %v2148
      %2182 = vst.msk [vmem:[#allocation2 + $0x8] sm:$0xff] %vm2180, %v2149
      %2183 = vst.msk [vmem:[#allocation2 + $0x10] sm:$0xff] %vm2180, %v2150
      %2184 = vst.msk [vmem:[#allocation2 + $0x18] sm:$0xff] %vm2180, %v2151
      %2185 = vst.msk [vmem:[#allocation2 + $0x20] sm:$0xff] %vm2180, %v2152
      %2186 = vst.msk [vmem:[#allocation2 + $0x28] sm:$0xff] %vm2180, %v2153
      %2187 = vst.msk [vmem:[#allocation2 + $0x30] sm:$0xff] %vm2180, %v2154
      %2188 = vst.msk [vmem:[#allocation2 + $0x38] sm:$0xff] %vm2180, %v2155
      %2189 = vst.msk [vmem:[#allocation2 + $0x40] sm:$0xff] %vm2180, %v2156
      %2190 = vst.msk [vmem:[#allocation2 + $0x48] sm:$0xff] %vm2180, %v2157
      %2191 = vst.msk [vmem:[#allocation2 + $0x50] sm:$0xff] %vm2180, %v2158
      %2192 = vst.msk [vmem:[#allocation2 + $0x58] sm:$0xff] %vm2180, %v2159
      %2193 = vst.msk [vmem:[#allocation2 + $0x60] sm:$0xff] %vm2180, %v2160
      %2194 = vst.msk [vmem:[#allocation2 + $0x68] sm:$0xff] %vm2180, %v2161
      %2195 = vst.msk [vmem:[#allocation2 + $0x70] sm:$0xff] %vm2180, %v2162
      %2196 = vst.msk [vmem:[#allocation2 + $0x78] sm:$0xff] %vm2180, %v2163
      %v2197 = vunpack.c.l.b16 %v326
      %v2198 = vunpack.c.l.b16 %v336
      %v2199 = vunpack.c.l.b16 %v350
      %v2200 = vunpack.c.l.b16 %v360
      %v2201 = vunpack.c.l.b16 %v374
      %v2202 = vunpack.c.l.b16 %v384
      %v2203 = vunpack.c.l.b16 %v398
      %v2204 = vunpack.c.l.b16 %v408
      %v2205 = vunpack.c.l.b16 %v422
      %v2206 = vunpack.c.l.b16 %v432
      %v2207 = vunpack.c.l.b16 %v446
      %v2208 = vunpack.c.l.b16 %v456
      %v2209 = vunpack.c.l.b16 %v470
      %v2210 = vunpack.c.l.b16 %v480
      %v2211 = vunpack.c.l.b16 %v494
      %v2212 = vunpack.c.l.b16 %v504
      %v2213 = vunpack.c.l.b16 %v518
      %v2214 = vunpack.c.l.b16 %v528
      %v2215 = vunpack.c.l.b16 %v542
      %v2216 = vunpack.c.l.b16 %v552
      %v2217 = vunpack.c.l.b16 %v566
      %v2218 = vunpack.c.l.b16 %v576
      %v2219 = vunpack.c.l.b16 %v590
      %v2220 = vunpack.c.l.b16 %v600
      %v2221 = vunpack.c.l.b16 %v614
      %v2222 = vunpack.c.l.b16 %v624
      %v2223 = vunpack.c.l.b16 %v638
      %v2224 = vunpack.c.l.b16 %v648
      %v2225 = vunpack.c.l.b16 %v662
      %v2226 = vunpack.c.l.b16 %v672
      %v2227 = vunpack.c.l.b16 %v686
      %v2228 = vunpack.c.l.b16 %v696
      %v2229 = vpack.c.b16 %v2198, %v2197
      %v2230 = vpack.c.b16 %v2200, %v2199
      %v2231 = vpack.c.b16 %v2202, %v2201
      %v2232 = vpack.c.b16 %v2204, %v2203
      %v2233 = vpack.c.b16 %v2206, %v2205
      %v2234 = vpack.c.b16 %v2208, %v2207
      %v2235 = vpack.c.b16 %v2210, %v2209
      %v2236 = vpack.c.b16 %v2212, %v2211
      %v2237 = vpack.c.b16 %v2214, %v2213
      %v2238 = vpack.c.b16 %v2216, %v2215
      %v2239 = vpack.c.b16 %v2218, %v2217
      %v2240 = vpack.c.b16 %v2220, %v2219
      %v2241 = vpack.c.b16 %v2222, %v2221
      %v2242 = vpack.c.b16 %v2224, %v2223
      %v2243 = vpack.c.b16 %v2226, %v2225
      %v2244 = vpack.c.b16 %v2228, %v2227
      %2245 = vrot.lane.b32.xlu0 %v2229, 4
      %v2246 = vpop.permute.xlu0 %2245
      %2247 = vrot.lane.b32.xlu0 %v2230, 4
      %v2248 = vpop.permute.xlu0 %2247
      %2249 = vrot.lane.b32.xlu0 %v2231, 4
      %v2250 = vpop.permute.xlu0 %2249
      %2251 = vrot.lane.b32.xlu0 %v2232, 4
      %v2252 = vpop.permute.xlu0 %2251
      %2253 = vrot.lane.b32.xlu0 %v2233, 4
      %v2254 = vpop.permute.xlu0 %2253
      %2255 = vrot.lane.b32.xlu0 %v2234, 4
      %v2256 = vpop.permute.xlu0 %2255
      %2257 = vrot.lane.b32.xlu0 %v2235, 4
      %v2258 = vpop.permute.xlu0 %2257
      %2259 = vrot.lane.b32.xlu0 %v2236, 4
      %v2260 = vpop.permute.xlu0 %2259
      %2261 = vrot.lane.b32.xlu0 %v2237, 4
      %v2262 = vpop.permute.xlu0 %2261
      %2263 = vrot.lane.b32.xlu0 %v2238, 4
      %v2264 = vpop.permute.xlu0 %2263
      %2265 = vrot.lane.b32.xlu0 %v2239, 4
      %v2266 = vpop.permute.xlu0 %2265
      %2267 = vrot.lane.b32.xlu0 %v2240, 4
      %v2268 = vpop.permute.xlu0 %2267
      %2269 = vrot.lane.b32.xlu0 %v2241, 4
      %v2270 = vpop.permute.xlu0 %2269
      %2271 = vrot.lane.b32.xlu0 %v2242, 4
      %v2272 = vpop.permute.xlu0 %2271
      %2273 = vrot.lane.b32.xlu0 %v2243, 4
      %v2274 = vpop.permute.xlu0 %2273
      %2275 = vrot.lane.b32.xlu0 %v2244, 4
      %v2276 = vpop.permute.xlu0 %2275
      %vm2293 = vcmask 64544
      %2294 = vst.msk [vmem:[#allocation2] sm:$0xff] %vm2293, %v2246
      %2295 = vst.msk [vmem:[#allocation2 + $0x8] sm:$0xff] %vm2293, %v2248
      %2296 = vst.msk [vmem:[#allocation2 + $0x10] sm:$0xff] %vm2293, %v2250
      %2297 = vst.msk [vmem:[#allocation2 + $0x18] sm:$0xff] %vm2293, %v2252
      %2298 = vst.msk [vmem:[#allocation2 + $0x20] sm:$0xff] %vm2293, %v2254
      %2299 = vst.msk [vmem:[#allocation2 + $0x28] sm:$0xff] %vm2293, %v2256
      %2300 = vst.msk [vmem:[#allocation2 + $0x30] sm:$0xff] %vm2293, %v2258
      %2301 = vst.msk [vmem:[#allocation2 + $0x38] sm:$0xff] %vm2293, %v2260
      %2302 = vst.msk [vmem:[#allocation2 + $0x40] sm:$0xff] %vm2293, %v2262
      %2303 = vst.msk [vmem:[#allocation2 + $0x48] sm:$0xff] %vm2293, %v2264
      %2304 = vst.msk [vmem:[#allocation2 + $0x50] sm:$0xff] %vm2293, %v2266
      %2305 = vst.msk [vmem:[#allocation2 + $0x58] sm:$0xff] %vm2293, %v2268
      %2306 = vst.msk [vmem:[#allocation2 + $0x60] sm:$0xff] %vm2293, %v2270
      %2307 = vst.msk [vmem:[#allocation2 + $0x68] sm:$0xff] %vm2293, %v2272
      %2308 = vst.msk [vmem:[#allocation2 + $0x70] sm:$0xff] %vm2293, %v2274
      %2309 = vst.msk [vmem:[#allocation2 + $0x78] sm:$0xff] %vm2293, %v2276
      %v2310 = vunpack.c.l.b16 %v767
      %v2311 = vunpack.c.l.b16 %v770
      %v2312 = vunpack.c.l.b16 %v774
      %v2313 = vunpack.c.l.b16 %v777
      %v2314 = vunpack.c.l.b16 %v781
      %v2315 = vunpack.c.l.b16 %v784
      %v2316 = vunpack.c.l.b16 %v788
      %v2317 = vunpack.c.l.b16 %v791
      %v2318 = vunpack.c.l.b16 %v795
      %v2319 = vunpack.c.l.b16 %v798
      %v2320 = vunpack.c.l.b16 %v802
      %v2321 = vunpack.c.l.b16 %v805
      %v2322 = vunpack.c.l.b16 %v809
      %v2323 = vunpack.c.l.b16 %v812
      %v2324 = vunpack.c.l.b16 %v816
      %v2325 = vunpack.c.l.b16 %v819
      %v2326 = vunpack.c.l.b16 %v823
      %v2327 = vunpack.c.l.b16 %v826
      %v2328 = vunpack.c.l.b16 %v830
      %v2329 = vunpack.c.l.b16 %v833
      %v2330 = vunpack.c.l.b16 %v837
      %v2331 = vunpack.c.l.b16 %v840
      %v2332 = vunpack.c.l.b16 %v844
      %v2333 = vunpack.c.l.b16 %v847
      %v2334 = vunpack.c.l.b16 %v851
      %v2335 = vunpack.c.l.b16 %v854
      %v2336 = vunpack.c.l.b16 %v858
      %v2337 = vunpack.c.l.b16 %v861
      %v2338 = vunpack.c.l.b16 %v865
      %v2339 = vunpack.c.l.b16 %v868
      %v2340 = vunpack.c.l.b16 %v872
      %v2341 = vunpack.c.l.b16 %v875
      %v2342 = vpack.c.b16 %v2311, %v2310
      %v2343 = vpack.c.b16 %v2313, %v2312
      %v2344 = vpack.c.b16 %v2315, %v2314
      %v2345 = vpack.c.b16 %v2317, %v2316
      %v2346 = vpack.c.b16 %v2319, %v2318
      %v2347 = vpack.c.b16 %v2321, %v2320
      %v2348 = vpack.c.b16 %v2323, %v2322
      %v2349 = vpack.c.b16 %v2325, %v2324
      %v2350 = vpack.c.b16 %v2327, %v2326
      %v2351 = vpack.c.b16 %v2329, %v2328
      %v2352 = vpack.c.b16 %v2331, %v2330
      %v2353 = vpack.c.b16 %v2333, %v2332
      %v2354 = vpack.c.b16 %v2335, %v2334
      %v2355 = vpack.c.b16 %v2337, %v2336
      %v2356 = vpack.c.b16 %v2339, %v2338
      %v2357 = vpack.c.b16 %v2341, %v2340
      %2358 = vrot.lane.b32.xlu0 %v2342, 8
      %v2359 = vpop.permute.xlu0 %2358
      %2360 = vrot.lane.b32.xlu0 %v2343, 8
      %v2361 = vpop.permute.xlu0 %2360
      %2362 = vrot.lane.b32.xlu0 %v2344, 8
      %v2363 = vpop.permute.xlu0 %2362
      %2364 = vrot.lane.b32.xlu0 %v2345, 8
      %v2365 = vpop.permute.xlu0 %2364
      %2366 = vrot.lane.b32.xlu0 %v2346, 8
      %v2367 = vpop.permute.xlu0 %2366
      %2368 = vrot.lane.b32.xlu0 %v2347, 8
      %v2369 = vpop.permute.xlu0 %2368
      %2370 = vrot.lane.b32.xlu0 %v2348, 8
      %v2371 = vpop.permute.xlu0 %2370
      %2372 = vrot.lane.b32.xlu0 %v2349, 8
      %v2373 = vpop.permute.xlu0 %2372
      %2374 = vrot.lane.b32.xlu0 %v2350, 8
      %v2375 = vpop.permute.xlu0 %2374
      %2376 = vrot.lane.b32.xlu0 %v2351, 8
      %v2377 = vpop.permute.xlu0 %2376
      %2378 = vrot.lane.b32.xlu0 %v2352, 8
      %v2379 = vpop.permute.xlu0 %2378
      %2380 = vrot.lane.b32.xlu0 %v2353, 8
      %v2381 = vpop.permute.xlu0 %2380
      %2382 = vrot.lane.b32.xlu0 %v2354, 8
      %v2383 = vpop.permute.xlu0 %2382
      %2384 = vrot.lane.b32.xlu0 %v2355, 8
      %v2385 = vpop.permute.xlu0 %2384
      %2386 = vrot.lane.b32.xlu0 %v2356, 8
      %v2387 = vpop.permute.xlu0 %2386
      %2388 = vrot.lane.b32.xlu0 %v2357, 8
      %v2389 = vpop.permute.xlu0 %2388
      %vm2406 = vcmask 97344
      %2407 = vst.msk [vmem:[#allocation2] sm:$0xff] %vm2406, %v2359
      %2408 = vst.msk [vmem:[#allocation2 + $0x8] sm:$0xff] %vm2406, %v2361
      %2409 = vst.msk [vmem:[#allocation2 + $0x10] sm:$0xff] %vm2406, %v2363
      %2410 = vst.msk [vmem:[#allocation2 + $0x18] sm:$0xff] %vm2406, %v2365
      %2411 = vst.msk [vmem:[#allocation2 + $0x20] sm:$0xff] %vm2406, %v2367
      %2412 = vst.msk [vmem:[#allocation2 + $0x28] sm:$0xff] %vm2406, %v2369
      %2413 = vst.msk [vmem:[#allocation2 + $0x30] sm:$0xff] %vm2406, %v2371
      %2414 = vst.msk [vmem:[#allocation2 + $0x38] sm:$0xff] %vm2406, %v2373
      %2415 = vst.msk [vmem:[#allocation2 + $0x40] sm:$0xff] %vm2406, %v2375
      %2416 = vst.msk [vmem:[#allocation2 + $0x48] sm:$0xff] %vm2406, %v2377
      %2417 = vst.msk [vmem:[#allocation2 + $0x50] sm:$0xff] %vm2406, %v2379
      %2418 = vst.msk [vmem:[#allocation2 + $0x58] sm:$0xff] %vm2406, %v2381
      %2419 = vst.msk [vmem:[#allocation2 + $0x60] sm:$0xff] %vm2406, %v2383
      %2420 = vst.msk [vmem:[#allocation2 + $0x68] sm:$0xff] %vm2406, %v2385
      %2421 = vst.msk [vmem:[#allocation2 + $0x70] sm:$0xff] %vm2406, %v2387
      %2422 = vst.msk [vmem:[#allocation2 + $0x78] sm:$0xff] %vm2406, %v2389
      %v2439 = vunpack.c.l.b16 %v880
      %v2440 = vunpack.c.l.b16 %v881
      %v2441 = vunpack.c.l.b16 %v882
      %v2442 = vunpack.c.l.b16 %v883
      %v2443 = vunpack.c.l.b16 %v884
      %v2444 = vunpack.c.l.b16 %v885
      %v2445 = vunpack.c.l.b16 %v886
      %v2446 = vunpack.c.l.b16 %v887
      %v2447 = vunpack.c.l.b16 %v888
      %v2448 = vunpack.c.l.b16 %v889
      %v2449 = vunpack.c.l.b16 %v890
      %v2450 = vunpack.c.l.b16 %v891
      %v2451 = vunpack.c.l.b16 %v892
      %v2452 = vunpack.c.l.b16 %v893
      %v2453 = vunpack.c.l.b16 %v894
      %v2454 = vunpack.c.l.b16 %v895
      %v2455 = vunpack.c.l.b16 %v896
      %v2456 = vunpack.c.l.b16 %v897
      %v2457 = vunpack.c.l.b16 %v898
      %v2458 = vunpack.c.l.b16 %v899
      %v2459 = vunpack.c.l.b16 %v900
      %v2460 = vunpack.c.l.b16 %v901
      %v2461 = vunpack.c.l.b16 %v902
      %v2462 = vunpack.c.l.b16 %v903
      %v2463 = vunpack.c.l.b16 %v904
      %v2464 = vunpack.c.l.b16 %v905
      %v2465 = vunpack.c.l.b16 %v906
      %v2466 = vunpack.c.l.b16 %v907
      %v2467 = vunpack.c.l.b16 %v908
      %v2468 = vunpack.c.l.b16 %v909
      %v2469 = vunpack.c.l.b16 %v910
      %v2470 = vunpack.c.l.b16 %v911
      %v2471 = vpack.c.b16 %v2440, %v2439
      %v2472 = vpack.c.b16 %v2442, %v2441
      %v2473 = vpack.c.b16 %v2444, %v2443
      %v2474 = vpack.c.b16 %v2446, %v2445
      %v2475 = vpack.c.b16 %v2448, %v2447
      %v2476 = vpack.c.b16 %v2450, %v2449
      %v2477 = vpack.c.b16 %v2452, %v2451
      %v2478 = vpack.c.b16 %v2454, %v2453
      %v2479 = vpack.c.b16 %v2456, %v2455
      %v2480 = vpack.c.b16 %v2458, %v2457
      %v2481 = vpack.c.b16 %v2460, %v2459
      %v2482 = vpack.c.b16 %v2462, %v2461
      %v2483 = vpack.c.b16 %v2464, %v2463
      %v2484 = vpack.c.b16 %v2466, %v2465
      %v2485 = vpack.c.b16 %v2468, %v2467
      %v2486 = vpack.c.b16 %v2470, %v2469
      %2487 = vrot.lane.b32.xlu0 %v2471, 12
      %v2488 = vpop.permute.xlu0 %2487
      %2489 = vrot.lane.b32.xlu0 %v2472, 12
      %v2490 = vpop.permute.xlu0 %2489
      %2491 = vrot.lane.b32.xlu0 %v2473, 12
      %v2492 = vpop.permute.xlu0 %2491
      %2493 = vrot.lane.b32.xlu0 %v2474, 12
      %v2494 = vpop.permute.xlu0 %2493
      %2495 = vrot.lane.b32.xlu0 %v2475, 12
      %v2496 = vpop.permute.xlu0 %2495
      %2497 = vrot.lane.b32.xlu0 %v2476, 12
      %v2498 = vpop.permute.xlu0 %2497
      %2499 = vrot.lane.b32.xlu0 %v2477, 12
      %v2500 = vpop.permute.xlu0 %2499
      %2501 = vrot.lane.b32.xlu0 %v2478, 12
      %v2502 = vpop.permute.xlu0 %2501
      %2503 = vrot.lane.b32.xlu0 %v2479, 12
      %v2504 = vpop.permute.xlu0 %2503
      %2505 = vrot.lane.b32.xlu0 %v2480, 12
      %v2506 = vpop.permute.xlu0 %2505
      %2507 = vrot.lane.b32.xlu0 %v2481, 12
      %v2508 = vpop.permute.xlu0 %2507
      %2509 = vrot.lane.b32.xlu0 %v2482, 12
      %v2510 = vpop.permute.xlu0 %2509
      %2511 = vrot.lane.b32.xlu0 %v2483, 12
      %v2512 = vpop.permute.xlu0 %2511
      %2513 = vrot.lane.b32.xlu0 %v2484, 12
      %v2514 = vpop.permute.xlu0 %2513
      %2515 = vrot.lane.b32.xlu0 %v2485, 12
      %v2516 = vpop.permute.xlu0 %2515
      %2517 = vrot.lane.b32.xlu0 %v2486, 12
      %v2518 = vpop.permute.xlu0 %2517
      %vm2535 = vcmask 130144
      %2536 = vst.msk [vmem:[#allocation2] sm:$0xff] %vm2535, %v2488
      %2537 = vst.msk [vmem:[#allocation2 + $0x8] sm:$0xff] %vm2535, %v2490
      %2538 = vst.msk [vmem:[#allocation2 + $0x10] sm:$0xff] %vm2535, %v2492
      %2539 = vst.msk [vmem:[#allocation2 + $0x18] sm:$0xff] %vm2535, %v2494
      %2540 = vst.msk [vmem:[#allocation2 + $0x20] sm:$0xff] %vm2535, %v2496
      %2541 = vst.msk [vmem:[#allocation2 + $0x28] sm:$0xff] %vm2535, %v2498
      %2542 = vst.msk [vmem:[#allocation2 + $0x30] sm:$0xff] %vm2535, %v2500
      %2543 = vst.msk [vmem:[#allocation2 + $0x38] sm:$0xff] %vm2535, %v2502
      %2544 = vst.msk [vmem:[#allocation2 + $0x40] sm:$0xff] %vm2535, %v2504
      %2545 = vst.msk [vmem:[#allocation2 + $0x48] sm:$0xff] %vm2535, %v2506
      %2546 = vst.msk [vmem:[#allocation2 + $0x50] sm:$0xff] %vm2535, %v2508
      %2547 = vst.msk [vmem:[#allocation2 + $0x58] sm:$0xff] %vm2535, %v2510
      %2548 = vst.msk [vmem:[#allocation2 + $0x60] sm:$0xff] %vm2535, %v2512
      %2549 = vst.msk [vmem:[#allocation2 + $0x68] sm:$0xff] %vm2535, %v2514
      %2550 = vst.msk [vmem:[#allocation2 + $0x70] sm:$0xff] %vm2535, %v2516
      %2551 = vst.msk [vmem:[#allocation2 + $0x78] sm:$0xff] %vm2535, %v2518
      %v2552 = vunpack.c.l.b16 %v941
      %v2553 = vunpack.c.l.b16 %v951
      %v2554 = vunpack.c.l.b16 %v965
      %v2555 = vunpack.c.l.b16 %v975
      %v2556 = vunpack.c.l.b16 %v989
      %v2557 = vunpack.c.l.b16 %v999
      %v2558 = vunpack.c.l.b16 %v1013
      %v2559 = vunpack.c.l.b16 %v1023
      %v2560 = vunpack.c.l.b16 %v1037
      %v2561 = vunpack.c.l.b16 %v1047
      %v2562 = vunpack.c.l.b16 %v1061
      %v2563 = vunpack.c.l.b16 %v1071
      %v2564 = vunpack.c.l.b16 %v1085
      %v2565 = vunpack.c.l.b16 %v1095
      %v2566 = vunpack.c.l.b16 %v1109
      %v2567 = vunpack.c.l.b16 %v1119
      %v2568 = vunpack.c.l.b16 %v1133
      %v2569 = vunpack.c.l.b16 %v1143
      %v2570 = vunpack.c.l.b16 %v1157
      %v2571 = vunpack.c.l.b16 %v1167
      %v2572 = vunpack.c.l.b16 %v1181
      %v2573 = vunpack.c.l.b16 %v1191
      %v2574 = vunpack.c.l.b16 %v1205
      %v2575 = vunpack.c.l.b16 %v1215
      %v2576 = vunpack.c.l.b16 %v1229
      %v2577 = vunpack.c.l.b16 %v1239
      %v2578 = vunpack.c.l.b16 %v1253
      %v2579 = vunpack.c.l.b16 %v1263
      %v2580 = vunpack.c.l.b16 %v1277
      %v2581 = vunpack.c.l.b16 %v1287
      %v2582 = vunpack.c.l.b16 %v1301
      %v2583 = vunpack.c.l.b16 %v1311
      %v2584 = vpack.c.b16 %v2553, %v2552
      %v2585 = vpack.c.b16 %v2555, %v2554
      %v2586 = vpack.c.b16 %v2557, %v2556
      %v2587 = vpack.c.b16 %v2559, %v2558
      %v2588 = vpack.c.b16 %v2561, %v2560
      %v2589 = vpack.c.b16 %v2563, %v2562
      %v2590 = vpack.c.b16 %v2565, %v2564
      %v2591 = vpack.c.b16 %v2567, %v2566
      %v2592 = vpack.c.b16 %v2569, %v2568
      %v2593 = vpack.c.b16 %v2571, %v2570
      %v2594 = vpack.c.b16 %v2573, %v2572
      %v2595 = vpack.c.b16 %v2575, %v2574
      %v2596 = vpack.c.b16 %v2577, %v2576
      %v2597 = vpack.c.b16 %v2579, %v2578
      %v2598 = vpack.c.b16 %v2581, %v2580
      %v2599 = vpack.c.b16 %v2583, %v2582
      %2600 = vrot.lane.b32.xlu0 %v2584, 16
      %v2601 = vpop.permute.xlu0 %2600
      %2602 = vrot.lane.b32.xlu0 %v2585, 16
      %v2603 = vpop.permute.xlu0 %2602
      %2604 = vrot.lane.b32.xlu0 %v2586, 16
      %v2605 = vpop.permute.xlu0 %2604
      %2606 = vrot.lane.b32.xlu0 %v2587, 16
      %v2607 = vpop.permute.xlu0 %2606
      %2608 = vrot.lane.b32.xlu0 %v2588, 16
      %v2609 = vpop.permute.xlu0 %2608
      %2610 = vrot.lane.b32.xlu0 %v2589, 16
      %v2611 = vpop.permute.xlu0 %2610
      %2612 = vrot.lane.b32.xlu0 %v2590, 16
      %v2613 = vpop.permute.xlu0 %2612
      %2614 = vrot.lane.b32.xlu0 %v2591, 16
      %v2615 = vpop.permute.xlu0 %2614
      %2616 = vrot.lane.b32.xlu0 %v2592, 16
      %v2617 = vpop.permute.xlu0 %2616
      %2618 = vrot.lane.b32.xlu0 %v2593, 16
      %v2619 = vpop.permute.xlu0 %2618
      %2620 = vrot.lane.b32.xlu0 %v2594, 16
      %v2621 = vpop.permute.xlu0 %2620
      %2622 = vrot.lane.b32.xlu0 %v2595, 16
      %v2623 = vpop.permute.xlu0 %2622
      %2624 = vrot.lane.b32.xlu0 %v2596, 16
      %v2625 = vpop.permute.xlu0 %2624
      %2626 = vrot.lane.b32.xlu0 %v2597, 16
      %v2627 = vpop.permute.xlu0 %2626
      %2628 = vrot.lane.b32.xlu0 %v2598, 16
      %v2629 = vpop.permute.xlu0 %2628
      %2630 = vrot.lane.b32.xlu0 %v2599, 16
      %v2631 = vpop.permute.xlu0 %2630
      %vm2648 = vcmask 162944
      %2649 = vst.msk [vmem:[#allocation2] sm:$0xff] %vm2648, %v2601
      %2650 = vst.msk [vmem:[#allocation2 + $0x8] sm:$0xff] %vm2648, %v2603
      %2651 = vst.msk [vmem:[#allocation2 + $0x10] sm:$0xff] %vm2648, %v2605
      %2652 = vst.msk [vmem:[#allocation2 + $0x18] sm:$0xff] %vm2648, %v2607
      %2653 = vst.msk [vmem:[#allocation2 + $0x20] sm:$0xff] %vm2648, %v2609
      %2654 = vst.msk [vmem:[#allocation2 + $0x28] sm:$0xff] %vm2648, %v2611
      %2655 = vst.msk [vmem:[#allocation2 + $0x30] sm:$0xff] %vm2648, %v2613
      %2656 = vst.msk [vmem:[#allocation2 + $0x38] sm:$0xff] %vm2648, %v2615
      %2657 = vst.msk [vmem:[#allocation2 + $0x40] sm:$0xff] %vm2648, %v2617
      %2658 = vst.msk [vmem:[#allocation2 + $0x48] sm:$0xff] %vm2648, %v2619
      %2659 = vst.msk [vmem:[#allocation2 + $0x50] sm:$0xff] %vm2648, %v2621
      %2660 = vst.msk [vmem:[#allocation2 + $0x58] sm:$0xff] %vm2648, %v2623
      %2661 = vst.msk [vmem:[#allocation2 + $0x60] sm:$0xff] %vm2648, %v2625
      %2662 = vst.msk [vmem:[#allocation2 + $0x68] sm:$0xff] %vm2648, %v2627
      %2663 = vst.msk [vmem:[#allocation2 + $0x70] sm:$0xff] %vm2648, %v2629
      %2664 = vst.msk [vmem:[#allocation2 + $0x78] sm:$0xff] %vm2648, %v2631
      %v2665 = vunpack.c.l.b16 %v1379
      %v2666 = vunpack.c.l.b16 %v1382
      %v2667 = vunpack.c.l.b16 %v1386
      %v2668 = vunpack.c.l.b16 %v1389
      %v2669 = vunpack.c.l.b16 %v1393
      %v2670 = vunpack.c.l.b16 %v1396
      %v2671 = vunpack.c.l.b16 %v1400
      %v2672 = vunpack.c.l.b16 %v1403
      %v2673 = vunpack.c.l.b16 %v1407
      %v2674 = vunpack.c.l.b16 %v1410
      %v2675 = vunpack.c.l.b16 %v1414
      %v2676 = vunpack.c.l.b16 %v1417
      %v2677 = vunpack.c.l.b16 %v1421
      %v2678 = vunpack.c.l.b16 %v1424
      %v2679 = vunpack.c.l.b16 %v1428
      %v2680 = vunpack.c.l.b16 %v1431
      %v2681 = vunpack.c.l.b16 %v1435
      %v2682 = vunpack.c.l.b16 %v1438
      %v2683 = vunpack.c.l.b16 %v1442
      %v2684 = vunpack.c.l.b16 %v1445
      %v2685 = vunpack.c.l.b16 %v1449
      %v2686 = vunpack.c.l.b16 %v1452
      %v2687 = vunpack.c.l.b16 %v1456
      %v2688 = vunpack.c.l.b16 %v1459
      %v2689 = vunpack.c.l.b16 %v1463
      %v2690 = vunpack.c.l.b16 %v1466
      %v2691 = vunpack.c.l.b16 %v1470
      %v2692 = vunpack.c.l.b16 %v1473
      %v2693 = vunpack.c.l.b16 %v1477
      %v2694 = vunpack.c.l.b16 %v1480
      %v2695 = vunpack.c.l.b16 %v1484
      %v2696 = vunpack.c.l.b16 %v1487
      %v2697 = vpack.c.b16 %v2666, %v2665
      %v2698 = vpack.c.b16 %v2668, %v2667
      %v2699 = vpack.c.b16 %v2670, %v2669
      %v2700 = vpack.c.b16 %v2672, %v2671
      %v2701 = vpack.c.b16 %v2674, %v2673
      %v2702 = vpack.c.b16 %v2676, %v2675
      %v2703 = vpack.c.b16 %v2678, %v2677
      %v2704 = vpack.c.b16 %v2680, %v2679
      %v2705 = vpack.c.b16 %v2682, %v2681
      %v2706 = vpack.c.b16 %v2684, %v2683
      %v2707 = vpack.c.b16 %v2686, %v2685
      %v2708 = vpack.c.b16 %v2688, %v2687
      %v2709 = vpack.c.b16 %v2690, %v2689
      %v2710 = vpack.c.b16 %v2692, %v2691
      %v2711 = vpack.c.b16 %v2694, %v2693
      %v2712 = vpack.c.b16 %v2696, %v2695
      %2713 = vrot.lane.b32.xlu0 %v2697, 20
      %v2714 = vpop.permute.xlu0 %2713
      %2715 = vrot.lane.b32.xlu0 %v2698, 20
      %v2716 = vpop.permute.xlu0 %2715
      %2717 = vrot.lane.b32.xlu0 %v2699, 20
      %v2718 = vpop.permute.xlu0 %2717
      %2719 = vrot.lane.b32.xlu0 %v2700, 20
      %v2720 = vpop.permute.xlu0 %2719
      %2721 = vrot.lane.b32.xlu0 %v2701, 20
      %v2722 = vpop.permute.xlu0 %2721
      %2723 = vrot.lane.b32.xlu0 %v2702, 20
      %v2724 = vpop.permute.xlu0 %2723
      %2725 = vrot.lane.b32.xlu0 %v2703, 20
      %v2726 = vpop.permute.xlu0 %2725
      %2727 = vrot.lane.b32.xlu0 %v2704, 20
      %v2728 = vpop.permute.xlu0 %2727
      %2729 = vrot.lane.b32.xlu0 %v2705, 20
      %v2730 = vpop.permute.xlu0 %2729
      %2731 = vrot.lane.b32.xlu0 %v2706, 20
      %v2732 = vpop.permute.xlu0 %2731
      %2733 = vrot.lane.b32.xlu0 %v2707, 20
      %v2734 = vpop.permute.xlu0 %2733
      %2735 = vrot.lane.b32.xlu0 %v2708, 20
      %v2736 = vpop.permute.xlu0 %2735
      %2737 = vrot.lane.b32.xlu0 %v2709, 20
      %v2738 = vpop.permute.xlu0 %2737
      %2739 = vrot.lane.b32.xlu0 %v2710, 20
      %v2740 = vpop.permute.xlu0 %2739
      %2741 = vrot.lane.b32.xlu0 %v2711, 20
      %v2742 = vpop.permute.xlu0 %2741
      %2743 = vrot.lane.b32.xlu0 %v2712, 20
      %v2744 = vpop.permute.xlu0 %2743
      %vm2761 = vcmask 195744
      %2762 = vst.msk [vmem:[#allocation2] sm:$0xff] %vm2761, %v2714
      %2763 = vst.msk [vmem:[#allocation2 + $0x8] sm:$0xff] %vm2761, %v2716
      %2764 = vst.msk [vmem:[#allocation2 + $0x10] sm:$0xff] %vm2761, %v2718
      %2765 = vst.msk [vmem:[#allocation2 + $0x18] sm:$0xff] %vm2761, %v2720
      %2766 = vst.msk [vmem:[#allocation2 + $0x20] sm:$0xff] %vm2761, %v2722
      %2767 = vst.msk [vmem:[#allocation2 + $0x28] sm:$0xff] %vm2761, %v2724
      %2768 = vst.msk [vmem:[#allocation2 + $0x30] sm:$0xff] %vm2761, %v2726
      %2769 = vst.msk [vmem:[#allocation2 + $0x38] sm:$0xff] %vm2761, %v2728
      %2770 = vst.msk [vmem:[#allocation2 + $0x40] sm:$0xff] %vm2761, %v2730
      %2771 = vst.msk [vmem:[#allocation2 + $0x48] sm:$0xff] %vm2761, %v2732
      %2772 = vst.msk [vmem:[#allocation2 + $0x50] sm:$0xff] %vm2761, %v2734
      %2773 = vst.msk [vmem:[#allocation2 + $0x58] sm:$0xff] %vm2761, %v2736
      %2774 = vst.msk [vmem:[#allocation2 + $0x60] sm:$0xff] %vm2761, %v2738
      %2775 = vst.msk [vmem:[#allocation2 + $0x68] sm:$0xff] %vm2761, %v2740
      %2776 = vst.msk [vmem:[#allocation2 + $0x70] sm:$0xff] %vm2761, %v2742
      %2777 = vst.msk [vmem:[#allocation2 + $0x78] sm:$0xff] %vm2761, %v2744
      %v2794 = vunpack.c.l.b16 %v1492
      %v2795 = vunpack.c.l.b16 %v1493
      %v2796 = vunpack.c.l.b16 %v1494
      %v2797 = vunpack.c.l.b16 %v1495
      %v2798 = vunpack.c.l.b16 %v1496
      %v2799 = vunpack.c.l.b16 %v1497
      %v2800 = vunpack.c.l.b16 %v1498
      %v2801 = vunpack.c.l.b16 %v1499
      %v2802 = vunpack.c.l.b16 %v1500
      %v2803 = vunpack.c.l.b16 %v1501
      %v2804 = vunpack.c.l.b16 %v1502
      %v2805 = vunpack.c.l.b16 %v1503
      %v2806 = vunpack.c.l.b16 %v1504
      %v2807 = vunpack.c.l.b16 %v1505
      %v2808 = vunpack.c.l.b16 %v1506
      %v2809 = vunpack.c.l.b16 %v1507
      %v2810 = vunpack.c.l.b16 %v1508
      %v2811 = vunpack.c.l.b16 %v1509
      %v2812 = vunpack.c.l.b16 %v1510
      %v2813 = vunpack.c.l.b16 %v1511
      %v2814 = vunpack.c.l.b16 %v1512
      %v2815 = vunpack.c.l.b16 %v1513
      %v2816 = vunpack.c.l.b16 %v1514
      %v2817 = vunpack.c.l.b16 %v1515
      %v2818 = vunpack.c.l.b16 %v1516
      %v2819 = vunpack.c.l.b16 %v1517
      %v2820 = vunpack.c.l.b16 %v1518
      %v2821 = vunpack.c.l.b16 %v1519
      %v2822 = vunpack.c.l.b16 %v1520
      %v2823 = vunpack.c.l.b16 %v1521
      %v2824 = vunpack.c.l.b16 %v1522
      %v2825 = vunpack.c.l.b16 %v1523
      %v2826 = vpack.c.b16 %v2795, %v2794
      %v2827 = vpack.c.b16 %v2797, %v2796
      %v2828 = vpack.c.b16 %v2799, %v2798
      %v2829 = vpack.c.b16 %v2801, %v2800
      %v2830 = vpack.c.b16 %v2803, %v2802
      %v2831 = vpack.c.b16 %v2805, %v2804
      %v2832 = vpack.c.b16 %v2807, %v2806
      %v2833 = vpack.c.b16 %v2809, %v2808
      %v2834 = vpack.c.b16 %v2811, %v2810
      %v2835 = vpack.c.b16 %v2813, %v2812
      %v2836 = vpack.c.b16 %v2815, %v2814
      %v2837 = vpack.c.b16 %v2817, %v2816
      %v2838 = vpack.c.b16 %v2819, %v2818
      %v2839 = vpack.c.b16 %v2821, %v2820
      %v2840 = vpack.c.b16 %v2823, %v2822
      %v2841 = vpack.c.b16 %v2825, %v2824
      %2842 = vrot.lane.b32.xlu0 %v2826, 24
      %v2843 = vpop.permute.xlu0 %2842
      %2844 = vrot.lane.b32.xlu0 %v2827, 24
      %v2845 = vpop.permute.xlu0 %2844
      %2846 = vrot.lane.b32.xlu0 %v2828, 24
      %v2847 = vpop.permute.xlu0 %2846
      %2848 = vrot.lane.b32.xlu0 %v2829, 24
      %v2849 = vpop.permute.xlu0 %2848
      %2850 = vrot.lane.b32.xlu0 %v2830, 24
      %v2851 = vpop.permute.xlu0 %2850
      %2852 = vrot.lane.b32.xlu0 %v2831, 24
      %v2853 = vpop.permute.xlu0 %2852
      %2854 = vrot.lane.b32.xlu0 %v2832, 24
      %v2855 = vpop.permute.xlu0 %2854
      %2856 = vrot.lane.b32.xlu0 %v2833, 24
      %v2857 = vpop.permute.xlu0 %2856
      %2858 = vrot.lane.b32.xlu0 %v2834, 24
      %v2859 = vpop.permute.xlu0 %2858
      %2860 = vrot.lane.b32.xlu0 %v2835, 24
      %v2861 = vpop.permute.xlu0 %2860
      %2862 = vrot.lane.b32.xlu0 %v2836, 24
      %v2863 = vpop.permute.xlu0 %2862
      %2864 = vrot.lane.b32.xlu0 %v2837, 24
      %v2865 = vpop.permute.xlu0 %2864
      %2866 = vrot.lane.b32.xlu0 %v2838, 24
      %v2867 = vpop.permute.xlu0 %2866
      %2868 = vrot.lane.b32.xlu0 %v2839, 24
      %v2869 = vpop.permute.xlu0 %2868
      %2870 = vrot.lane.b32.xlu0 %v2840, 24
      %v2871 = vpop.permute.xlu0 %2870
      %2872 = vrot.lane.b32.xlu0 %v2841, 24
      %v2873 = vpop.permute.xlu0 %2872
      %vm2890 = vcmask 228544
      %2891 = vst.msk [vmem:[#allocation2] sm:$0xff] %vm2890, %v2843
      %2892 = vst.msk [vmem:[#allocation2 + $0x8] sm:$0xff] %vm2890, %v2845
      %2893 = vst.msk [vmem:[#allocation2 + $0x10] sm:$0xff] %vm2890, %v2847
      %2894 = vst.msk [vmem:[#allocation2 + $0x18] sm:$0xff] %vm2890, %v2849
      %2895 = vst.msk [vmem:[#allocation2 + $0x20] sm:$0xff] %vm2890, %v2851
      %2896 = vst.msk [vmem:[#allocation2 + $0x28] sm:$0xff] %vm2890, %v2853
      %2897 = vst.msk [vmem:[#allocation2 + $0x30] sm:$0xff] %vm2890, %v2855
      %2898 = vst.msk [vmem:[#allocation2 + $0x38] sm:$0xff] %vm2890, %v2857
      %2899 = vst.msk [vmem:[#allocation2 + $0x40] sm:$0xff] %vm2890, %v2859
      %2900 = vst.msk [vmem:[#allocation2 + $0x48] sm:$0xff] %vm2890, %v2861
      %2901 = vst.msk [vmem:[#allocation2 + $0x50] sm:$0xff] %vm2890, %v2863
      %2902 = vst.msk [vmem:[#allocation2 + $0x58] sm:$0xff] %vm2890, %v2865
      %2903 = vst.msk [vmem:[#allocation2 + $0x60] sm:$0xff] %vm2890, %v2867
      %2904 = vst.msk [vmem:[#allocation2 + $0x68] sm:$0xff] %vm2890, %v2869
      %2905 = vst.msk [vmem:[#allocation2 + $0x70] sm:$0xff] %vm2890, %v2871
      %2906 = vst.msk [vmem:[#allocation2 + $0x78] sm:$0xff] %vm2890, %v2873
      %v2907 = vunpack.c.l.b16 %v1553
      %v2908 = vunpack.c.l.b16 %v1563
      %v2909 = vunpack.c.l.b16 %v1577
      %v2910 = vunpack.c.l.b16 %v1587
      %v2911 = vunpack.c.l.b16 %v1601
      %v2912 = vunpack.c.l.b16 %v1611
      %v2913 = vunpack.c.l.b16 %v1625
      %v2914 = vunpack.c.l.b16 %v1635
      %v2915 = vunpack.c.l.b16 %v1649
      %v2916 = vunpack.c.l.b16 %v1659
      %v2917 = vunpack.c.l.b16 %v1673
      %v2918 = vunpack.c.l.b16 %v1683
      %v2919 = vunpack.c.l.b16 %v1697
      %v2920 = vunpack.c.l.b16 %v1707
      %v2921 = vunpack.c.l.b16 %v1721
      %v2922 = vunpack.c.l.b16 %v1731
      %v2923 = vunpack.c.l.b16 %v1745
      %v2924 = vunpack.c.l.b16 %v1755
      %v2925 = vunpack.c.l.b16 %v1769
      %v2926 = vunpack.c.l.b16 %v1779
      %v2927 = vunpack.c.l.b16 %v1793
      %v2928 = vunpack.c.l.b16 %v1803
      %v2929 = vunpack.c.l.b16 %v1817
      %v2930 = vunpack.c.l.b16 %v1827
      %v2931 = vunpack.c.l.b16 %v1841
      %v2932 = vunpack.c.l.b16 %v1851
      %v2933 = vunpack.c.l.b16 %v1865
      %v2934 = vunpack.c.l.b16 %v1875
      %v2935 = vunpack.c.l.b16 %v1889
      %v2936 = vunpack.c.l.b16 %v1899
      %v2937 = vunpack.c.l.b16 %v1913
      %v2938 = vunpack.c.l.b16 %v1923
      %v2939 = vpack.c.b16 %v2908, %v2907
      %v2940 = vpack.c.b16 %v2910, %v2909
      %v2941 = vpack.c.b16 %v2912, %v2911
      %v2942 = vpack.c.b16 %v2914, %v2913
      %v2943 = vpack.c.b16 %v2916, %v2915
      %v2944 = vpack.c.b16 %v2918, %v2917
      %v2945 = vpack.c.b16 %v2920, %v2919
      %v2946 = vpack.c.b16 %v2922, %v2921
      %v2947 = vpack.c.b16 %v2924, %v2923
      %v2948 = vpack.c.b16 %v2926, %v2925
      %v2949 = vpack.c.b16 %v2928, %v2927
      %v2950 = vpack.c.b16 %v2930, %v2929
      %v2951 = vpack.c.b16 %v2932, %v2931
      %v2952 = vpack.c.b16 %v2934, %v2933
      %v2953 = vpack.c.b16 %v2936, %v2935
      %v2954 = vpack.c.b16 %v2938, %v2937
      %2955 = vrot.lane.b32.xlu0 %v2939, 28
      %v2956 = vpop.permute.xlu0 %2955
      %2957 = vrot.lane.b32.xlu0 %v2940, 28
      %v2958 = vpop.permute.xlu0 %2957
      %2959 = vrot.lane.b32.xlu0 %v2941, 28
      %v2960 = vpop.permute.xlu0 %2959
      %2961 = vrot.lane.b32.xlu0 %v2942, 28
      %v2962 = vpop.permute.xlu0 %2961
      %2963 = vrot.lane.b32.xlu0 %v2943, 28
      %v2964 = vpop.permute.xlu0 %2963
      %2965 = vrot.lane.b32.xlu0 %v2944, 28
      %v2966 = vpop.permute.xlu0 %2965
      %2967 = vrot.lane.b32.xlu0 %v2945, 28
      %v2968 = vpop.permute.xlu0 %2967
      %2969 = vrot.lane.b32.xlu0 %v2946, 28
      %v2970 = vpop.permute.xlu0 %2969
      %2971 = vrot.lane.b32.xlu0 %v2947, 28
      %v2972 = vpop.permute.xlu0 %2971
      %2973 = vrot.lane.b32.xlu0 %v2948, 28
      %v2974 = vpop.permute.xlu0 %2973
      %2975 = vrot.lane.b32.xlu0 %v2949, 28
      %v2976 = vpop.permute.xlu0 %2975
      %2977 = vrot.lane.b32.xlu0 %v2950, 28
      %v2978 = vpop.permute.xlu0 %2977
      %2979 = vrot.lane.b32.xlu0 %v2951, 28
      %v2980 = vpop.permute.xlu0 %2979
      %2981 = vrot.lane.b32.xlu0 %v2952, 28
      %v2982 = vpop.permute.xlu0 %2981
      %2983 = vrot.lane.b32.xlu0 %v2953, 28
      %v2984 = vpop.permute.xlu0 %2983
      %2985 = vrot.lane.b32.xlu0 %v2954, 28
      %v2986 = vpop.permute.xlu0 %2985
      %vm3003 = vcmask 261344
      %3004 = vst.msk [vmem:[#allocation2] sm:$0xff] %vm3003, %v2956
      %3005 = vst.msk [vmem:[#allocation2 + $0x8] sm:$0xff] %vm3003, %v2958
      %3006 = vst.msk [vmem:[#allocation2 + $0x10] sm:$0xff] %vm3003, %v2960
      %3007 = vst.msk [vmem:[#allocation2 + $0x18] sm:$0xff] %vm3003, %v2962
      %3008 = vst.msk [vmem:[#allocation2 + $0x20] sm:$0xff] %vm3003, %v2964
      %3009 = vst.msk [vmem:[#allocation2 + $0x28] sm:$0xff] %vm3003, %v2966
      %3010 = vst.msk [vmem:[#allocation2 + $0x30] sm:$0xff] %vm3003, %v2968
      %3011 = vst.msk [vmem:[#allocation2 + $0x38] sm:$0xff] %vm3003, %v2970
      %3012 = vst.msk [vmem:[#allocation2 + $0x40] sm:$0xff] %vm3003, %v2972
      %3013 = vst.msk [vmem:[#allocation2 + $0x48] sm:$0xff] %vm3003, %v2974
      %3014 = vst.msk [vmem:[#allocation2 + $0x50] sm:$0xff] %vm3003, %v2976
      %3015 = vst.msk [vmem:[#allocation2 + $0x58] sm:$0xff] %vm3003, %v2978
      %3016 = vst.msk [vmem:[#allocation2 + $0x60] sm:$0xff] %vm3003, %v2980
      %3017 = vst.msk [vmem:[#allocation2 + $0x68] sm:$0xff] %vm3003, %v2982
      %3018 = vst.msk [vmem:[#allocation2 + $0x70] sm:$0xff] %vm3003, %v2984
      %3019 = vst.msk [vmem:[#allocation2 + $0x78] sm:$0xff] %vm3003, %v2986
      %v3020 = vunpack.c.l.b16 %v1991
      %v3021 = vunpack.c.l.b16 %v1994
      %v3022 = vunpack.c.l.b16 %v1998
      %v3023 = vunpack.c.l.b16 %v2001
      %v3024 = vunpack.c.l.b16 %v2005
      %v3025 = vunpack.c.l.b16 %v2008
      %v3026 = vunpack.c.l.b16 %v2012
      %v3027 = vunpack.c.l.b16 %v2015
      %v3028 = vunpack.c.l.b16 %v2019
      %v3029 = vunpack.c.l.b16 %v2022
      %v3030 = vunpack.c.l.b16 %v2026
      %v3031 = vunpack.c.l.b16 %v2029
      %v3032 = vunpack.c.l.b16 %v2033
      %v3033 = vunpack.c.l.b16 %v2036
      %v3034 = vunpack.c.l.b16 %v2040
      %v3035 = vunpack.c.l.b16 %v2043
      %v3036 = vunpack.c.l.b16 %v2047
      %v3037 = vunpack.c.l.b16 %v2050
      %v3038 = vunpack.c.l.b16 %v2054
      %v3039 = vunpack.c.l.b16 %v2057
      %v3040 = vunpack.c.l.b16 %v2061
      %v3041 = vunpack.c.l.b16 %v2064
      %v3042 = vunpack.c.l.b16 %v2068
      %v3043 = vunpack.c.l.b16 %v2071
      %v3044 = vunpack.c.l.b16 %v2075
      %v3045 = vunpack.c.l.b16 %v2078
      %v3046 = vunpack.c.l.b16 %v2082
      %v3047 = vunpack.c.l.b16 %v2085
      %v3048 = vunpack.c.l.b16 %v2089
      %v3049 = vunpack.c.l.b16 %v2092
      %v3050 = vunpack.c.l.b16 %v2096
      %v3051 = vunpack.c.l.b16 %v2099
      %v3052 = vpack.c.b16 %v3021, %v3020
      %v3053 = vpack.c.b16 %v3023, %v3022
      %v3054 = vpack.c.b16 %v3025, %v3024
      %v3055 = vpack.c.b16 %v3027, %v3026
      %v3056 = vpack.c.b16 %v3029, %v3028
      %v3057 = vpack.c.b16 %v3031, %v3030
      %v3058 = vpack.c.b16 %v3033, %v3032
      %v3059 = vpack.c.b16 %v3035, %v3034
      %v3060 = vpack.c.b16 %v3037, %v3036
      %v3061 = vpack.c.b16 %v3039, %v3038
      %v3062 = vpack.c.b16 %v3041, %v3040
      %v3063 = vpack.c.b16 %v3043, %v3042
      %v3064 = vpack.c.b16 %v3045, %v3044
      %v3065 = vpack.c.b16 %v3047, %v3046
      %v3066 = vpack.c.b16 %v3049, %v3048
      %v3067 = vpack.c.b16 %v3051, %v3050
      %3068 = vrot.lane.b32.xlu0 %v3052, 32
      %v3069 = vpop.permute.xlu0 %3068
      %3070 = vrot.lane.b32.xlu0 %v3053, 32
      %v3071 = vpop.permute.xlu0 %3070
      %3072 = vrot.lane.b32.xlu0 %v3054, 32
      %v3073 = vpop.permute.xlu0 %3072
      %3074 = vrot.lane.b32.xlu0 %v3055, 32
      %v3075 = vpop.permute.xlu0 %3074
      %3076 = vrot.lane.b32.xlu0 %v3056, 32
      %v3077 = vpop.permute.xlu0 %3076
      %3078 = vrot.lane.b32.xlu0 %v3057, 32
      %v3079 = vpop.permute.xlu0 %3078
      %3080 = vrot.lane.b32.xlu0 %v3058, 32
      %v3081 = vpop.permute.xlu0 %3080
      %3082 = vrot.lane.b32.xlu0 %v3059, 32
      %v3083 = vpop.permute.xlu0 %3082
      %3084 = vrot.lane.b32.xlu0 %v3060, 32
      %v3085 = vpop.permute.xlu0 %3084
      %3086 = vrot.lane.b32.xlu0 %v3061, 32
      %v3087 = vpop.permute.xlu0 %3086
      %3088 = vrot.lane.b32.xlu0 %v3062, 32
      %v3089 = vpop.permute.xlu0 %3088
      %3090 = vrot.lane.b32.xlu0 %v3063, 32
      %v3091 = vpop.permute.xlu0 %3090
      %3092 = vrot.lane.b32.xlu0 %v3064, 32
      %v3093 = vpop.permute.xlu0 %3092
      %3094 = vrot.lane.b32.xlu0 %v3065, 32
      %v3095 = vpop.permute.xlu0 %3094
      %3096 = vrot.lane.b32.xlu0 %v3066, 32
      %v3097 = vpop.permute.xlu0 %3096
      %3098 = vrot.lane.b32.xlu0 %v3067, 32
      %v3099 = vpop.permute.xlu0 %3098
      %vm3116 = vcmask 294144
      %3117 = vst.msk [vmem:[#allocation2] sm:$0xff] %vm3116, %v3069
      %3118 = vst.msk [vmem:[#allocation2 + $0x8] sm:$0xff] %vm3116, %v3071
      %3119 = vst.msk [vmem:[#allocation2 + $0x10] sm:$0xff] %vm3116, %v3073
      %3120 = vst.msk [vmem:[#allocation2 + $0x18] sm:$0xff] %vm3116, %v3075
      %3121 = vst.msk [vmem:[#allocation2 + $0x20] sm:$0xff] %vm3116, %v3077
      %3122 = vst.msk [vmem:[#allocation2 + $0x28] sm:$0xff] %vm3116, %v3079
      %3123 = vst.msk [vmem:[#allocation2 + $0x30] sm:$0xff] %vm3116, %v3081
      %3124 = vst.msk [vmem:[#allocation2 + $0x38] sm:$0xff] %vm3116, %v3083
      %3125 = vst.msk [vmem:[#allocation2 + $0x40] sm:$0xff] %vm3116, %v3085
      %3126 = vst.msk [vmem:[#allocation2 + $0x48] sm:$0xff] %vm3116, %v3087
      %3127 = vst.msk [vmem:[#allocation2 + $0x50] sm:$0xff] %vm3116, %v3089
      %3128 = vst.msk [vmem:[#allocation2 + $0x58] sm:$0xff] %vm3116, %v3091
      %3129 = vst.msk [vmem:[#allocation2 + $0x60] sm:$0xff] %vm3116, %v3093
      %3130 = vst.msk [vmem:[#allocation2 + $0x68] sm:$0xff] %vm3116, %v3095
      %3131 = vst.msk [vmem:[#allocation2 + $0x70] sm:$0xff] %vm3116, %v3097
      %3132 = vst.msk [vmem:[#allocation2 + $0x78] sm:$0xff] %vm3116, %v3099
      %v3133 = vld [vmem:[#allocation2] sm:$0xff]
      %v3134 = vld [vmem:[#allocation2 + $0x8] sm:$0xff]
      %v3135 = vld [vmem:[#allocation2 + $0x10] sm:$0xff]
      %v3136 = vld [vmem:[#allocation2 + $0x18] sm:$0xff]
      %v3137 = vld [vmem:[#allocation2 + $0x20] sm:$0xff]
      %v3138 = vld [vmem:[#allocation2 + $0x28] sm:$0xff]
      %v3139 = vld [vmem:[#allocation2 + $0x30] sm:$0xff]
      %v3140 = vld [vmem:[#allocation2 + $0x38] sm:$0xff]
      %v3141 = vld [vmem:[#allocation2 + $0x40] sm:$0xff]
      %v3142 = vld [vmem:[#allocation2 + $0x48] sm:$0xff]
      %v3143 = vld [vmem:[#allocation2 + $0x50] sm:$0xff]
      %v3144 = vld [vmem:[#allocation2 + $0x58] sm:$0xff]
      %v3145 = vld [vmem:[#allocation2 + $0x60] sm:$0xff]
      %v3146 = vld [vmem:[#allocation2 + $0x68] sm:$0xff]
      %v3147 = vld [vmem:[#allocation2 + $0x70] sm:$0xff]
      %v3148 = vld [vmem:[#allocation2 + $0x78] sm:$0xff]
      %v3149 = vld [vmem:[%s1] sm:$0xf]
      %v3150 = vld [vmem:[%s1 + $0x4] sm:$0xf]
      %v3151 = vld [vmem:[%s1 + $0x8] sm:$0xf]
      %v3152 = vld [vmem:[%s1 + $0xc] sm:$0xf]
      %v3153 = vld [vmem:[%s1 + $0x10] sm:$0x3]
      %v3154 = vld [vmem:[%s2] sm:$0x1]
      %v3156 = vlaneseq
      %v3157 = vshrl.u32 %v3156, 7
      %v3158 = vsub.s32 0, %v3157
      %v3159 = vrot.slane %v3154, %v3158
      %v3166 = vunpack.c.l.b16 %v3149
      %v3167 = vunpack.c.l.b16 %v3150
      %v3168 = vunpack.c.l.b16 %v3151
      %v3169 = vunpack.c.l.b16 %v3152
      %v3170 = vunpack.c.l.b16 %v3153
      %v3171 = vpack.c.b16 %v3167, %v3166
      %v3172 = vpack.c.b16 %v3169, %v3168
      %v3173 = vpack.c.b16 %v3170, %v3170
      %vm3176 = vcmask 293888
      %v3178 = vsel %vm3176, %v3133, 0
      %v3181 = vsel %vm3176, %v3134, 0
      %v3184 = vsel %vm3176, %v3135, 0
      %v3187 = vsel %vm3176, %v3136, 0
      %v3190 = vsel %vm3176, %v3137, 0
      %v3193 = vsel %vm3176, %v3138, 0
      %v3196 = vsel %vm3176, %v3139, 0
      %v3199 = vsel %vm3176, %v3140, 0
      %v3202 = vsel %vm3176, %v3141, 0
      %v3205 = vsel %vm3176, %v3142, 0
      %v3208 = vsel %vm3176, %v3143, 0
      %v3211 = vsel %vm3176, %v3144, 0
      %v3214 = vsel %vm3176, %v3145, 0
      %v3217 = vsel %vm3176, %v3146, 0
      %v3220 = vsel %vm3176, %v3147, 0
      %v3223 = vsel %vm3176, %v3148, 0
      %vm3225 = vcmask 1041408
      %v3227 = vsel %vm3225, %v3173, 0
      %3229 = vmatprep.subr.bf16.mxu0 0
      %3230 = vmatpush1.bf16.msra.mxu0 %v3171
      %3231 = vmatprep.subr.bf16.mxu0 0
      %3232 = vmatpush1.bf16.msra.mxu0 %v3172
      %3233 = vmatprep.subr.bf16.mxu0 0
      %3234 = vmatpush1.bf16.msra.mxu0 %v3227
      %3235 = vmatprep.subr.bf16.mxu0 0
      %3236 = vmatpush1.bf16.msra.mxu0 0
      %3237 = vmatprep.subr.bf16.mxu0 0
      %3238 = vmatpush1.bf16.msra.mxu0 0
      %3239 = vmatprep.subr.bf16.mxu0 0
      %3240 = vmatpush1.bf16.msra.mxu0 0
      %3241 = vmatprep.subr.bf16.mxu0 0
      %3242 = vmatpush1.bf16.msra.mxu0 0
      %3243 = vmatprep.subr.bf16.mxu0 0
      %3244 = vmatpush1.bf16.msra.mxu0 0
      %3245 = vmatprep.subr.bf16.mxu0 0
      %3246 = vmatpush1.bf16.msra.mxu0 0
      %3247 = vmatprep.subr.bf16.mxu0 0
      %3248 = vmatpush1.bf16.msra.mxu0 0
      %3249 = vmatprep.subr.bf16.mxu0 0
      %3250 = vmatpush1.bf16.msra.mxu0 0
      %3251 = vmatprep.subr.bf16.mxu0 0
      %3252 = vmatpush1.bf16.msra.mxu0 0
      %3253 = vmatprep.subr.bf16.mxu0 0
      %3254 = vmatpush1.bf16.msra.mxu0 0
      %3255 = vmatprep.subr.bf16.mxu0 0
      %3256 = vmatpush1.bf16.msra.mxu0 0
      %3257 = vmatprep.subr.bf16.mxu0 0
      %3258 = vmatpush1.bf16.msra.mxu0 0
      %3259 = vmatprep.subr.bf16.mxu0 0
      %3260 = vmatpush1.bf16.msra.mxu0 0
      %3261 = vmatprep.mubr.bf16.mxu0 0
      %3262 = vmatmul.mubr.bf16.gmra.mrb[0].mxu0 %v3178
      %v3263 = vpop.f32.mrb[0].mxu0
      %v3264 = vadd.f32 %v3159, %v3263
      %v3265 = vpop.f32.mrb[0].mxu0
      %v3266 = vpop.f32.mrb[0].mxu0
      %v3267 = vadd.f32 %v3159, %v3266
      %v3268 = vpop.f32.mrb[0].mxu0
      %3269 = vmatprep.mubr.bf16.mxu0 0
      %3270 = vmatmul.mubr.bf16.gmra.mrb[0].mxu0 %v3181
      %v3271 = vpop.f32.mrb[0].mxu0
      %v3272 = vadd.f32 %v3159, %v3271
      %v3273 = vpop.f32.mrb[0].mxu0
      %v3274 = vpop.f32.mrb[0].mxu0
      %v3275 = vadd.f32 %v3159, %v3274
      %v3276 = vpop.f32.mrb[0].mxu0
      %3277 = vmatprep.mubr.bf16.mxu0 0
      %3278 = vmatmul.mubr.bf16.gmra.mrb[0].mxu0 %v3184
      %v3279 = vpop.f32.mrb[0].mxu0
      %v3280 = vadd.f32 %v3159, %v3279
      %v3281 = vpop.f32.mrb[0].mxu0
      %v3282 = vpop.f32.mrb[0].mxu0
      %v3283 = vadd.f32 %v3159, %v3282
      %v3284 = vpop.f32.mrb[0].mxu0
      %3285 = vmatprep.mubr.bf16.mxu0 0
      %3286 = vmatmul.mubr.bf16.gmra.mrb[0].mxu0 %v3187
      %v3287 = vpop.f32.mrb[0].mxu0
      %v3288 = vadd.f32 %v3159, %v3287
      %v3289 = vpop.f32.mrb[0].mxu0
      %v3290 = vpop.f32.mrb[0].mxu0
      %v3291 = vadd.f32 %v3159, %v3290
      %v3292 = vpop.f32.mrb[0].mxu0
      %3293 = vmatprep.mubr.bf16.mxu0 0
      %3294 = vmatmul.mubr.bf16.gmra.mrb[0].mxu0 %v3190
      %v3295 = vpop.f32.mrb[0].mxu0
      %v3296 = vadd.f32 %v3159, %v3295
      %v3297 = vpop.f32.mrb[0].mxu0
      %v3298 = vpop.f32.mrb[0].mxu0
      %v3299 = vadd.f32 %v3159, %v3298
      %v3300 = vpop.f32.mrb[0].mxu0
      %3301 = vmatprep.mubr.bf16.mxu0 0
      %3302 = vmatmul.mubr.bf16.gmra.mrb[0].mxu0 %v3193
      %v3303 = vpop.f32.mrb[0].mxu0
      %v3304 = vadd.f32 %v3159, %v3303
      %v3305 = vpop.f32.mrb[0].mxu0
      %v3306 = vpop.f32.mrb[0].mxu0
      %v3307 = vadd.f32 %v3159, %v3306
      %v3308 = vpop.f32.mrb[0].mxu0
      %3309 = vmatprep.mubr.bf16.mxu0 0
      %3310 = vmatmul.mubr.bf16.gmra.mrb[0].mxu0 %v3196
      %v3311 = vpop.f32.mrb[0].mxu0
      %v3312 = vadd.f32 %v3159, %v3311
      %v3313 = vpop.f32.mrb[0].mxu0
      %v3314 = vpop.f32.mrb[0].mxu0
      %v3315 = vadd.f32 %v3159, %v3314
      %v3316 = vpop.f32.mrb[0].mxu0
      %3317 = vmatprep.mubr.bf16.mxu0 0
      %3318 = vmatmul.mubr.bf16.gmra.mrb[0].mxu0 %v3199
      %v3319 = vpop.f32.mrb[0].mxu0
      %v3320 = vadd.f32 %v3159, %v3319
      %v3321 = vpop.f32.mrb[0].mxu0
      %v3322 = vpop.f32.mrb[0].mxu0
      %v3323 = vadd.f32 %v3159, %v3322
      %v3324 = vpop.f32.mrb[0].mxu0
      %3325 = vmatprep.mubr.bf16.mxu0 0
      %3326 = vmatmul.mubr.bf16.gmra.mrb[0].mxu0 %v3202
      %v3327 = vpop.f32.mrb[0].mxu0
      %v3328 = vadd.f32 %v3159, %v3327
      %v3329 = vpop.f32.mrb[0].mxu0
      %v3330 = vpop.f32.mrb[0].mxu0
      %v3331 = vadd.f32 %v3159, %v3330
      %v3332 = vpop.f32.mrb[0].mxu0
      %3333 = vmatprep.mubr.bf16.mxu0 0
      %3334 = vmatmul.mubr.bf16.gmra.mrb[0].mxu0 %v3205
      %v3335 = vpop.f32.mrb[0].mxu0
      %v3336 = vadd.f32 %v3159, %v3335
      %v3337 = vpop.f32.mrb[0].mxu0
      %v3338 = vpop.f32.mrb[0].mxu0
      %v3339 = vadd.f32 %v3159, %v3338
      %v3340 = vpop.f32.mrb[0].mxu0
      %3341 = vmatprep.mubr.bf16.mxu0 0
      %3342 = vmatmul.mubr.bf16.gmra.mrb[0].mxu0 %v3208
      %v3343 = vpop.f32.mrb[0].mxu0
      %v3344 = vadd.f32 %v3159, %v3343
      %v3345 = vpop.f32.mrb[0].mxu0
      %v3346 = vpop.f32.mrb[0].mxu0
      %v3347 = vadd.f32 %v3159, %v3346
      %v3348 = vpop.f32.mrb[0].mxu0
      %3349 = vmatprep.mubr.bf16.mxu0 0
      %3350 = vmatmul.mubr.bf16.gmra.mrb[0].mxu0 %v3211
      %v3351 = vpop.f32.mrb[0].mxu0
      %v3352 = vadd.f32 %v3159, %v3351
      %v3353 = vpop.f32.mrb[0].mxu0
      %v3354 = vpop.f32.mrb[0].mxu0
      %v3355 = vadd.f32 %v3159, %v3354
      %v3356 = vpop.f32.mrb[0].mxu0
      %3357 = vmatprep.mubr.bf16.mxu0 0
      %3358 = vmatmul.mubr.bf16.gmra.mrb[0].mxu0 %v3214
      %v3359 = vpop.f32.mrb[0].mxu0
      %v3360 = vadd.f32 %v3159, %v3359
      %v3361 = vpop.f32.mrb[0].mxu0
      %v3362 = vpop.f32.mrb[0].mxu0
      %v3363 = vadd.f32 %v3159, %v3362
      %v3364 = vpop.f32.mrb[0].mxu0
      %3365 = vmatprep.mubr.bf16.mxu0 0
      %3366 = vmatmul.mubr.bf16.gmra.mrb[0].mxu0 %v3217
      %v3367 = vpop.f32.mrb[0].mxu0
      %v3368 = vadd.f32 %v3159, %v3367
      %v3369 = vpop.f32.mrb[0].mxu0
      %v3370 = vpop.f32.mrb[0].mxu0
      %v3371 = vadd.f32 %v3159, %v3370
      %v3372 = vpop.f32.mrb[0].mxu0
      %3373 = vmatprep.mubr.bf16.mxu0 0
      %3374 = vmatmul.mubr.bf16.gmra.mrb[0].mxu0 %v3220
      %v3375 = vpop.f32.mrb[0].mxu0
      %v3376 = vadd.f32 %v3159, %v3375
      %v3377 = vpop.f32.mrb[0].mxu0
      %v3378 = vpop.f32.mrb[0].mxu0
      %v3379 = vadd.f32 %v3159, %v3378
      %v3380 = vpop.f32.mrb[0].mxu0
      %3381 = vmatprep.mubr.bf16.mxu0 0
      %3382 = vmatmul.mubr.bf16.gmra.mrb[0].mxu0 %v3223
      %v3383 = vpop.f32.mrb[0].mxu0
      %v3384 = vadd.f32 %v3159, %v3383
      %v3385 = vpop.f32.mrb[0].mxu0
      %v3386 = vpop.f32.mrb[0].mxu0
      %v3387 = vadd.f32 %v3159, %v3386
      %v3388 = vpop.f32.mrb[0].mxu0
      %3389 = vdwg.mxu0
      %v3390 = vld [vmem:[%s245] sm:$0xf]
      %v3391 = vld [vmem:[%s245 + $0x4] sm:$0xf]
      %v3392 = vld [vmem:[%s245 + $0x8] sm:$0xf]
      %v3393 = vld [vmem:[%s245 + $0xc] sm:$0xf]
      %v3394 = vld [vmem:[%s245 + $0x10] sm:$0xf]
      %v3395 = vld [vmem:[%s245 + $0x14] sm:$0xf]
      %v3396 = vld [vmem:[%s245 + $0x18] sm:$0xf]
      %v3397 = vld [vmem:[%s245 + $0x1c] sm:$0xf]
      %v3398 = vld [vmem:[%s245 + $0x20] sm:$0xf]
      %v3399 = vld [vmem:[%s245 + $0x24] sm:$0xf]
      %v3400 = vld [vmem:[%s245 + $0x28] sm:$0xf]
      %v3401 = vld [vmem:[%s245 + $0x2c] sm:$0xf]
      %v3402 = vld [vmem:[%s245 + $0x30] sm:$0xf]
      %v3403 = vld [vmem:[%s245 + $0x34] sm:$0xf]
      %v3404 = vld [vmem:[%s245 + $0x38] sm:$0xf]
      %v3405 = vld [vmem:[%s245 + $0x3c] sm:$0xf]
      %v3406 = vld [vmem:[%s245 + $0x40] sm:$0xf]
      %v3407 = vld [vmem:[%s245 + $0x44] sm:$0xf]
      %v3408 = vld [vmem:[%s245 + $0x48] sm:$0xf]
      %v3409 = vld [vmem:[%s245 + $0x4c] sm:$0xf]
      %v3410 = vld [vmem:[%s245 + $0x50] sm:$0xf]
      %v3411 = vld [vmem:[%s245 + $0x54] sm:$0xf]
      %v3412 = vld [vmem:[%s245 + $0x58] sm:$0xf]
      %v3413 = vld [vmem:[%s245 + $0x5c] sm:$0xf]
      %v3414 = vld [vmem:[%s245 + $0x60] sm:$0xf]
      %v3415 = vld [vmem:[%s245 + $0x64] sm:$0xf]
      %v3416 = vld [vmem:[%s245 + $0x68] sm:$0xf]
      %v3417 = vld [vmem:[%s245 + $0x6c] sm:$0xf]
      %v3418 = vld [vmem:[%s245 + $0x70] sm:$0xf]
      %v3419 = vld [vmem:[%s245 + $0x74] sm:$0xf]
      %v3420 = vld [vmem:[%s245 + $0x78] sm:$0xf]
      %v3421 = vld [vmem:[%s245 + $0x7c] sm:$0xf]
      %v3422 = vunpack.c.l.bf16 %v3390
      %v3423 = vunpack.c.l.bf16 %v3391
      %v3424 = vunpack.c.l.bf16 %v3392
      %v3425 = vunpack.c.l.bf16 %v3393
      %v3426 = vunpack.c.l.bf16 %v3394
      %v3427 = vunpack.c.l.bf16 %v3395
      %v3428 = vunpack.c.l.bf16 %v3396
      %v3429 = vunpack.c.l.bf16 %v3397
      %v3430 = vunpack.c.l.bf16 %v3398
      %v3431 = vunpack.c.l.bf16 %v3399
      %v3432 = vunpack.c.l.bf16 %v3400
      %v3433 = vunpack.c.l.bf16 %v3401
      %v3434 = vunpack.c.l.bf16 %v3402
      %v3435 = vunpack.c.l.bf16 %v3403
      %v3436 = vunpack.c.l.bf16 %v3404
      %v3437 = vunpack.c.l.bf16 %v3405
      %v3438 = vunpack.c.l.bf16 %v3406
      %v3439 = vunpack.c.l.bf16 %v3407
      %v3440 = vunpack.c.l.bf16 %v3408
      %v3441 = vunpack.c.l.bf16 %v3409
      %v3442 = vunpack.c.l.bf16 %v3410
      %v3443 = vunpack.c.l.bf16 %v3411
      %v3444 = vunpack.c.l.bf16 %v3412
      %v3445 = vunpack.c.l.bf16 %v3413
      %v3446 = vunpack.c.l.bf16 %v3414
      %v3447 = vunpack.c.l.bf16 %v3415
      %v3448 = vunpack.c.l.bf16 %v3416
      %v3449 = vunpack.c.l.bf16 %v3417
      %v3450 = vunpack.c.l.bf16 %v3418
      %v3451 = vunpack.c.l.bf16 %v3419
      %v3452 = vunpack.c.l.bf16 %v3420
      %v3453 = vunpack.c.l.bf16 %v3421
      %v3454 = vadd.f32 %v3264, %v3422
      %v3455 = vadd.f32 %v3267, %v3423
      %v3456 = vadd.f32 %v3272, %v3424
      %v3457 = vadd.f32 %v3275, %v3425
      %v3458 = vadd.f32 %v3280, %v3426
      %v3459 = vadd.f32 %v3283, %v3427
      %v3460 = vadd.f32 %v3288, %v3428
      %v3461 = vadd.f32 %v3291, %v3429
      %v3462 = vadd.f32 %v3296, %v3430
      %v3463 = vadd.f32 %v3299, %v3431
      %v3464 = vadd.f32 %v3304, %v3432
      %v3465 = vadd.f32 %v3307, %v3433
      %v3466 = vadd.f32 %v3312, %v3434
      %v3467 = vadd.f32 %v3315, %v3435
      %v3468 = vadd.f32 %v3320, %v3436
      %v3469 = vadd.f32 %v3323, %v3437
      %v3470 = vadd.f32 %v3328, %v3438
      %v3471 = vadd.f32 %v3331, %v3439
      %v3472 = vadd.f32 %v3336, %v3440
      %v3473 = vadd.f32 %v3339, %v3441
      %v3474 = vadd.f32 %v3344, %v3442
      %v3475 = vadd.f32 %v3347, %v3443
      %v3476 = vadd.f32 %v3352, %v3444
      %v3477 = vadd.f32 %v3355, %v3445
      %v3478 = vadd.f32 %v3360, %v3446
      %v3479 = vadd.f32 %v3363, %v3447
      %v3480 = vadd.f32 %v3368, %v3448
      %v3481 = vadd.f32 %v3371, %v3449
      %v3482 = vadd.f32 %v3376, %v3450
      %v3483 = vadd.f32 %v3379, %v3451
      %v3484 = vadd.f32 %v3384, %v3452
      %v3485 = vadd.f32 %v3387, %v3453
      %v3486 = vmax.f32 %v3454, 0.0
      %v3487 = vmax.f32 %v3455, 0.0
      %v3488 = vmax.f32 %v3456, 0.0
      %v3489 = vmax.f32 %v3457, 0.0
      %v3490 = vmax.f32 %v3458, 0.0
      %v3491 = vmax.f32 %v3459, 0.0
      %v3492 = vmax.f32 %v3460, 0.0
      %v3493 = vmax.f32 %v3461, 0.0
      %v3494 = vmax.f32 %v3462, 0.0
      %v3495 = vmax.f32 %v3463, 0.0
      %v3496 = vmax.f32 %v3464, 0.0
      %v3497 = vmax.f32 %v3465, 0.0
      %v3498 = vmax.f32 %v3466, 0.0
      %v3499 = vmax.f32 %v3467, 0.0
      %v3500 = vmax.f32 %v3468, 0.0
      %v3501 = vmax.f32 %v3469, 0.0
      %v3502 = vmax.f32 %v3470, 0.0
      %v3503 = vmax.f32 %v3471, 0.0
      %v3504 = vmax.f32 %v3472, 0.0
      %v3505 = vmax.f32 %v3473, 0.0
      %v3506 = vmax.f32 %v3474, 0.0
      %v3507 = vmax.f32 %v3475, 0.0
      %v3508 = vmax.f32 %v3476, 0.0
      %v3509 = vmax.f32 %v3477, 0.0
      %v3510 = vmax.f32 %v3478, 0.0
      %v3511 = vmax.f32 %v3479, 0.0
      %v3512 = vmax.f32 %v3480, 0.0
      %v3513 = vmax.f32 %v3481, 0.0
      %v3514 = vmax.f32 %v3482, 0.0
      %v3515 = vmax.f32 %v3483, 0.0
      %v3516 = vmax.f32 %v3484, 0.0
      %v3517 = vmax.f32 %v3485, 0.0
      %3518 = vst.msk [vmem:[%s255] sm:$0xff] %vm2180, %v3486
      %3519 = vst.msk [vmem:[%s255 + $0x8] sm:$0xff] %vm2180, %v3487
      %3520 = vst.msk [vmem:[%s255 + $0x10] sm:$0xff] %vm2180, %v3488
      %3521 = vst.msk [vmem:[%s255 + $0x18] sm:$0xff] %vm2180, %v3489
      %3522 = vst.msk [vmem:[%s255 + $0x20] sm:$0xff] %vm2180, %v3490
      %3523 = vst.msk [vmem:[%s255 + $0x28] sm:$0xff] %vm2180, %v3491
      %3524 = vst.msk [vmem:[%s255 + $0x30] sm:$0xff] %vm2180, %v3492
      %3525 = vst.msk [vmem:[%s255 + $0x38] sm:$0xff] %vm2180, %v3493
      %3526 = vst.msk [vmem:[%s255 + $0x40] sm:$0xff] %vm2180, %v3494
      %3527 = vst.msk [vmem:[%s255 + $0x48] sm:$0xff] %vm2180, %v3495
      %3528 = vst.msk [vmem:[%s255 + $0x50] sm:$0xff] %vm2180, %v3496
      %3529 = vst.msk [vmem:[%s255 + $0x58] sm:$0xff] %vm2180, %v3497
      %3530 = vst.msk [vmem:[%s255 + $0x60] sm:$0xff] %vm2180, %v3498
      %3531 = vst.msk [vmem:[%s255 + $0x68] sm:$0xff] %vm2180, %v3499
      %3532 = vst.msk [vmem:[%s255 + $0x70] sm:$0xff] %vm2180, %v3500
      %3533 = vst.msk [vmem:[%s255 + $0x78] sm:$0xff] %vm2180, %v3501
      %3534 = vst.msk [vmem:[%s255 + $0x80] sm:$0xff] %vm2180, %v3502
      %3535 = vst.msk [vmem:[%s255 + $0x88] sm:$0xff] %vm2180, %v3503
      %3536 = vst.msk [vmem:[%s255 + $0x90] sm:$0xff] %vm2180, %v3504
      %3537 = vst.msk [vmem:[%s255 + $0x98] sm:$0xff] %vm2180, %v3505
      %3538 = vst.msk [vmem:[%s255 + $0xa0] sm:$0xff] %vm2180, %v3506
      %3539 = vst.msk [vmem:[%s255 + $0xa8] sm:$0xff] %vm2180, %v3507
      %3540 = vst.msk [vmem:[%s255 + $0xb0] sm:$0xff] %vm2180, %v3508
      %3541 = vst.msk [vmem:[%s255 + $0xb8] sm:$0xff] %vm2180, %v3509
      %3542 = vst.msk [vmem:[%s255 + $0xc0] sm:$0xff] %vm2180, %v3510
      %3543 = vst.msk [vmem:[%s255 + $0xc8] sm:$0xff] %vm2180, %v3511
      %3544 = vst.msk [vmem:[%s255 + $0xd0] sm:$0xff] %vm2180, %v3512
      %3545 = vst.msk [vmem:[%s255 + $0xd8] sm:$0xff] %vm2180, %v3513
      %3546 = vst.msk [vmem:[%s255 + $0xe0] sm:$0xff] %vm2180, %v3514
      %3547 = vst.msk [vmem:[%s255 + $0xe8] sm:$0xff] %vm2180, %v3515
      %3548 = vst.msk [vmem:[%s255 + $0xf0] sm:$0xff] %vm2180, %v3516
      %3549 = vst.msk [vmem:[%s255 + $0xf8] sm:$0xff] %vm2180, %v3517
      %s3550 = smul.u32 32, %s20
      %p3551 = scmp.lt.s32.totalorder %s19, 1
      %s3552 = scalar_select %p3551, %s19, 1
      %p3553 = scmp.lt.s32.totalorder %s3550, 31
      %s3554 = scalar_select %p3553, %s3550, 31
      %s3555 = smul.addr %s3552, 32
      %s3556 = sadd.s32 %s3554, %s3555
      %s3557 = smul.addr %s3556, 8
      %s3558 = scalar_lea.vmem %s4, %s3557
      // Predicated region
      $region37: #{basic_block_forward.3} parent=35 // pred_check
        %p3559 = pneg %p143
      $region38: #{basic_block_forward.3} parent=35 // pred_check_branch
        %3561 = sbr.rel (%p3559) target = $region40
      $region39: #{basic_block_forward.3} parent=35 // pred_region
        %s3562 = smul.u32 32, %s20
      $region40: #{basic_block_forward.3} parent=35 // pred_fallthru
        _
    $region36: #{basic_block_forward.3} parent=5 // pred_fallthru
      _
    %p3563 = scmp.le.s32.totalorder 2, %s10
    // Predicated region
    $region41: #{basic_block_forward.3} parent=5 // pred_check
      %p3564 = pneg %p3563
    $region42: #{basic_block_forward.3} parent=5 // pred_check_branch
      %3566 = sbr.rel (%p3564) target = $region44
    $region43: #{basic_block_forward.3} parent=5 // pred_region
      %s3567 = ssub.s32 %s10, 2
      // Predicated region
      $region45: #{basic_block_forward.3} parent=43 // pred_check
        %p3568 = pneg %p149
      $region46: #{basic_block_forward.3} parent=43 // pred_check_branch
        %3570 = sbr.rel (%p3568) target = $region48
      $region47: #{basic_block_forward.3} parent=43 // pred_region
        %s3571 = smul.u32 32, %s22
        %p3572 = scmp.lt.s32.totalorder %s21, 1
        %s3573 = scalar_select %p3572, %s21, 1
        %p3574 = scmp.lt.s32.totalorder %s3571, 31
        %s3575 = scalar_select %p3574, %s3571, 31
        %s3576 = smul.addr %s3573, 32
        %s3577 = sadd.s32 %s3575, %s3576
        %s3578 = smul.addr %s3577, 8
        %s3579 = scalar_lea.vmem %s4, %s3578
      $region48: #{basic_block_forward.3} parent=43 // pred_fallthru
        _
    $region44: #{basic_block_forward.3} parent=5 // pred_fallthru
      _
  $region6: #{basic_block_forward.3} parent=0 // loop_footer
    %s14 = sadd.s32 1, %s10
  $region7: #{basic_block_forward.3} parent=0 // loop_footer_branch
    %9 = sbr.rel target = $region3
  $region8: #{basic_block_forward.3} parent=0 // loop_exit
    _

// kernel: basic_block_forward.2
$region0: #{basic_block_forward.2}
  #allocation0 [shape = 'u32[]', space=smem, size = 0x4, offset = 0x4, fixed_abs, tag = 'smem constant byte address 0x4 - core index']
  #allocation1 [shape = 'u32[144,128]{1,0:T(1,128)}', space=vmem, size = 0x12000, scoped, tag = 'internal scratch']
  #allocation2 [shape = 'bf16[256,36]{1,0:T(16,128)(2,1)}', space=vmem, size = 0x10000, scoped, tag = 'scratch operand']
  %s0 = inlined_call_operand.vmem [shape: bf16[2,18,18,4], index: 0, kind: input, shape index: {}]
  %s1 = inlined_call_operand.vmem [shape: bf16[36,4], index: 1, kind: input, shape index: {}]
  %s2 = inlined_call_operand.vmem [shape: f32[1,4], index: 2, kind: input, shape index: {}]
  %s3 = inlined_call_operand.vmem [shape: bf16[2,256,4], index: 3, kind: output, shape index: {}]
  %s4 = sld [smem:[#allocation0]]
  $region45: #{basic_block_forward.2} parent=0
    _
  %s6 = ssub.s32 1, %s4
  %s7 = scalar_select 0, %s6, %s4
  loop: start=0, step=1, limit=4
  $region2: #{basic_block_forward.2} parent=0 // loop_pre_header
    _
  $region3: #{basic_block_forward.2} parent=0 // loop_header
    %s9 = sphi 0, %s13
    %p10 = scmp.ge.s32.totalorder %s9, 4
    %s16 = sphi 0, %s28
    %s17 = sphi 0, %s24
    %s18 = sphi 0, %s16
    %s19 = sphi 0, %s17
    %s20 = sphi 0, %s18
    %s21 = sphi 0, %s19
    %s31 = sphi 0, %s33
    %s34 = sphi 0, %s31
    %s35 = sphi 0, %s34
    %s51 = sphi 0, %s35
    %s55 = sphi 0, %s55
    %s57 = sphi 0, %s55
    %s58 = sphi 0, %s57
    %s72 = sphi 0, %s58
    %s76 = sphi 0, %s76
    %s78 = sphi 0, %s76
    %s79 = sphi 0, %s78
    %s93 = sphi 0, %s79
    %s101 = sphi 0, %s103
    %s104 = sphi 0, %s101
    %s105 = sphi 0, %s104
    %s121 = sphi 0, %s105
  $region4: #{basic_block_forward.2} parent=0 // loop_header_branch
    %12 = sbr.rel (%p10) target = $region8
  $region5: #{basic_block_forward.2} parent=0 // loop_body
    %s14 = ssub.s32 %s9, 1
    %s15 = ssub.s32 %s9, 2
    %s22 = sadd.s32 1, %s17
    %p23 = scmp.ge.s32.totalorder %s22, 1
    %s24 = scalar_select %p23, 0, %s22
    %s25 = sadd.s32 1, %s16
    %s26 = scalar_select %p23, %s25, %s16
    %p27 = scmp.ge.s32.totalorder %s26, 2
    %s28 = scalar_select %p27, 0, %s26
    %s29 = ssub.s32 %s16, %s28
    %p30 = scmp.eq.s32.totalorder %s29, 0
    %s32 = sadd.s32 %s31, 1
    %s33 = scalar_select %p30, %s31, %s32
    %p36 = pneg %p30
    %p37 = scmp.eq.s32.totalorder %s9, 1
    %p38 = por %p36, %p37
    %p39 = scmp.ne.s32.totalorder %s31, %s34
    %p40 = scmp.eq.s32.totalorder %s9, 0
    %p41 = por %p39, %p40
    %p42 = scmp.ne.s32.totalorder %s31, %s34
    %p43 = scmp.eq.s32.totalorder %s14, 1
    %p44 = por %p42, %p43
    %p45 = scmp.ne.s32.totalorder %s34, %s35
    %p46 = scmp.eq.s32.totalorder %s14, 0
    %p47 = por %p45, %p46
    %p48 = scmp.ne.s32.totalorder %s34, %s35
    %p49 = scmp.eq.s32.totalorder %s15, 1
    %p50 = por %p48, %p49
    %p52 = scmp.ne.s32.totalorder %s35, %s51
    %p53 = scmp.eq.s32.totalorder %s15, 0
    %p54 = por %p52, %p53
    %s56 = sadd.s32 %s55, 1
    %p59 = scmp.eq.s32.totalorder %s9, 1
    %p60 = scmp.ne.s32.totalorder %s55, %s57
    %p61 = scmp.eq.s32.totalorder %s9, 0
    %p62 = por %p60, %p61
    %p63 = scmp.ne.s32.totalorder %s55, %s57
    %p64 = scmp.eq.s32.totalorder %s14, 1
    %p65 = por %p63, %p64
    %p66 = scmp.ne.s32.totalorder %s57, %s58
    %p67 = scmp.eq.s32.totalorder %s14, 0
    %p68 = por %p66, %p67
    %p69 = scmp.ne.s32.totalorder %s57, %s58
    %p70 = scmp.eq.s32.totalorder %s15, 1
    %p71 = por %p69, %p70
    %p73 = scmp.ne.s32.totalorder %s58, %s72
    %p74 = scmp.eq.s32.totalorder %s15, 0
    %p75 = por %p73, %p74
    %s77 = sadd.s32 %s76, 1
    %p80 = scmp.eq.s32.totalorder %s9, 1
    %p81 = scmp.ne.s32.totalorder %s76, %s78
    %p82 = scmp.eq.s32.totalorder %s9, 0
    %p83 = por %p81, %p82
    %p84 = scmp.ne.s32.totalorder %s76, %s78
    %p85 = scmp.eq.s32.totalorder %s14, 1
    %p86 = por %p84, %p85
    %p87 = scmp.ne.s32.totalorder %s78, %s79
    %p88 = scmp.eq.s32.totalorder %s14, 0
    %p89 = por %p87, %p88
    %p90 = scmp.ne.s32.totalorder %s78, %s79
    %p91 = scmp.eq.s32.totalorder %s15, 1
    %p92 = por %p90, %p91
    %p94 = scmp.ne.s32.totalorder %s79, %s93
    %p95 = scmp.eq.s32.totalorder %s15, 0
    %p96 = por %p94, %p95
    %s97 = ssub.s32 %s16, %s28
    %s98 = ssub.s32 %s17, %s24
    %s99 = sor.u32 %s97, %s98
    %p100 = scmp.eq.s32.totalorder %s99, 0
    %s102 = sadd.s32 %s101, 1
    %s103 = scalar_select %p100, %s101, %s102
    %p106 = pneg %p100
    %p107 = scmp.eq.s32.totalorder %s9, 1
    %p108 = por %p106, %p107
    %p109 = scmp.ne.s32.totalorder %s101, %s104
    %p110 = scmp.eq.s32.totalorder %s9, 0
    %p111 = por %p109, %p110
    %p112 = scmp.ne.s32.totalorder %s101, %s104
    %p113 = scmp.eq.s32.totalorder %s14, 1
    %p114 = por %p112, %p113
    %p115 = scmp.ne.s32.totalorder %s104, %s105
    %p116 = scmp.eq.s32.totalorder %s14, 0
    %p117 = por %p115, %p116
    %p118 = scmp.ne.s32.totalorder %s104, %s105
    %p119 = scmp.eq.s32.totalorder %s15, 1
    %p120 = por %p118, %p119
    %p122 = scmp.ne.s32.totalorder %s105, %s121
    %p123 = scmp.eq.s32.totalorder %s15, 0
    %p124 = por %p122, %p123
    %p125 = scmp.le.s32.totalorder 1, %s9
    %p126 = scmp.lt.s32.totalorder %s9, 3
    %p127 = pnand %p125, %p126
    %p128 = pneg %p127
    // Predicated region
    $region9: #{basic_block_forward.2} parent=5 // pred_check
      _
    $region10: #{basic_block_forward.2} parent=5 // pred_check_branch
      %130 = sbr.rel (%p127) target = $region12
    $region11: #{basic_block_forward.2} parent=5 // pred_region
      %s131 = ssub.s32 %s9, 1
      // Predicated region
      $region13: #{basic_block_forward.2} parent=11 // pred_check
        %p132 = pneg %p68
      $region14: #{basic_block_forward.2} parent=11 // pred_check_branch
        %134 = sbr.rel (%p132) target = $region16
      $region15: #{basic_block_forward.2} parent=11 // pred_region
        _
      $region16: #{basic_block_forward.2} parent=11 // pred_fallthru
        _
      // Predicated region
      $region17: #{basic_block_forward.2} parent=11 // pred_check
        %p135 = pneg %p89
      $region18: #{basic_block_forward.2} parent=11 // pred_check_branch
        %137 = sbr.rel (%p135) target = $region20
      $region19: #{basic_block_forward.2} parent=11 // pred_region
        _
      $region20: #{basic_block_forward.2} parent=11 // pred_fallthru
        _
    $region12: #{basic_block_forward.2} parent=5 // pred_fallthru
      _
    %p138 = scmp.lt.s32.totalorder %s9, 2
    // Predicated region
    $region21: #{basic_block_forward.2} parent=5 // pred_check
      %p139 = pneg %p138
    $region22: #{basic_block_forward.2} parent=5 // pred_check_branch
      %141 = sbr.rel (%p139) target = $region24
    $region23: #{basic_block_forward.2} parent=5 // pred_region
      // Predicated region
      $region25: #{basic_block_forward.2} parent=23 // pred_check
        %p142 = pneg %p41
      $region26: #{basic_block_forward.2} parent=23 // pred_check_branch
        %144 = sbr.rel (%p142) target = $region28
      $region27: #{basic_block_forward.2} parent=23 // pred_region
        %p145 = scmp.lt.s32.totalorder %s16, 1
        %s146 = scalar_select %p145, %s16, 1
        %s147 = smul.addr %s146, 54
        %s148 = smul.addr %s147, 4
        %s149 = scalar_lea.vmem %s0, %s148
      $region28: #{basic_block_forward.2} parent=23 // pred_fallthru
        _
    $region24: #{basic_block_forward.2} parent=5 // pred_fallthru
      _
    %p150 = scmp.le.s32.totalorder 1, %s9
    %p151 = scmp.lt.s32.totalorder %s9, 3
    %p152 = pnand %p150, %p151
    %p153 = pneg %p152
    // Predicated region
    $region29: #{basic_block_forward.2} parent=5 // pred_check
      _
    $region30: #{basic_block_forward.2} parent=5 // pred_check_branch
      %155 = sbr.rel (%p152) target = $region32
    $region31: #{basic_block_forward.2} parent=5 // pred_region
      %s156 = ssub.s32 %s9, 1
      %p157 = scmp.lt.s32.totalorder %s18, 1
      %s158 = scalar_select %p157, %s18, 1
      %s159 = smul.addr %s158, 54
      %s160 = smul.addr %s159, 4
      %s161 = scalar_lea.vmem %s0, %s160
      %p162 = pneg %p47
      %p163 = pneg %p44
      %p164 = pneg %p68
      %p165 = pneg %p65
      %p166 = pneg %p89
      %p167 = pneg %p86
      %p168 = pneg %p117
      %p169 = pneg %p114
      %s170 = smul.u32 32, %s19
      %p171 = scmp.lt.s32.totalorder %s18, 1
      %s172 = scalar_select %p171, %s18, 1
      %p173 = scmp.lt.s32.totalorder %s170, 31
      %s174 = scalar_select %p173, %s170, 31
      %s175 = smul.addr %s172, 32
      %s176 = sadd.s32 %s174, %s175
      %s177 = smul.addr %s176, 4
      %s178 = scalar_lea.vmem %s3, %s177
      %p179 = scmp.lt.s32.totalorder %s18, 1
      %s180 = scalar_select %p179, %s18, 1
      %s181 = smul.addr %s180, 54
      %s182 = smul.addr %s181, 4
      %s183 = scalar_lea.vmem %s0, %s182
      %s184 = smul.u32 32, %s19
      %p185 = scmp.lt.s32.totalorder %s18, 1
      %s186 = scalar_select %p185, %s18, 1
      %p187 = scmp.lt.s32.totalorder %s184, 31
      %s188 = scalar_select %p187, %s184, 31
      %s189 = smul.addr %s186, 32
      %s190 = sadd.s32 %s188, %s189
      %s191 = smul.addr %s190, 4
      %s192 = scalar_lea.vmem %s3, %s191
      %s193 = smul.u32 32, %s19
      %s195 = smul.u32 %s19, 16
      %s196 = smul.u32 %s195, 3
      %s197 = smul.addr %s196, 4
      %s198 = scalar_lea.vmem %s183, %s197
      %v199 = vld [vmem:[%s198] sm:$0xf]
      %v200 = vld [vmem:[%s198 + $0x4] sm:$0xf]
      %v201 = vld [vmem:[%s198 + $0xc] sm:$0xf]
      %v202 = vld [vmem:[%s198 + $0x10] sm:$0xf]
      %v203 = vld [vmem:[%s198 + $0x18] sm:$0xf]
      %v204 = vld [vmem:[%s198 + $0x1c] sm:$0xf]
      %v205 = vld [vmem:[%s198 + $0x24] sm:$0xf]
      %v206 = vld [vmem:[%s198 + $0x28] sm:$0xf]
      %v207 = vld [vmem:[%s198 + $0x30] sm:$0xf]
      %v208 = vld [vmem:[%s198 + $0x34] sm:$0xf]
      %v209 = vld [vmem:[%s198 + $0x3c] sm:$0xf]
      %v210 = vld [vmem:[%s198 + $0x40] sm:$0xf]
      %v211 = vld [vmem:[%s198 + $0x48] sm:$0xf]
      %v212 = vld [vmem:[%s198 + $0x4c] sm:$0xf]
      %v213 = vld [vmem:[%s198 + $0x54] sm:$0xf]
      %v214 = vld [vmem:[%s198 + $0x58] sm:$0xf]
      %v215 = vld [vmem:[%s198 + $0x60] sm:$0xf]
      %v216 = vld [vmem:[%s198 + $0x64] sm:$0xf]
      %v217 = vld [vmem:[%s198 + $0x6c] sm:$0xf]
      %v218 = vld [vmem:[%s198 + $0x70] sm:$0xf]
      %v219 = vld [vmem:[%s198 + $0x78] sm:$0xf]
      %v220 = vld [vmem:[%s198 + $0x7c] sm:$0xf]
      %v221 = vld [vmem:[%s198 + $0x84] sm:$0xf]
      %v222 = vld [vmem:[%s198 + $0x88] sm:$0xf]
      %v223 = vld [vmem:[%s198 + $0x90] sm:$0xf]
      %v224 = vld [vmem:[%s198 + $0x94] sm:$0xf]
      %v225 = vld [vmem:[%s198 + $0x9c] sm:$0xf]
      %v226 = vld [vmem:[%s198 + $0xa0] sm:$0xf]
      %v227 = vld [vmem:[%s198 + $0xa8] sm:$0xf]
      %v228 = vld [vmem:[%s198 + $0xac] sm:$0xf]
      %v229 = vld [vmem:[%s198 + $0xb4] sm:$0xf]
      %v230 = vld [vmem:[%s198 + $0xb8] sm:$0xf]
      %v231 = vld [vmem:[%s198 + $0x8] sm:$0x1]
      %v232 = vld [vmem:[%s198 + $0x14] sm:$0x1]
      %v233 = vld [vmem:[%s198 + $0x20] sm:$0x1]
      %v234 = vld [vmem:[%s198 + $0x2c] sm:$0x1]
      %v235 = vld [vmem:[%s198 + $0x38] sm:$0x1]
      %v236 = vld [vmem:[%s198 + $0x44] sm:$0x1]
      %v237 = vld [vmem:[%s198 + $0x50] sm:$0x1]
      %v238 = vld [vmem:[%s198 + $0x5c] sm:$0x1]
      %v239 = vld [vmem:[%s198 + $0x68] sm:$0x1]
      %v240 = vld [vmem:[%s198 + $0x74] sm:$0x1]
      %v241 = vld [vmem:[%s198 + $0x80] sm:$0x1]
      %v242 = vld [vmem:[%s198 + $0x8c] sm:$0x1]
      %v243 = vld [vmem:[%s198 + $0x98] sm:$0x1]
      %v244 = vld [vmem:[%s198 + $0xa4] sm:$0x1]
      %v245 = vld [vmem:[%s198 + $0xb0] sm:$0x1]
      %v246 = vld [vmem:[%s198 + $0xbc] sm:$0x1]
      %vm247 = vsmask.f32 3328
      %vm248 = vsmask.f32 7440
      %vm249 = vmor %vm247, %vm248
      %v251 = vshrl.u32 %v199, 16
      %v253 = vrot.slane %v251, 4
      %v254 = vshll.u32 %v199, 16
      %v256 = vrot.slane %v254, 5
      %v257 = vor.u32 %v253, %v256
      %v258 = vrot.slane %v257, 4
      %v260 = vshll.u32 %v200, 16
      %v262 = vrot.slane %v260, 5
      %v263 = vsel %vm249, %v258, %v262
      %v264 = vshrl.u32 %v200, 16
      %v266 = vrot.slane %v264, 4
      %v267 = vor.u32 %v266, %v262
      %v268 = vrot.slane %v267, 4
      %v270 = vshll.u32 %v231, 16
      %v272 = vrot.slane %v270, 5
      %v273 = vsel %vm249, %v268, %v272
      %v275 = vshrl.u32 %v201, 16
      %v277 = vrot.slane %v275, 4
      %v278 = vshll.u32 %v201, 16
      %v280 = vrot.slane %v278, 5
      %v281 = vor.u32 %v277, %v280
      %v282 = vrot.slane %v281, 4
      %v284 = vshll.u32 %v202, 16
      %v286 = vrot.slane %v284, 5
      %v287 = vsel %vm249, %v282, %v286
      %v288 = vshrl.u32 %v202, 16
      %v290 = vrot.slane %v288, 4
      %v291 = vor.u32 %v290, %v286
      %v292 = vrot.slane %v291, 4
      %v294 = vshll.u32 %v232, 16
      %v296 = vrot.slane %v294, 5
      %v297 = vsel %vm249, %v292, %v296
      %v299 = vshrl.u32 %v203, 16
      %v301 = vrot.slane %v299, 4
      %v302 = vshll.u32 %v203, 16
      %v304 = vrot.slane %v302, 5
      %v305 = vor.u32 %v301, %v304
      %v306 = vrot.slane %v305, 4
      %v308 = vshll.u32 %v204, 16
      %v310 = vrot.slane %v308, 5
      %v311 = vsel %vm249, %v306, %v310
      %v312 = vshrl.u32 %v204, 16
      %v314 = vrot.slane %v312, 4
      %v315 = vor.u32 %v314, %v310
      %v316 = vrot.slane %v315, 4
      %v318 = vshll.u32 %v233, 16
      %v320 = vrot.slane %v318, 5
      %v321 = vsel %vm249, %v316, %v320
      %v323 = vshrl.u32 %v205, 16
      %v325 = vrot.slane %v323, 4
      %v326 = vshll.u32 %v205, 16
      %v328 = vrot.slane %v326, 5
      %v329 = vor.u32 %v325, %v328
      %v330 = vrot.slane %v329, 4
      %v332 = vshll.u32 %v206, 16
      %v334 = vrot.slane %v332, 5
      %v335 = vsel %vm249, %v330, %v334
      %v336 = vshrl.u32 %v206, 16
      %v338 = vrot.slane %v336, 4
      %v339 = vor.u32 %v338, %v334
      %v340 = vrot.slane %v339, 4
      %v342 = vshll.u32 %v234, 16
      %v344 = vrot.slane %v342, 5
      %v345 = vsel %vm249, %v340, %v344
      %v347 = vshrl.u32 %v207, 16
      %v349 = vrot.slane %v347, 4
      %v350 = vshll.u32 %v207, 16
      %v352 = vrot.slane %v350, 5
      %v353 = vor.u32 %v349, %v352
      %v354 = vrot.slane %v353, 4
      %v356 = vshll.u32 %v208, 16
      %v358 = vrot.slane %v356, 5
      %v359 = vsel %vm249, %v354, %v358
      %v360 = vshrl.u32 %v208, 16
      %v362 = vrot.slane %v360, 4
      %v363 = vor.u32 %v362, %v358
      %v364 = vrot.slane %v363, 4
      %v366 = vshll.u32 %v235, 16
      %v368 = vrot.slane %v366, 5
      %v369 = vsel %vm249, %v364, %v368
      %v371 = vshrl.u32 %v209, 16
      %v373 = vrot.slane %v371, 4
      %v374 = vshll.u32 %v209, 16
      %v376 = vrot.slane %v374, 5
      %v377 = vor.u32 %v373, %v376
      %v378 = vrot.slane %v377, 4
      %v380 = vshll.u32 %v210, 16
      %v382 = vrot.slane %v380, 5
      %v383 = vsel %vm249, %v378, %v382
      %v384 = vshrl.u32 %v210, 16
      %v386 = vrot.slane %v384, 4
      %v387 = vor.u32 %v386, %v382
      %v388 = vrot.slane %v387, 4
      %v390 = vshll.u32 %v236, 16
      %v392 = vrot.slane %v390, 5
      %v393 = vsel %vm249, %v388, %v392
      %v395 = vshrl.u32 %v211, 16
      %v397 = vrot.slane %v395, 4
      %v398 = vshll.u32 %v211, 16
      %v400 = vrot.slane %v398, 5
      %v401 = vor.u32 %v397, %v400
      %v402 = vrot.slane %v401, 4
      %v404 = vshll.u32 %v212, 16
      %v406 = vrot.slane %v404, 5
      %v407 = vsel %vm249, %v402, %v406
      %v408 = vshrl.u32 %v212, 16
      %v410 = vrot.slane %v408, 4
      %v411 = vor.u32 %v410, %v406
      %v412 = vrot.slane %v411, 4
      %v414 = vshll.u32 %v237, 16
      %v416 = vrot.slane %v414, 5
      %v417 = vsel %vm249, %v412, %v416
      %v419 = vshrl.u32 %v213, 16
      %v421 = vrot.slane %v419, 4
      %v422 = vshll.u32 %v213, 16
      %v424 = vrot.slane %v422, 5
      %v425 = vor.u32 %v421, %v424
      %v426 = vrot.slane %v425, 4
      %v428 = vshll.u32 %v214, 16
      %v430 = vrot.slane %v428, 5
      %v431 = vsel %vm249, %v426, %v430
      %v432 = vshrl.u32 %v214, 16
      %v434 = vrot.slane %v432, 4
      %v435 = vor.u32 %v434, %v430
      %v436 = vrot.slane %v435, 4
      %v438 = vshll.u32 %v238, 16
      %v440 = vrot.slane %v438, 5
      %v441 = vsel %vm249, %v436, %v440
      %v443 = vshrl.u32 %v215, 16
      %v445 = vrot.slane %v443, 4
      %v446 = vshll.u32 %v215, 16
      %v448 = vrot.slane %v446, 5
      %v449 = vor.u32 %v445, %v448
      %v450 = vrot.slane %v449, 4
      %v452 = vshll.u32 %v216, 16
      %v454 = vrot.slane %v452, 5
      %v455 = vsel %vm249, %v450, %v454
      %v456 = vshrl.u32 %v216, 16
      %v458 = vrot.slane %v456, 4
      %v459 = vor.u32 %v458, %v454
      %v460 = vrot.slane %v459, 4
      %v462 = vshll.u32 %v239, 16
      %v464 = vrot.slane %v462, 5
      %v465 = vsel %vm249, %v460, %v464
      %v467 = vshrl.u32 %v217, 16
      %v469 = vrot.slane %v467, 4
      %v470 = vshll.u32 %v217, 16
      %v472 = vrot.slane %v470, 5
      %v473 = vor.u32 %v469, %v472
      %v474 = vrot.slane %v473, 4
      %v476 = vshll.u32 %v218, 16
      %v478 = vrot.slane %v476, 5
      %v479 = vsel %vm249, %v474, %v478
      %v480 = vshrl.u32 %v218, 16
      %v482 = vrot.slane %v480, 4
      %v483 = vor.u32 %v482, %v478
      %v484 = vrot.slane %v483, 4
      %v486 = vshll.u32 %v240, 16
      %v488 = vrot.slane %v486, 5
      %v489 = vsel %vm249, %v484, %v488
      %v491 = vshrl.u32 %v219, 16
      %v493 = vrot.slane %v491, 4
      %v494 = vshll.u32 %v219, 16
      %v496 = vrot.slane %v494, 5
      %v497 = vor.u32 %v493, %v496
      %v498 = vrot.slane %v497, 4
      %v500 = vshll.u32 %v220, 16
      %v502 = vrot.slane %v500, 5
      %v503 = vsel %vm249, %v498, %v502
      %v504 = vshrl.u32 %v220, 16
      %v506 = vrot.slane %v504, 4
      %v507 = vor.u32 %v506, %v502
      %v508 = vrot.slane %v507, 4
      %v510 = vshll.u32 %v241, 16
      %v512 = vrot.slane %v510, 5
      %v513 = vsel %vm249, %v508, %v512
      %v515 = vshrl.u32 %v221, 16
      %v517 = vrot.slane %v515, 4
      %v518 = vshll.u32 %v221, 16
      %v520 = vrot.slane %v518, 5
      %v521 = vor.u32 %v517, %v520
      %v522 = vrot.slane %v521, 4
      %v524 = vshll.u32 %v222, 16
      %v526 = vrot.slane %v524, 5
      %v527 = vsel %vm249, %v522, %v526
      %v528 = vshrl.u32 %v222, 16
      %v530 = vrot.slane %v528, 4
      %v531 = vor.u32 %v530, %v526
      %v532 = vrot.slane %v531, 4
      %v534 = vshll.u32 %v242, 16
      %v536 = vrot.slane %v534, 5
      %v537 = vsel %vm249, %v532, %v536
      %v539 = vshrl.u32 %v223, 16
      %v541 = vrot.slane %v539, 4
      %v542 = vshll.u32 %v223, 16
      %v544 = vrot.slane %v542, 5
      %v545 = vor.u32 %v541, %v544
      %v546 = vrot.slane %v545, 4
      %v548 = vshll.u32 %v224, 16
      %v550 = vrot.slane %v548, 5
      %v551 = vsel %vm249, %v546, %v550
      %v552 = vshrl.u32 %v224, 16
      %v554 = vrot.slane %v552, 4
      %v555 = vor.u32 %v554, %v550
      %v556 = vrot.slane %v555, 4
      %v558 = vshll.u32 %v243, 16
      %v560 = vrot.slane %v558, 5
      %v561 = vsel %vm249, %v556, %v560
      %v563 = vshrl.u32 %v225, 16
      %v565 = vrot.slane %v563, 4
      %v566 = vshll.u32 %v225, 16
      %v568 = vrot.slane %v566, 5
      %v569 = vor.u32 %v565, %v568
      %v570 = vrot.slane %v569, 4
      %v572 = vshll.u32 %v226, 16
      %v574 = vrot.slane %v572, 5
      %v575 = vsel %vm249, %v570, %v574
      %v576 = vshrl.u32 %v226, 16
      %v578 = vrot.slane %v576, 4
      %v579 = vor.u32 %v578, %v574
      %v580 = vrot.slane %v579, 4
      %v582 = vshll.u32 %v244, 16
      %v584 = vrot.slane %v582, 5
      %v585 = vsel %vm249, %v580, %v584
      %v587 = vshrl.u32 %v227, 16
      %v589 = vrot.slane %v587, 4
      %v590 = vshll.u32 %v227, 16
      %v592 = vrot.slane %v590, 5
      %v593 = vor.u32 %v589, %v592
      %v594 = vrot.slane %v593, 4
      %v596 = vshll.u32 %v228, 16
      %v598 = vrot.slane %v596, 5
      %v599 = vsel %vm249, %v594, %v598
      %v600 = vshrl.u32 %v228, 16
      %v602 = vrot.slane %v600, 4
      %v603 = vor.u32 %v602, %v598
      %v604 = vrot.slane %v603, 4
      %v606 = vshll.u32 %v245, 16
      %v608 = vrot.slane %v606, 5
      %v609 = vsel %vm249, %v604, %v608
      %v611 = vshrl.u32 %v229, 16
      %v613 = vrot.slane %v611, 4
      %v614 = vshll.u32 %v229, 16
      %v616 = vrot.slane %v614, 5
      %v617 = vor.u32 %v613, %v616
      %v618 = vrot.slane %v617, 4
      %v620 = vshll.u32 %v230, 16
      %v622 = vrot.slane %v620, 5
      %v623 = vsel %vm249, %v618, %v622
      %v624 = vshrl.u32 %v230, 16
      %v626 = vrot.slane %v624, 4
      %v627 = vor.u32 %v626, %v622
      %v628 = vrot.slane %v627, 4
      %v630 = vshll.u32 %v246, 16
      %v632 = vrot.slane %v630, 5
      %v633 = vsel %vm249, %v628, %v632
      %v634 = vld [vmem:[%s198] sm:$0xe]
      %v635 = vld [vmem:[%s198 + $0xc] sm:$0xe]
      %v636 = vld [vmem:[%s198 + $0x18] sm:$0xe]
      %v637 = vld [vmem:[%s198 + $0x24] sm:$0xe]
      %v638 = vld [vmem:[%s198 + $0x30] sm:$0xe]
      %v639 = vld [vmem:[%s198 + $0x3c] sm:$0xe]
      %v640 = vld [vmem:[%s198 + $0x48] sm:$0xe]
      %v641 = vld [vmem:[%s198 + $0x54] sm:$0xe]
      %v642 = vld [vmem:[%s198 + $0x60] sm:$0xe]
      %v643 = vld [vmem:[%s198 + $0x6c] sm:$0xe]
      %v644 = vld [vmem:[%s198 + $0x78] sm:$0xe]
      %v645 = vld [vmem:[%s198 + $0x84] sm:$0xe]
      %v646 = vld [vmem:[%s198 + $0x90] sm:$0xe]
      %v647 = vld [vmem:[%s198 + $0x9c] sm:$0xe]
      %v648 = vld [vmem:[%s198 + $0xa8] sm:$0xe]
      %v649 = vld [vmem:[%s198 + $0xb4] sm:$0xe]
      %vm698 = vcmask 1042432
      %vm699 = vcmask 1046532
      %vm700 = vmor %vm698, %vm699
      %v701 = vrot.slane %v634, 5
      %v702 = vrot.slane %v701, 4
      %v703 = vrot.slane %v200, 5
      %v704 = vsel %vm700, %v702, %v703
      %v705 = vrot.slane %v703, 4
      %v706 = vrot.slane %v231, 5
      %v707 = vsel %vm700, %v705, %v706
      %v708 = vrot.slane %v635, 5
      %v709 = vrot.slane %v708, 4
      %v710 = vrot.slane %v202, 5
      %v711 = vsel %vm700, %v709, %v710
      %v712 = vrot.slane %v710, 4
      %v713 = vrot.slane %v232, 5
      %v714 = vsel %vm700, %v712, %v713
      %v715 = vrot.slane %v636, 5
      %v716 = vrot.slane %v715, 4
      %v717 = vrot.slane %v204, 5
      %v718 = vsel %vm700, %v716, %v717
      %v719 = vrot.slane %v717, 4
      %v720 = vrot.slane %v233, 5
      %v721 = vsel %vm700, %v719, %v720
      %v722 = vrot.slane %v637, 5
      %v723 = vrot.slane %v722, 4
      %v724 = vrot.slane %v206, 5
      %v725 = vsel %vm700, %v723, %v724
      %v726 = vrot.slane %v724, 4
      %v727 = vrot.slane %v234, 5
      %v728 = vsel %vm700, %v726, %v727
      %v729 = vrot.slane %v638, 5
      %v730 = vrot.slane %v729, 4
      %v731 = vrot.slane %v208, 5
      %v732 = vsel %vm700, %v730, %v731
      %v733 = vrot.slane %v731, 4
      %v734 = vrot.slane %v235, 5
      %v735 = vsel %vm700, %v733, %v734
      %v736 = vrot.slane %v639, 5
      %v737 = vrot.slane %v736, 4
      %v738 = vrot.slane %v210, 5
      %v739 = vsel %vm700, %v737, %v738
      %v740 = vrot.slane %v738, 4
      %v741 = vrot.slane %v236, 5
      %v742 = vsel %vm700, %v740, %v741
      %v743 = vrot.slane %v640, 5
      %v744 = vrot.slane %v743, 4
      %v745 = vrot.slane %v212, 5
      %v746 = vsel %vm700, %v744, %v745
      %v747 = vrot.slane %v745, 4
      %v748 = vrot.slane %v237, 5
      %v749 = vsel %vm700, %v747, %v748
      %v750 = vrot.slane %v641, 5
      %v751 = vrot.slane %v750, 4
      %v752 = vrot.slane %v214, 5
      %v753 = vsel %vm700, %v751, %v752
      %v754 = vrot.slane %v752, 4
      %v755 = vrot.slane %v238, 5
      %v756 = vsel %vm700, %v754, %v755
      %v757 = vrot.slane %v642, 5
      %v758 = vrot.slane %v757, 4
      %v759 = vrot.slane %v216, 5
      %v760 = vsel %vm700, %v758, %v759
      %v761 = vrot.slane %v759, 4
      %v762 = vrot.slane %v239, 5
      %v763 = vsel %vm700, %v761, %v762
      %v764 = vrot.slane %v643, 5
      %v765 = vrot.slane %v764, 4
      %v766 = vrot.slane %v218, 5
      %v767 = vsel %vm700, %v765, %v766
      %v768 = vrot.slane %v766, 4
      %v769 = vrot.slane %v240, 5
      %v770 = vsel %vm700, %v768, %v769
      %v771 = vrot.slane %v644, 5
      %v772 = vrot.slane %v771, 4
      %v773 = vrot.slane %v220, 5
      %v774 = vsel %vm700, %v772, %v773
      %v775 = vrot.slane %v773, 4
      %v776 = vrot.slane %v241, 5
      %v777 = vsel %vm700, %v775, %v776
      %v778 = vrot.slane %v645, 5
      %v779 = vrot.slane %v778, 4
      %v780 = vrot.slane %v222, 5
      %v781 = vsel %vm700, %v779, %v780
      %v782 = vrot.slane %v780, 4
      %v783 = vrot.slane %v242, 5
      %v784 = vsel %vm700, %v782, %v783
      %v785 = vrot.slane %v646, 5
      %v786 = vrot.slane %v785, 4
      %v787 = vrot.slane %v224, 5
      %v788 = vsel %vm700, %v786, %v787
      %v789 = vrot.slane %v787, 4
      %v790 = vrot.slane %v243, 5
      %v791 = vsel %vm700, %v789, %v790
      %v792 = vrot.slane %v647, 5
      %v793 = vrot.slane %v792, 4
      %v794 = vrot.slane %v226, 5
      %v795 = vsel %vm700, %v793, %v794
      %v796 = vrot.slane %v794, 4
      %v797 = vrot.slane %v244, 5
      %v798 = vsel %vm700, %v796, %v797
      %v799 = vrot.slane %v648, 5
      %v800 = vrot.slane %v799, 4
      %v801 = vrot.slane %v228, 5
      %v802 = vsel %vm700, %v800, %v801
      %v803 = vrot.slane %v801, 4
      %v804 = vrot.slane %v245, 5
      %v805 = vsel %vm700, %v803, %v804
      %v806 = vrot.slane %v649, 5
      %v807 = vrot.slane %v806, 4
      %v808 = vrot.slane %v230, 5
      %v809 = vsel %vm700, %v807, %v808
      %v810 = vrot.slane %v808, 4
      %v811 = vrot.slane %v246, 5
      %v812 = vsel %vm700, %v810, %v811
      %s813 = sadd.s32 %s195, 1
      %s814 = smul.u32 %s813, 3
      %s815 = smul.addr %s814, 4
      %s816 = scalar_lea.vmem %s183, %s815
      %v817 = vld [vmem:[%s816] sm:$0xf]
      %v818 = vld [vmem:[%s816 + $0x4] sm:$0xf]
      %v819 = vld [vmem:[%s816 + $0xc] sm:$0xf]
      %v820 = vld [vmem:[%s816 + $0x10] sm:$0xf]
      %v821 = vld [vmem:[%s816 + $0x18] sm:$0xf]
      %v822 = vld [vmem:[%s816 + $0x1c] sm:$0xf]
      %v823 = vld [vmem:[%s816 + $0x24] sm:$0xf]
      %v824 = vld [vmem:[%s816 + $0x28] sm:$0xf]
      %v825 = vld [vmem:[%s816 + $0x30] sm:$0xf]
      %v826 = vld [vmem:[%s816 + $0x34] sm:$0xf]
      %v827 = vld [vmem:[%s816 + $0x3c] sm:$0xf]
      %v828 = vld [vmem:[%s816 + $0x40] sm:$0xf]
      %v829 = vld [vmem:[%s816 + $0x48] sm:$0xf]
      %v830 = vld [vmem:[%s816 + $0x4c] sm:$0xf]
      %v831 = vld [vmem:[%s816 + $0x54] sm:$0xf]
      %v832 = vld [vmem:[%s816 + $0x58] sm:$0xf]
      %v833 = vld [vmem:[%s816 + $0x60] sm:$0xf]
      %v834 = vld [vmem:[%s816 + $0x64] sm:$0xf]
      %v835 = vld [vmem:[%s816 + $0x6c] sm:$0xf]
      %v836 = vld [vmem:[%s816 + $0x70] sm:$0xf]
      %v837 = vld [vmem:[%s816 + $0x78] sm:$0xf]
      %v838 = vld [vmem:[%s816 + $0x7c] sm:$0xf]
      %v839 = vld [vmem:[%s816 + $0x84] sm:$0xf]
      %v840 = vld [vmem:[%s816 + $0x88] sm:$0xf]
      %v841 = vld [vmem:[%s816 + $0x90] sm:$0xf]
      %v842 = vld [vmem:[%s816 + $0x94] sm:$0xf]
      %v843 = vld [vmem:[%s816 + $0x9c] sm:$0xf]
      %v844 = vld [vmem:[%s816 + $0xa0] sm:$0xf]
      %v845 = vld [vmem:[%s816 + $0xa8] sm:$0xf]
      %v846 = vld [vmem:[%s816 + $0xac] sm:$0xf]
      %v847 = vld [vmem:[%s816 + $0xb4] sm:$0xf]
      %v848 = vld [vmem:[%s816 + $0xb8] sm:$0xf]
      %v849 = vld [vmem:[%s816 + $0x8] sm:$0x1]
      %v850 = vld [vmem:[%s816 + $0x14] sm:$0x1]
      %v851 = vld [vmem:[%s816 + $0x20] sm:$0x1]
      %v852 = vld [vmem:[%s816 + $0x2c] sm:$0x1]
      %v853 = vld [vmem:[%s816 + $0x38] sm:$0x1]
      %v854 = vld [vmem:[%s816 + $0x44] sm:$0x1]
      %v855 = vld [vmem:[%s816 + $0x50] sm:$0x1]
      %v856 = vld [vmem:[%s816 + $0x5c] sm:$0x1]
      %v857 = vld [vmem:[%s816 + $0x68] sm:$0x1]
      %v858 = vld [vmem:[%s816 + $0x74] sm:$0x1]
      %v859 = vld [vmem:[%s816 + $0x80] sm:$0x1]
      %v860 = vld [vmem:[%s816 + $0x8c] sm:$0x1]
      %v861 = vld [vmem:[%s816 + $0x98] sm:$0x1]
      %v862 = vld [vmem:[%s816 + $0xa4] sm:$0x1]
      %v863 = vld [vmem:[%s816 + $0xb0] sm:$0x1]
      %v864 = vld [vmem:[%s816 + $0xbc] sm:$0x1]
      %v866 = vshrl.u32 %v817, 16
      %v868 = vrot.slane %v866, 4
      %v869 = vshll.u32 %v817, 16
      %v871 = vrot.slane %v869, 5
      %v872 = vor.u32 %v868, %v871
      %v873 = vrot.slane %v872, 4
      %v875 = vshll.u32 %v818, 16
      %v877 = vrot.slane %v875, 5
      %v878 = vsel %vm249, %v873, %v877
      %v879 = vshrl.u32 %v818, 16
      %v881 = vrot.slane %v879, 4
      %v882 = vor.u32 %v881, %v877
      %v883 = vrot.slane %v882, 4
      %v885 = vshll.u32 %v849, 16
      %v887 = vrot.slane %v885, 5
      %v888 = vsel %vm249, %v883, %v887
      %v890 = vshrl.u32 %v819, 16
      %v892 = vrot.slane %v890, 4
      %v893 = vshll.u32 %v819, 16
      %v895 = vrot.slane %v893, 5
      %v896 = vor.u32 %v892, %v895
      %v897 = vrot.slane %v896, 4
      %v899 = vshll.u32 %v820, 16
      %v901 = vrot.slane %v899, 5
      %v902 = vsel %vm249, %v897, %v901
      %v903 = vshrl.u32 %v820, 16
      %v905 = vrot.slane %v903, 4
      %v906 = vor.u32 %v905, %v901
      %v907 = vrot.slane %v906, 4
      %v909 = vshll.u32 %v850, 16
      %v911 = vrot.slane %v909, 5
      %v912 = vsel %vm249, %v907, %v911
      %v914 = vshrl.u32 %v821, 16
      %v916 = vrot.slane %v914, 4
      %v917 = vshll.u32 %v821, 16
      %v919 = vrot.slane %v917, 5
      %v920 = vor.u32 %v916, %v919
      %v921 = vrot.slane %v920, 4
      %v923 = vshll.u32 %v822, 16
      %v925 = vrot.slane %v923, 5
      %v926 = vsel %vm249, %v921, %v925
      %v927 = vshrl.u32 %v822, 16
      %v929 = vrot.slane %v927, 4
      %v930 = vor.u32 %v929, %v925
      %v931 = vrot.slane %v930, 4
      %v933 = vshll.u32 %v851, 16
      %v935 = vrot.slane %v933, 5
      %v936 = vsel %vm249, %v931, %v935
      %v938 = vshrl.u32 %v823, 16
      %v940 = vrot.slane %v938, 4
      %v941 = vshll.u32 %v823, 16
      %v943 = vrot.slane %v941, 5
      %v944 = vor.u32 %v940, %v943
      %v945 = vrot.slane %v944, 4
      %v947 = vshll.u32 %v824, 16
      %v949 = vrot.slane %v947, 5
      %v950 = vsel %vm249, %v945, %v949
      %v951 = vshrl.u32 %v824, 16
      %v953 = vrot.slane %v951, 4
      %v954 = vor.u32 %v953, %v949
      %v955 = vrot.slane %v954, 4
      %v957 = vshll.u32 %v852, 16
      %v959 = vrot.slane %v957, 5
      %v960 = vsel %vm249, %v955, %v959
      %v962 = vshrl.u32 %v825, 16
      %v964 = vrot.slane %v962, 4
      %v965 = vshll.u32 %v825, 16
      %v967 = vrot.slane %v965, 5
      %v968 = vor.u32 %v964, %v967
      %v969 = vrot.slane %v968, 4
      %v971 = vshll.u32 %v826, 16
      %v973 = vrot.slane %v971, 5
      %v974 = vsel %vm249, %v969, %v973
      %v975 = vshrl.u32 %v826, 16
      %v977 = vrot.slane %v975, 4
      %v978 = vor.u32 %v977, %v973
      %v979 = vrot.slane %v978, 4
      %v981 = vshll.u32 %v853, 16
      %v983 = vrot.slane %v981, 5
      %v984 = vsel %vm249, %v979, %v983
      %v986 = vshrl.u32 %v827, 16
      %v988 = vrot.slane %v986, 4
      %v989 = vshll.u32 %v827, 16
      %v991 = vrot.slane %v989, 5
      %v992 = vor.u32 %v988, %v991
      %v993 = vrot.slane %v992, 4
      %v995 = vshll.u32 %v828, 16
      %v997 = vrot.slane %v995, 5
      %v998 = vsel %vm249, %v993, %v997
      %v999 = vshrl.u32 %v828, 16
      %v1001 = vrot.slane %v999, 4
      %v1002 = vor.u32 %v1001, %v997
      %v1003 = vrot.slane %v1002, 4
      %v1005 = vshll.u32 %v854, 16
      %v1007 = vrot.slane %v1005, 5
      %v1008 = vsel %vm249, %v1003, %v1007
      %v1010 = vshrl.u32 %v829, 16
      %v1012 = vrot.slane %v1010, 4
      %v1013 = vshll.u32 %v829, 16
      %v1015 = vrot.slane %v1013, 5
      %v1016 = vor.u32 %v1012, %v1015
      %v1017 = vrot.slane %v1016, 4
      %v1019 = vshll.u32 %v830, 16
      %v1021 = vrot.slane %v1019, 5
      %v1022 = vsel %vm249, %v1017, %v1021
      %v1023 = vshrl.u32 %v830, 16
      %v1025 = vrot.slane %v1023, 4
      %v1026 = vor.u32 %v1025, %v1021
      %v1027 = vrot.slane %v1026, 4
      %v1029 = vshll.u32 %v855, 16
      %v1031 = vrot.slane %v1029, 5
      %v1032 = vsel %vm249, %v1027, %v1031
      %v1034 = vshrl.u32 %v831, 16
      %v1036 = vrot.slane %v1034, 4
      %v1037 = vshll.u32 %v831, 16
      %v1039 = vrot.slane %v1037, 5
      %v1040 = vor.u32 %v1036, %v1039
      %v1041 = vrot.slane %v1040, 4
      %v1043 = vshll.u32 %v832, 16
      %v1045 = vrot.slane %v1043, 5
      %v1046 = vsel %vm249, %v1041, %v1045
      %v1047 = vshrl.u32 %v832, 16
      %v1049 = vrot.slane %v1047, 4
      %v1050 = vor.u32 %v1049, %v1045
      %v1051 = vrot.slane %v1050, 4
      %v1053 = vshll.u32 %v856, 16
      %v1055 = vrot.slane %v1053, 5
      %v1056 = vsel %vm249, %v1051, %v1055
      %v1058 = vshrl.u32 %v833, 16
      %v1060 = vrot.slane %v1058, 4
      %v1061 = vshll.u32 %v833, 16
      %v1063 = vrot.slane %v1061, 5
      %v1064 = vor.u32 %v1060, %v1063
      %v1065 = vrot.slane %v1064, 4
      %v1067 = vshll.u32 %v834, 16
      %v1069 = vrot.slane %v1067, 5
      %v1070 = vsel %vm249, %v1065, %v1069
      %v1071 = vshrl.u32 %v834, 16
      %v1073 = vrot.slane %v1071, 4
      %v1074 = vor.u32 %v1073, %v1069
      %v1075 = vrot.slane %v1074, 4
      %v1077 = vshll.u32 %v857, 16
      %v1079 = vrot.slane %v1077, 5
      %v1080 = vsel %vm249, %v1075, %v1079
      %v1082 = vshrl.u32 %v835, 16
      %v1084 = vrot.slane %v1082, 4
      %v1085 = vshll.u32 %v835, 16
      %v1087 = vrot.slane %v1085, 5
      %v1088 = vor.u32 %v1084, %v1087
      %v1089 = vrot.slane %v1088, 4
      %v1091 = vshll.u32 %v836, 16
      %v1093 = vrot.slane %v1091, 5
      %v1094 = vsel %vm249, %v1089, %v1093
      %v1095 = vshrl.u32 %v836, 16
      %v1097 = vrot.slane %v1095, 4
      %v1098 = vor.u32 %v1097, %v1093
      %v1099 = vrot.slane %v1098, 4
      %v1101 = vshll.u32 %v858, 16
      %v1103 = vrot.slane %v1101, 5
      %v1104 = vsel %vm249, %v1099, %v1103
      %v1106 = vshrl.u32 %v837, 16
      %v1108 = vrot.slane %v1106, 4
      %v1109 = vshll.u32 %v837, 16
      %v1111 = vrot.slane %v1109, 5
      %v1112 = vor.u32 %v1108, %v1111
      %v1113 = vrot.slane %v1112, 4
      %v1115 = vshll.u32 %v838, 16
      %v1117 = vrot.slane %v1115, 5
      %v1118 = vsel %vm249, %v1113, %v1117
      %v1119 = vshrl.u32 %v838, 16
      %v1121 = vrot.slane %v1119, 4
      %v1122 = vor.u32 %v1121, %v1117
      %v1123 = vrot.slane %v1122, 4
      %v1125 = vshll.u32 %v859, 16
      %v1127 = vrot.slane %v1125, 5
      %v1128 = vsel %vm249, %v1123, %v1127
      %v1130 = vshrl.u32 %v839, 16
      %v1132 = vrot.slane %v1130, 4
      %v1133 = vshll.u32 %v839, 16
      %v1135 = vrot.slane %v1133, 5
      %v1136 = vor.u32 %v1132, %v1135
      %v1137 = vrot.slane %v1136, 4
      %v1139 = vshll.u32 %v840, 16
      %v1141 = vrot.slane %v1139, 5
      %v1142 = vsel %vm249, %v1137, %v1141
      %v1143 = vshrl.u32 %v840, 16
      %v1145 = vrot.slane %v1143, 4
      %v1146 = vor.u32 %v1145, %v1141
      %v1147 = vrot.slane %v1146, 4
      %v1149 = vshll.u32 %v860, 16
      %v1151 = vrot.slane %v1149, 5
      %v1152 = vsel %vm249, %v1147, %v1151
      %v1154 = vshrl.u32 %v841, 16
      %v1156 = vrot.slane %v1154, 4
      %v1157 = vshll.u32 %v841, 16
      %v1159 = vrot.slane %v1157, 5
      %v1160 = vor.u32 %v1156, %v1159
      %v1161 = vrot.slane %v1160, 4
      %v1163 = vshll.u32 %v842, 16
      %v1165 = vrot.slane %v1163, 5
      %v1166 = vsel %vm249, %v1161, %v1165
      %v1167 = vshrl.u32 %v842, 16
      %v1169 = vrot.slane %v1167, 4
      %v1170 = vor.u32 %v1169, %v1165
      %v1171 = vrot.slane %v1170, 4
      %v1173 = vshll.u32 %v861, 16
      %v1175 = vrot.slane %v1173, 5
      %v1176 = vsel %vm249, %v1171, %v1175
      %v1178 = vshrl.u32 %v843, 16
      %v1180 = vrot.slane %v1178, 4
      %v1181 = vshll.u32 %v843, 16
      %v1183 = vrot.slane %v1181, 5
      %v1184 = vor.u32 %v1180, %v1183
      %v1185 = vrot.slane %v1184, 4
      %v1187 = vshll.u32 %v844, 16
      %v1189 = vrot.slane %v1187, 5
      %v1190 = vsel %vm249, %v1185, %v1189
      %v1191 = vshrl.u32 %v844, 16
      %v1193 = vrot.slane %v1191, 4
      %v1194 = vor.u32 %v1193, %v1189
      %v1195 = vrot.slane %v1194, 4
      %v1197 = vshll.u32 %v862, 16
      %v1199 = vrot.slane %v1197, 5
      %v1200 = vsel %vm249, %v1195, %v1199
      %v1202 = vshrl.u32 %v845, 16
      %v1204 = vrot.slane %v1202, 4
      %v1205 = vshll.u32 %v845, 16
      %v1207 = vrot.slane %v1205, 5
      %v1208 = vor.u32 %v1204, %v1207
      %v1209 = vrot.slane %v1208, 4
      %v1211 = vshll.u32 %v846, 16
      %v1213 = vrot.slane %v1211, 5
      %v1214 = vsel %vm249, %v1209, %v1213
      %v1215 = vshrl.u32 %v846, 16
      %v1217 = vrot.slane %v1215, 4
      %v1218 = vor.u32 %v1217, %v1213
      %v1219 = vrot.slane %v1218, 4
      %v1221 = vshll.u32 %v863, 16
      %v1223 = vrot.slane %v1221, 5
      %v1224 = vsel %vm249, %v1219, %v1223
      %v1226 = vshrl.u32 %v847, 16
      %v1228 = vrot.slane %v1226, 4
      %v1229 = vshll.u32 %v847, 16
      %v1231 = vrot.slane %v1229, 5
      %v1232 = vor.u32 %v1228, %v1231
      %v1233 = vrot.slane %v1232, 4
      %v1235 = vshll.u32 %v848, 16
      %v1237 = vrot.slane %v1235, 5
      %v1238 = vsel %vm249, %v1233, %v1237
      %v1239 = vshrl.u32 %v848, 16
      %v1241 = vrot.slane %v1239, 4
      %v1242 = vor.u32 %v1241, %v1237
      %v1243 = vrot.slane %v1242, 4
      %v1245 = vshll.u32 %v864, 16
      %v1247 = vrot.slane %v1245, 5
      %v1248 = vsel %vm249, %v1243, %v1247
      %v1249 = vld [vmem:[%s816] sm:$0xe]
      %v1250 = vld [vmem:[%s816 + $0xc] sm:$0xe]
      %v1251 = vld [vmem:[%s816 + $0x18] sm:$0xe]
      %v1252 = vld [vmem:[%s816 + $0x24] sm:$0xe]
      %v1253 = vld [vmem:[%s816 + $0x30] sm:$0xe]
      %v1254 = vld [vmem:[%s816 + $0x3c] sm:$0xe]
      %v1255 = vld [vmem:[%s816 + $0x48] sm:$0xe]
      %v1256 = vld [vmem:[%s816 + $0x54] sm:$0xe]
      %v1257 = vld [vmem:[%s816 + $0x60] sm:$0xe]
      %v1258 = vld [vmem:[%s816 + $0x6c] sm:$0xe]
      %v1259 = vld [vmem:[%s816 + $0x78] sm:$0xe]
      %v1260 = vld [vmem:[%s816 + $0x84] sm:$0xe]
      %v1261 = vld [vmem:[%s816 + $0x90] sm:$0xe]
      %v1262 = vld [vmem:[%s816 + $0x9c] sm:$0xe]
      %v1263 = vld [vmem:[%s816 + $0xa8] sm:$0xe]
      %v1264 = vld [vmem:[%s816 + $0xb4] sm:$0xe]
      %v1313 = vrot.slane %v1249, 5
      %v1314 = vrot.slane %v1313, 4
      %v1315 = vrot.slane %v818, 5
      %v1316 = vsel %vm700, %v1314, %v1315
      %v1317 = vrot.slane %v1315, 4
      %v1318 = vrot.slane %v849, 5
      %v1319 = vsel %vm700, %v1317, %v1318
      %v1320 = vrot.slane %v1250, 5
      %v1321 = vrot.slane %v1320, 4
      %v1322 = vrot.slane %v820, 5
      %v1323 = vsel %vm700, %v1321, %v1322
      %v1324 = vrot.slane %v1322, 4
      %v1325 = vrot.slane %v850, 5
      %v1326 = vsel %vm700, %v1324, %v1325
      %v1327 = vrot.slane %v1251, 5
      %v1328 = vrot.slane %v1327, 4
      %v1329 = vrot.slane %v822, 5
      %v1330 = vsel %vm700, %v1328, %v1329
      %v1331 = vrot.slane %v1329, 4
      %v1332 = vrot.slane %v851, 5
      %v1333 = vsel %vm700, %v1331, %v1332
      %v1334 = vrot.slane %v1252, 5
      %v1335 = vrot.slane %v1334, 4
      %v1336 = vrot.slane %v824, 5
      %v1337 = vsel %vm700, %v1335, %v1336
      %v1338 = vrot.slane %v1336, 4
      %v1339 = vrot.slane %v852, 5
      %v1340 = vsel %vm700, %v1338, %v1339
      %v1341 = vrot.slane %v1253, 5
      %v1342 = vrot.slane %v1341, 4
      %v1343 = vrot.slane %v826, 5
      %v1344 = vsel %vm700, %v1342, %v1343
      %v1345 = vrot.slane %v1343, 4
      %v1346 = vrot.slane %v853, 5
      %v1347 = vsel %vm700, %v1345, %v1346
      %v1348 = vrot.slane %v1254, 5
      %v1349 = vrot.slane %v1348, 4
      %v1350 = vrot.slane %v828, 5
      %v1351 = vsel %vm700, %v1349, %v1350
      %v1352 = vrot.slane %v1350, 4
      %v1353 = vrot.slane %v854, 5
      %v1354 = vsel %vm700, %v1352, %v1353
      %v1355 = vrot.slane %v1255, 5
      %v1356 = vrot.slane %v1355, 4
      %v1357 = vrot.slane %v830, 5
      %v1358 = vsel %vm700, %v1356, %v1357
      %v1359 = vrot.slane %v1357, 4
      %v1360 = vrot.slane %v855, 5
      %v1361 = vsel %vm700, %v1359, %v1360
      %v1362 = vrot.slane %v1256, 5
      %v1363 = vrot.slane %v1362, 4
      %v1364 = vrot.slane %v832, 5
      %v1365 = vsel %vm700, %v1363, %v1364
      %v1366 = vrot.slane %v1364, 4
      %v1367 = vrot.slane %v856, 5
      %v1368 = vsel %vm700, %v1366, %v1367
      %v1369 = vrot.slane %v1257, 5
      %v1370 = vrot.slane %v1369, 4
      %v1371 = vrot.slane %v834, 5
      %v1372 = vsel %vm700, %v1370, %v1371
      %v1373 = vrot.slane %v1371, 4
      %v1374 = vrot.slane %v857, 5
      %v1375 = vsel %vm700, %v1373, %v1374
      %v1376 = vrot.slane %v1258, 5
      %v1377 = vrot.slane %v1376, 4
      %v1378 = vrot.slane %v836, 5
      %v1379 = vsel %vm700, %v1377, %v1378
      %v1380 = vrot.slane %v1378, 4
      %v1381 = vrot.slane %v858, 5
      %v1382 = vsel %vm700, %v1380, %v1381
      %v1383 = vrot.slane %v1259, 5
      %v1384 = vrot.slane %v1383, 4
      %v1385 = vrot.slane %v838, 5
      %v1386 = vsel %vm700, %v1384, %v1385
      %v1387 = vrot.slane %v1385, 4
      %v1388 = vrot.slane %v859, 5
      %v1389 = vsel %vm700, %v1387, %v1388
      %v1390 = vrot.slane %v1260, 5
      %v1391 = vrot.slane %v1390, 4
      %v1392 = vrot.slane %v840, 5
      %v1393 = vsel %vm700, %v1391, %v1392
      %v1394 = vrot.slane %v1392, 4
      %v1395 = vrot.slane %v860, 5
      %v1396 = vsel %vm700, %v1394, %v1395
      %v1397 = vrot.slane %v1261, 5
      %v1398 = vrot.slane %v1397, 4
      %v1399 = vrot.slane %v842, 5
      %v1400 = vsel %vm700, %v1398, %v1399
      %v1401 = vrot.slane %v1399, 4
      %v1402 = vrot.slane %v861, 5
      %v1403 = vsel %vm700, %v1401, %v1402
      %v1404 = vrot.slane %v1262, 5
      %v1405 = vrot.slane %v1404, 4
      %v1406 = vrot.slane %v844, 5
      %v1407 = vsel %vm700, %v1405, %v1406
      %v1408 = vrot.slane %v1406, 4
      %v1409 = vrot.slane %v862, 5
      %v1410 = vsel %vm700, %v1408, %v1409
      %v1411 = vrot.slane %v1263, 5
      %v1412 = vrot.slane %v1411, 4
      %v1413 = vrot.slane %v846, 5
      %v1414 = vsel %vm700, %v1412, %v1413
      %v1415 = vrot.slane %v1413, 4
      %v1416 = vrot.slane %v863, 5
      %v1417 = vsel %vm700, %v1415, %v1416
      %v1418 = vrot.slane %v1264, 5
      %v1419 = vrot.slane %v1418, 4
      %v1420 = vrot.slane %v848, 5
      %v1421 = vsel %vm700, %v1419, %v1420
      %v1422 = vrot.slane %v1420, 4
      %v1423 = vrot.slane %v864, 5
      %v1424 = vsel %vm700, %v1422, %v1423
      %s1425 = sadd.s32 %s195, 2
      %s1426 = smul.u32 %s1425, 3
      %s1427 = smul.addr %s1426, 4
      %s1428 = scalar_lea.vmem %s183, %s1427
      %v1429 = vld [vmem:[%s1428] sm:$0xf]
      %v1430 = vld [vmem:[%s1428 + $0x4] sm:$0xf]
      %v1431 = vld [vmem:[%s1428 + $0xc] sm:$0xf]
      %v1432 = vld [vmem:[%s1428 + $0x10] sm:$0xf]
      %v1433 = vld [vmem:[%s1428 + $0x18] sm:$0xf]
      %v1434 = vld [vmem:[%s1428 + $0x1c] sm:$0xf]
      %v1435 = vld [vmem:[%s1428 + $0x24] sm:$0xf]
      %v1436 = vld [vmem:[%s1428 + $0x28] sm:$0xf]
      %v1437 = vld [vmem:[%s1428 + $0x30] sm:$0xf]
      %v1438 = vld [vmem:[%s1428 + $0x34] sm:$0xf]
      %v1439 = vld [vmem:[%s1428 + $0x3c] sm:$0xf]
      %v1440 = vld [vmem:[%s1428 + $0x40] sm:$0xf]
      %v1441 = vld [vmem:[%s1428 + $0x48] sm:$0xf]
      %v1442 = vld [vmem:[%s1428 + $0x4c] sm:$0xf]
      %v1443 = vld [vmem:[%s1428 + $0x54] sm:$0xf]
      %v1444 = vld [vmem:[%s1428 + $0x58] sm:$0xf]
      %v1445 = vld [vmem:[%s1428 + $0x60] sm:$0xf]
      %v1446 = vld [vmem:[%s1428 + $0x64] sm:$0xf]
      %v1447 = vld [vmem:[%s1428 + $0x6c] sm:$0xf]
      %v1448 = vld [vmem:[%s1428 + $0x70] sm:$0xf]
      %v1449 = vld [vmem:[%s1428 + $0x78] sm:$0xf]
      %v1450 = vld [vmem:[%s1428 + $0x7c] sm:$0xf]
      %v1451 = vld [vmem:[%s1428 + $0x84] sm:$0xf]
      %v1452 = vld [vmem:[%s1428 + $0x88] sm:$0xf]
      %v1453 = vld [vmem:[%s1428 + $0x90] sm:$0xf]
      %v1454 = vld [vmem:[%s1428 + $0x94] sm:$0xf]
      %v1455 = vld [vmem:[%s1428 + $0x9c] sm:$0xf]
      %v1456 = vld [vmem:[%s1428 + $0xa0] sm:$0xf]
      %v1457 = vld [vmem:[%s1428 + $0xa8] sm:$0xf]
      %v1458 = vld [vmem:[%s1428 + $0xac] sm:$0xf]
      %v1459 = vld [vmem:[%s1428 + $0xb4] sm:$0xf]
      %v1460 = vld [vmem:[%s1428 + $0xb8] sm:$0xf]
      %v1461 = vld [vmem:[%s1428 + $0x8] sm:$0x1]
      %v1462 = vld [vmem:[%s1428 + $0x14] sm:$0x1]
      %v1463 = vld [vmem:[%s1428 + $0x20] sm:$0x1]
      %v1464 = vld [vmem:[%s1428 + $0x2c] sm:$0x1]
      %v1465 = vld [vmem:[%s1428 + $0x38] sm:$0x1]
      %v1466 = vld [vmem:[%s1428 + $0x44] sm:$0x1]
      %v1467 = vld [vmem:[%s1428 + $0x50] sm:$0x1]
      %v1468 = vld [vmem:[%s1428 + $0x5c] sm:$0x1]
      %v1469 = vld [vmem:[%s1428 + $0x68] sm:$0x1]
      %v1470 = vld [vmem:[%s1428 + $0x74] sm:$0x1]
      %v1471 = vld [vmem:[%s1428 + $0x80] sm:$0x1]
      %v1472 = vld [vmem:[%s1428 + $0x8c] sm:$0x1]
      %v1473 = vld [vmem:[%s1428 + $0x98] sm:$0x1]
      %v1474 = vld [vmem:[%s1428 + $0xa4] sm:$0x1]
      %v1475 = vld [vmem:[%s1428 + $0xb0] sm:$0x1]
      %v1476 = vld [vmem:[%s1428 + $0xbc] sm:$0x1]
      %v1478 = vshrl.u32 %v1429, 16
      %v1480 = vrot.slane %v1478, 4
      %v1481 = vshll.u32 %v1429, 16
      %v1483 = vrot.slane %v1481, 5
      %v1484 = vor.u32 %v1480, %v1483
      %v1485 = vrot.slane %v1484, 4
      %v1487 = vshll.u32 %v1430, 16
      %v1489 = vrot.slane %v1487, 5
      %v1490 = vsel %vm249, %v1485, %v1489
      %v1491 = vshrl.u32 %v1430, 16
      %v1493 = vrot.slane %v1491, 4
      %v1494 = vor.u32 %v1493, %v1489
      %v1495 = vrot.slane %v1494, 4
      %v1497 = vshll.u32 %v1461, 16
      %v1499 = vrot.slane %v1497, 5
      %v1500 = vsel %vm249, %v1495, %v1499
      %v1502 = vshrl.u32 %v1431, 16
      %v1504 = vrot.slane %v1502, 4
      %v1505 = vshll.u32 %v1431, 16
      %v1507 = vrot.slane %v1505, 5
      %v1508 = vor.u32 %v1504, %v1507
      %v1509 = vrot.slane %v1508, 4
      %v1511 = vshll.u32 %v1432, 16
      %v1513 = vrot.slane %v1511, 5
      %v1514 = vsel %vm249, %v1509, %v1513
      %v1515 = vshrl.u32 %v1432, 16
      %v1517 = vrot.slane %v1515, 4
      %v1518 = vor.u32 %v1517, %v1513
      %v1519 = vrot.slane %v1518, 4
      %v1521 = vshll.u32 %v1462, 16
      %v1523 = vrot.slane %v1521, 5
      %v1524 = vsel %vm249, %v1519, %v1523
      %v1526 = vshrl.u32 %v1433, 16
      %v1528 = vrot.slane %v1526, 4
      %v1529 = vshll.u32 %v1433, 16
      %v1531 = vrot.slane %v1529, 5
      %v1532 = vor.u32 %v1528, %v1531
      %v1533 = vrot.slane %v1532, 4
      %v1535 = vshll.u32 %v1434, 16
      %v1537 = vrot.slane %v1535, 5
      %v1538 = vsel %vm249, %v1533, %v1537
      %v1539 = vshrl.u32 %v1434, 16
      %v1541 = vrot.slane %v1539, 4
      %v1542 = vor.u32 %v1541, %v1537
      %v1543 = vrot.slane %v1542, 4
      %v1545 = vshll.u32 %v1463, 16
      %v1547 = vrot.slane %v1545, 5
      %v1548 = vsel %vm249, %v1543, %v1547
      %v1550 = vshrl.u32 %v1435, 16
      %v1552 = vrot.slane %v1550, 4
      %v1553 = vshll.u32 %v1435, 16
      %v1555 = vrot.slane %v1553, 5
      %v1556 = vor.u32 %v1552, %v1555
      %v1557 = vrot.slane %v1556, 4
      %v1559 = vshll.u32 %v1436, 16
      %v1561 = vrot.slane %v1559, 5
      %v1562 = vsel %vm249, %v1557, %v1561
      %v1563 = vshrl.u32 %v1436, 16
      %v1565 = vrot.slane %v1563, 4
      %v1566 = vor.u32 %v1565, %v1561
      %v1567 = vrot.slane %v1566, 4
      %v1569 = vshll.u32 %v1464, 16
      %v1571 = vrot.slane %v1569, 5
      %v1572 = vsel %vm249, %v1567, %v1571
      %v1574 = vshrl.u32 %v1437, 16
      %v1576 = vrot.slane %v1574, 4
      %v1577 = vshll.u32 %v1437, 16
      %v1579 = vrot.slane %v1577, 5
      %v1580 = vor.u32 %v1576, %v1579
      %v1581 = vrot.slane %v1580, 4
      %v1583 = vshll.u32 %v1438, 16
      %v1585 = vrot.slane %v1583, 5
      %v1586 = vsel %vm249, %v1581, %v1585
      %v1587 = vshrl.u32 %v1438, 16
      %v1589 = vrot.slane %v1587, 4
      %v1590 = vor.u32 %v1589, %v1585
      %v1591 = vrot.slane %v1590, 4
      %v1593 = vshll.u32 %v1465, 16
      %v1595 = vrot.slane %v1593, 5
      %v1596 = vsel %vm249, %v1591, %v1595
      %v1598 = vshrl.u32 %v1439, 16
      %v1600 = vrot.slane %v1598, 4
      %v1601 = vshll.u32 %v1439, 16
      %v1603 = vrot.slane %v1601, 5
      %v1604 = vor.u32 %v1600, %v1603
      %v1605 = vrot.slane %v1604, 4
      %v1607 = vshll.u32 %v1440, 16
      %v1609 = vrot.slane %v1607, 5
      %v1610 = vsel %vm249, %v1605, %v1609
      %v1611 = vshrl.u32 %v1440, 16
      %v1613 = vrot.slane %v1611, 4
      %v1614 = vor.u32 %v1613, %v1609
      %v1615 = vrot.slane %v1614, 4
      %v1617 = vshll.u32 %v1466, 16
      %v1619 = vrot.slane %v1617, 5
      %v1620 = vsel %vm249, %v1615, %v1619
      %v1622 = vshrl.u32 %v1441, 16
      %v1624 = vrot.slane %v1622, 4
      %v1625 = vshll.u32 %v1441, 16
      %v1627 = vrot.slane %v1625, 5
      %v1628 = vor.u32 %v1624, %v1627
      %v1629 = vrot.slane %v1628, 4
      %v1631 = vshll.u32 %v1442, 16
      %v1633 = vrot.slane %v1631, 5
      %v1634 = vsel %vm249, %v1629, %v1633
      %v1635 = vshrl.u32 %v1442, 16
      %v1637 = vrot.slane %v1635, 4
      %v1638 = vor.u32 %v1637, %v1633
      %v1639 = vrot.slane %v1638, 4
      %v1641 = vshll.u32 %v1467, 16
      %v1643 = vrot.slane %v1641, 5
      %v1644 = vsel %vm249, %v1639, %v1643
      %v1646 = vshrl.u32 %v1443, 16
      %v1648 = vrot.slane %v1646, 4
      %v1649 = vshll.u32 %v1443, 16
      %v1651 = vrot.slane %v1649, 5
      %v1652 = vor.u32 %v1648, %v1651
      %v1653 = vrot.slane %v1652, 4
      %v1655 = vshll.u32 %v1444, 16
      %v1657 = vrot.slane %v1655, 5
      %v1658 = vsel %vm249, %v1653, %v1657
      %v1659 = vshrl.u32 %v1444, 16
      %v1661 = vrot.slane %v1659, 4
      %v1662 = vor.u32 %v1661, %v1657
      %v1663 = vrot.slane %v1662, 4
      %v1665 = vshll.u32 %v1468, 16
      %v1667 = vrot.slane %v1665, 5
      %v1668 = vsel %vm249, %v1663, %v1667
      %v1670 = vshrl.u32 %v1445, 16
      %v1672 = vrot.slane %v1670, 4
      %v1673 = vshll.u32 %v1445, 16
      %v1675 = vrot.slane %v1673, 5
      %v1676 = vor.u32 %v1672, %v1675
      %v1677 = vrot.slane %v1676, 4
      %v1679 = vshll.u32 %v1446, 16
      %v1681 = vrot.slane %v1679, 5
      %v1682 = vsel %vm249, %v1677, %v1681
      %v1683 = vshrl.u32 %v1446, 16
      %v1685 = vrot.slane %v1683, 4
      %v1686 = vor.u32 %v1685, %v1681
      %v1687 = vrot.slane %v1686, 4
      %v1689 = vshll.u32 %v1469, 16
      %v1691 = vrot.slane %v1689, 5
      %v1692 = vsel %vm249, %v1687, %v1691
      %v1694 = vshrl.u32 %v1447, 16
      %v1696 = vrot.slane %v1694, 4
      %v1697 = vshll.u32 %v1447, 16
      %v1699 = vrot.slane %v1697, 5
      %v1700 = vor.u32 %v1696, %v1699
      %v1701 = vrot.slane %v1700, 4
      %v1703 = vshll.u32 %v1448, 16
      %v1705 = vrot.slane %v1703, 5
      %v1706 = vsel %vm249, %v1701, %v1705
      %v1707 = vshrl.u32 %v1448, 16
      %v1709 = vrot.slane %v1707, 4
      %v1710 = vor.u32 %v1709, %v1705
      %v1711 = vrot.slane %v1710, 4
      %v1713 = vshll.u32 %v1470, 16
      %v1715 = vrot.slane %v1713, 5
      %v1716 = vsel %vm249, %v1711, %v1715
      %v1718 = vshrl.u32 %v1449, 16
      %v1720 = vrot.slane %v1718, 4
      %v1721 = vshll.u32 %v1449, 16
      %v1723 = vrot.slane %v1721, 5
      %v1724 = vor.u32 %v1720, %v1723
      %v1725 = vrot.slane %v1724, 4
      %v1727 = vshll.u32 %v1450, 16
      %v1729 = vrot.slane %v1727, 5
      %v1730 = vsel %vm249, %v1725, %v1729
      %v1731 = vshrl.u32 %v1450, 16
      %v1733 = vrot.slane %v1731, 4
      %v1734 = vor.u32 %v1733, %v1729
      %v1735 = vrot.slane %v1734, 4
      %v1737 = vshll.u32 %v1471, 16
      %v1739 = vrot.slane %v1737, 5
      %v1740 = vsel %vm249, %v1735, %v1739
      %v1742 = vshrl.u32 %v1451, 16
      %v1744 = vrot.slane %v1742, 4
      %v1745 = vshll.u32 %v1451, 16
      %v1747 = vrot.slane %v1745, 5
      %v1748 = vor.u32 %v1744, %v1747
      %v1749 = vrot.slane %v1748, 4
      %v1751 = vshll.u32 %v1452, 16
      %v1753 = vrot.slane %v1751, 5
      %v1754 = vsel %vm249, %v1749, %v1753
      %v1755 = vshrl.u32 %v1452, 16
      %v1757 = vrot.slane %v1755, 4
      %v1758 = vor.u32 %v1757, %v1753
      %v1759 = vrot.slane %v1758, 4
      %v1761 = vshll.u32 %v1472, 16
      %v1763 = vrot.slane %v1761, 5
      %v1764 = vsel %vm249, %v1759, %v1763
      %v1766 = vshrl.u32 %v1453, 16
      %v1768 = vrot.slane %v1766, 4
      %v1769 = vshll.u32 %v1453, 16
      %v1771 = vrot.slane %v1769, 5
      %v1772 = vor.u32 %v1768, %v1771
      %v1773 = vrot.slane %v1772, 4
      %v1775 = vshll.u32 %v1454, 16
      %v1777 = vrot.slane %v1775, 5
      %v1778 = vsel %vm249, %v1773, %v1777
      %v1779 = vshrl.u32 %v1454, 16
      %v1781 = vrot.slane %v1779, 4
      %v1782 = vor.u32 %v1781, %v1777
      %v1783 = vrot.slane %v1782, 4
      %v1785 = vshll.u32 %v1473, 16
      %v1787 = vrot.slane %v1785, 5
      %v1788 = vsel %vm249, %v1783, %v1787
      %v1790 = vshrl.u32 %v1455, 16
      %v1792 = vrot.slane %v1790, 4
      %v1793 = vshll.u32 %v1455, 16
      %v1795 = vrot.slane %v1793, 5
      %v1796 = vor.u32 %v1792, %v1795
      %v1797 = vrot.slane %v1796, 4
      %v1799 = vshll.u32 %v1456, 16
      %v1801 = vrot.slane %v1799, 5
      %v1802 = vsel %vm249, %v1797, %v1801
      %v1803 = vshrl.u32 %v1456, 16
      %v1805 = vrot.slane %v1803, 4
      %v1806 = vor.u32 %v1805, %v1801
      %v1807 = vrot.slane %v1806, 4
      %v1809 = vshll.u32 %v1474, 16
      %v1811 = vrot.slane %v1809, 5
      %v1812 = vsel %vm249, %v1807, %v1811
      %v1814 = vshrl.u32 %v1457, 16
      %v1816 = vrot.slane %v1814, 4
      %v1817 = vshll.u32 %v1457, 16
      %v1819 = vrot.slane %v1817, 5
      %v1820 = vor.u32 %v1816, %v1819
      %v1821 = vrot.slane %v1820, 4
      %v1823 = vshll.u32 %v1458, 16
      %v1825 = vrot.slane %v1823, 5
      %v1826 = vsel %vm249, %v1821, %v1825
      %v1827 = vshrl.u32 %v1458, 16
      %v1829 = vrot.slane %v1827, 4
      %v1830 = vor.u32 %v1829, %v1825
      %v1831 = vrot.slane %v1830, 4
      %v1833 = vshll.u32 %v1475, 16
      %v1835 = vrot.slane %v1833, 5
      %v1836 = vsel %vm249, %v1831, %v1835
      %v1838 = vshrl.u32 %v1459, 16
      %v1840 = vrot.slane %v1838, 4
      %v1841 = vshll.u32 %v1459, 16
      %v1843 = vrot.slane %v1841, 5
      %v1844 = vor.u32 %v1840, %v1843
      %v1845 = vrot.slane %v1844, 4
      %v1847 = vshll.u32 %v1460, 16
      %v1849 = vrot.slane %v1847, 5
      %v1850 = vsel %vm249, %v1845, %v1849
      %v1851 = vshrl.u32 %v1460, 16
      %v1853 = vrot.slane %v1851, 4
      %v1854 = vor.u32 %v1853, %v1849
      %v1855 = vrot.slane %v1854, 4
      %v1857 = vshll.u32 %v1476, 16
      %v1859 = vrot.slane %v1857, 5
      %v1860 = vsel %vm249, %v1855, %v1859
      %v1861 = vld [vmem:[%s1428] sm:$0xe]
      %v1862 = vld [vmem:[%s1428 + $0xc] sm:$0xe]
      %v1863 = vld [vmem:[%s1428 + $0x18] sm:$0xe]
      %v1864 = vld [vmem:[%s1428 + $0x24] sm:$0xe]
      %v1865 = vld [vmem:[%s1428 + $0x30] sm:$0xe]
      %v1866 = vld [vmem:[%s1428 + $0x3c] sm:$0xe]
      %v1867 = vld [vmem:[%s1428 + $0x48] sm:$0xe]
      %v1868 = vld [vmem:[%s1428 + $0x54] sm:$0xe]
      %v1869 = vld [vmem:[%s1428 + $0x60] sm:$0xe]
      %v1870 = vld [vmem:[%s1428 + $0x6c] sm:$0xe]
      %v1871 = vld [vmem:[%s1428 + $0x78] sm:$0xe]
      %v1872 = vld [vmem:[%s1428 + $0x84] sm:$0xe]
      %v1873 = vld [vmem:[%s1428 + $0x90] sm:$0xe]
      %v1874 = vld [vmem:[%s1428 + $0x9c] sm:$0xe]
      %v1875 = vld [vmem:[%s1428 + $0xa8] sm:$0xe]
      %v1876 = vld [vmem:[%s1428 + $0xb4] sm:$0xe]
      %v1925 = vrot.slane %v1861, 5
      %v1926 = vrot.slane %v1925, 4
      %v1927 = vrot.slane %v1430, 5
      %v1928 = vsel %vm700, %v1926, %v1927
      %v1929 = vrot.slane %v1927, 4
      %v1930 = vrot.slane %v1461, 5
      %v1931 = vsel %vm700, %v1929, %v1930
      %v1932 = vrot.slane %v1862, 5
      %v1933 = vrot.slane %v1932, 4
      %v1934 = vrot.slane %v1432, 5
      %v1935 = vsel %vm700, %v1933, %v1934
      %v1936 = vrot.slane %v1934, 4
      %v1937 = vrot.slane %v1462, 5
      %v1938 = vsel %vm700, %v1936, %v1937
      %v1939 = vrot.slane %v1863, 5
      %v1940 = vrot.slane %v1939, 4
      %v1941 = vrot.slane %v1434, 5
      %v1942 = vsel %vm700, %v1940, %v1941
      %v1943 = vrot.slane %v1941, 4
      %v1944 = vrot.slane %v1463, 5
      %v1945 = vsel %vm700, %v1943, %v1944
      %v1946 = vrot.slane %v1864, 5
      %v1947 = vrot.slane %v1946, 4
      %v1948 = vrot.slane %v1436, 5
      %v1949 = vsel %vm700, %v1947, %v1948
      %v1950 = vrot.slane %v1948, 4
      %v1951 = vrot.slane %v1464, 5
      %v1952 = vsel %vm700, %v1950, %v1951
      %v1953 = vrot.slane %v1865, 5
      %v1954 = vrot.slane %v1953, 4
      %v1955 = vrot.slane %v1438, 5
      %v1956 = vsel %vm700, %v1954, %v1955
      %v1957 = vrot.slane %v1955, 4
      %v1958 = vrot.slane %v1465, 5
      %v1959 = vsel %vm700, %v1957, %v1958
      %v1960 = vrot.slane %v1866, 5
      %v1961 = vrot.slane %v1960, 4
      %v1962 = vrot.slane %v1440, 5
      %v1963 = vsel %vm700, %v1961, %v1962
      %v1964 = vrot.slane %v1962, 4
      %v1965 = vrot.slane %v1466, 5
      %v1966 = vsel %vm700, %v1964, %v1965
      %v1967 = vrot.slane %v1867, 5
      %v1968 = vrot.slane %v1967, 4
      %v1969 = vrot.slane %v1442, 5
      %v1970 = vsel %vm700, %v1968, %v1969
      %v1971 = vrot.slane %v1969, 4
      %v1972 = vrot.slane %v1467, 5
      %v1973 = vsel %vm700, %v1971, %v1972
      %v1974 = vrot.slane %v1868, 5
      %v1975 = vrot.slane %v1974, 4
      %v1976 = vrot.slane %v1444, 5
      %v1977 = vsel %vm700, %v1975, %v1976
      %v1978 = vrot.slane %v1976, 4
      %v1979 = vrot.slane %v1468, 5
      %v1980 = vsel %vm700, %v1978, %v1979
      %v1981 = vrot.slane %v1869, 5
      %v1982 = vrot.slane %v1981, 4
      %v1983 = vrot.slane %v1446, 5
      %v1984 = vsel %vm700, %v1982, %v1983
      %v1985 = vrot.slane %v1983, 4
      %v1986 = vrot.slane %v1469, 5
      %v1987 = vsel %vm700, %v1985, %v1986
      %v1988 = vrot.slane %v1870, 5
      %v1989 = vrot.slane %v1988, 4
      %v1990 = vrot.slane %v1448, 5
      %v1991 = vsel %vm700, %v1989, %v1990
      %v1992 = vrot.slane %v1990, 4
      %v1993 = vrot.slane %v1470, 5
      %v1994 = vsel %vm700, %v1992, %v1993
      %v1995 = vrot.slane %v1871, 5
      %v1996 = vrot.slane %v1995, 4
      %v1997 = vrot.slane %v1450, 5
      %v1998 = vsel %vm700, %v1996, %v1997
      %v1999 = vrot.slane %v1997, 4
      %v2000 = vrot.slane %v1471, 5
      %v2001 = vsel %vm700, %v1999, %v2000
      %v2002 = vrot.slane %v1872, 5
      %v2003 = vrot.slane %v2002, 4
      %v2004 = vrot.slane %v1452, 5
      %v2005 = vsel %vm700, %v2003, %v2004
      %v2006 = vrot.slane %v2004, 4
      %v2007 = vrot.slane %v1472, 5
      %v2008 = vsel %vm700, %v2006, %v2007
      %v2009 = vrot.slane %v1873, 5
      %v2010 = vrot.slane %v2009, 4
      %v2011 = vrot.slane %v1454, 5
      %v2012 = vsel %vm700, %v2010, %v2011
      %v2013 = vrot.slane %v2011, 4
      %v2014 = vrot.slane %v1473, 5
      %v2015 = vsel %vm700, %v2013, %v2014
      %v2016 = vrot.slane %v1874, 5
      %v2017 = vrot.slane %v2016, 4
      %v2018 = vrot.slane %v1456, 5
      %v2019 = vsel %vm700, %v2017, %v2018
      %v2020 = vrot.slane %v2018, 4
      %v2021 = vrot.slane %v1474, 5
      %v2022 = vsel %vm700, %v2020, %v2021
      %v2023 = vrot.slane %v1875, 5
      %v2024 = vrot.slane %v2023, 4
      %v2025 = vrot.slane %v1458, 5
      %v2026 = vsel %vm700, %v2024, %v2025
      %v2027 = vrot.slane %v2025, 4
      %v2028 = vrot.slane %v1475, 5
      %v2029 = vsel %vm700, %v2027, %v2028
      %v2030 = vrot.slane %v1876, 5
      %v2031 = vrot.slane %v2030, 4
      %v2032 = vrot.slane %v1460, 5
      %v2033 = vsel %vm700, %v2031, %v2032
      %v2034 = vrot.slane %v2032, 4
      %v2035 = vrot.slane %v1476, 5
      %v2036 = vsel %vm700, %v2034, %v2035
      %v2053 = vunpack.c.l.b16 %v199
      %v2054 = vunpack.c.l.b16 %v200
      %v2055 = vunpack.c.l.b16 %v201
      %v2056 = vunpack.c.l.b16 %v202
      %v2057 = vunpack.c.l.b16 %v203
      %v2058 = vunpack.c.l.b16 %v204
      %v2059 = vunpack.c.l.b16 %v205
      %v2060 = vunpack.c.l.b16 %v206
      %v2061 = vunpack.c.l.b16 %v207
      %v2062 = vunpack.c.l.b16 %v208
      %v2063 = vunpack.c.l.b16 %v209
      %v2064 = vunpack.c.l.b16 %v210
      %v2065 = vunpack.c.l.b16 %v211
      %v2066 = vunpack.c.l.b16 %v212
      %v2067 = vunpack.c.l.b16 %v213
      %v2068 = vunpack.c.l.b16 %v214
      %v2069 = vunpack.c.l.b16 %v215
      %v2070 = vunpack.c.l.b16 %v216
      %v2071 = vunpack.c.l.b16 %v217
      %v2072 = vunpack.c.l.b16 %v218
      %v2073 = vunpack.c.l.b16 %v219
      %v2074 = vunpack.c.l.b16 %v220
      %v2075 = vunpack.c.l.b16 %v221
      %v2076 = vunpack.c.l.b16 %v222
      %v2077 = vunpack.c.l.b16 %v223
      %v2078 = vunpack.c.l.b16 %v224
      %v2079 = vunpack.c.l.b16 %v225
      %v2080 = vunpack.c.l.b16 %v226
      %v2081 = vunpack.c.l.b16 %v227
      %v2082 = vunpack.c.l.b16 %v228
      %v2083 = vunpack.c.l.b16 %v229
      %v2084 = vunpack.c.l.b16 %v230
      %v2085 = vpack.c.b16 %v2054, %v2053
      %v2086 = vpack.c.b16 %v2056, %v2055
      %v2087 = vpack.c.b16 %v2058, %v2057
      %v2088 = vpack.c.b16 %v2060, %v2059
      %v2089 = vpack.c.b16 %v2062, %v2061
      %v2090 = vpack.c.b16 %v2064, %v2063
      %v2091 = vpack.c.b16 %v2066, %v2065
      %v2092 = vpack.c.b16 %v2068, %v2067
      %v2093 = vpack.c.b16 %v2070, %v2069
      %v2094 = vpack.c.b16 %v2072, %v2071
      %v2095 = vpack.c.b16 %v2074, %v2073
      %v2096 = vpack.c.b16 %v2076, %v2075
      %v2097 = vpack.c.b16 %v2078, %v2077
      %v2098 = vpack.c.b16 %v2080, %v2079
      %v2099 = vpack.c.b16 %v2082, %v2081
      %v2100 = vpack.c.b16 %v2084, %v2083
      %vm2117 = vcmask 31744
      %2118 = vst.msk [vmem:[#allocation2] sm:$0xff] %vm2117, %v2085
      %2119 = vst.msk [vmem:[#allocation2 + $0x8] sm:$0xff] %vm2117, %v2086
      %2120 = vst.msk [vmem:[#allocation2 + $0x10] sm:$0xff] %vm2117, %v2087
      %2121 = vst.msk [vmem:[#allocation2 + $0x18] sm:$0xff] %vm2117, %v2088
      %2122 = vst.msk [vmem:[#allocation2 + $0x20] sm:$0xff] %vm2117, %v2089
      %2123 = vst.msk [vmem:[#allocation2 + $0x28] sm:$0xff] %vm2117, %v2090
      %2124 = vst.msk [vmem:[#allocation2 + $0x30] sm:$0xff] %vm2117, %v2091
      %2125 = vst.msk [vmem:[#allocation2 + $0x38] sm:$0xff] %vm2117, %v2092
      %2126 = vst.msk [vmem:[#allocation2 + $0x40] sm:$0xff] %vm2117, %v2093
      %2127 = vst.msk [vmem:[#allocation2 + $0x48] sm:$0xff] %vm2117, %v2094
      %2128 = vst.msk [vmem:[#allocation2 + $0x50] sm:$0xff] %vm2117, %v2095
      %2129 = vst.msk [vmem:[#allocation2 + $0x58] sm:$0xff] %vm2117, %v2096
      %2130 = vst.msk [vmem:[#allocation2 + $0x60] sm:$0xff] %vm2117, %v2097
      %2131 = vst.msk [vmem:[#allocation2 + $0x68] sm:$0xff] %vm2117, %v2098
      %2132 = vst.msk [vmem:[#allocation2 + $0x70] sm:$0xff] %vm2117, %v2099
      %2133 = vst.msk [vmem:[#allocation2 + $0x78] sm:$0xff] %vm2117, %v2100
      %v2134 = vunpack.c.l.b16 %v263
      %v2135 = vunpack.c.l.b16 %v273
      %v2136 = vunpack.c.l.b16 %v287
      %v2137 = vunpack.c.l.b16 %v297
      %v2138 = vunpack.c.l.b16 %v311
      %v2139 = vunpack.c.l.b16 %v321
      %v2140 = vunpack.c.l.b16 %v335
      %v2141 = vunpack.c.l.b16 %v345
      %v2142 = vunpack.c.l.b16 %v359
      %v2143 = vunpack.c.l.b16 %v369
      %v2144 = vunpack.c.l.b16 %v383
      %v2145 = vunpack.c.l.b16 %v393
      %v2146 = vunpack.c.l.b16 %v407
      %v2147 = vunpack.c.l.b16 %v417
      %v2148 = vunpack.c.l.b16 %v431
      %v2149 = vunpack.c.l.b16 %v441
      %v2150 = vunpack.c.l.b16 %v455
      %v2151 = vunpack.c.l.b16 %v465
      %v2152 = vunpack.c.l.b16 %v479
      %v2153 = vunpack.c.l.b16 %v489
      %v2154 = vunpack.c.l.b16 %v503
      %v2155 = vunpack.c.l.b16 %v513
      %v2156 = vunpack.c.l.b16 %v527
      %v2157 = vunpack.c.l.b16 %v537
      %v2158 = vunpack.c.l.b16 %v551
      %v2159 = vunpack.c.l.b16 %v561
      %v2160 = vunpack.c.l.b16 %v575
      %v2161 = vunpack.c.l.b16 %v585
      %v2162 = vunpack.c.l.b16 %v599
      %v2163 = vunpack.c.l.b16 %v609
      %v2164 = vunpack.c.l.b16 %v623
      %v2165 = vunpack.c.l.b16 %v633
      %v2166 = vpack.c.b16 %v2135, %v2134
      %v2167 = vpack.c.b16 %v2137, %v2136
      %v2168 = vpack.c.b16 %v2139, %v2138
      %v2169 = vpack.c.b16 %v2141, %v2140
      %v2170 = vpack.c.b16 %v2143, %v2142
      %v2171 = vpack.c.b16 %v2145, %v2144
      %v2172 = vpack.c.b16 %v2147, %v2146
      %v2173 = vpack.c.b16 %v2149, %v2148
      %v2174 = vpack.c.b16 %v2151, %v2150
      %v2175 = vpack.c.b16 %v2153, %v2152
      %v2176 = vpack.c.b16 %v2155, %v2154
      %v2177 = vpack.c.b16 %v2157, %v2156
      %v2178 = vpack.c.b16 %v2159, %v2158
      %v2179 = vpack.c.b16 %v2161, %v2160
      %v2180 = vpack.c.b16 %v2163, %v2162
      %v2181 = vpack.c.b16 %v2165, %v2164
      %2182 = vrot.lane.b32.xlu0 %v2166, 4
      %v2183 = vpop.permute.xlu0 %2182
      %2184 = vrot.lane.b32.xlu0 %v2167, 4
      %v2185 = vpop.permute.xlu0 %2184
      %2186 = vrot.lane.b32.xlu0 %v2168, 4
      %v2187 = vpop.permute.xlu0 %2186
      %2188 = vrot.lane.b32.xlu0 %v2169, 4
      %v2189 = vpop.permute.xlu0 %2188
      %2190 = vrot.lane.b32.xlu0 %v2170, 4
      %v2191 = vpop.permute.xlu0 %2190
      %2192 = vrot.lane.b32.xlu0 %v2171, 4
      %v2193 = vpop.permute.xlu0 %2192
      %2194 = vrot.lane.b32.xlu0 %v2172, 4
      %v2195 = vpop.permute.xlu0 %2194
      %2196 = vrot.lane.b32.xlu0 %v2173, 4
      %v2197 = vpop.permute.xlu0 %2196
      %2198 = vrot.lane.b32.xlu0 %v2174, 4
      %v2199 = vpop.permute.xlu0 %2198
      %2200 = vrot.lane.b32.xlu0 %v2175, 4
      %v2201 = vpop.permute.xlu0 %2200
      %2202 = vrot.lane.b32.xlu0 %v2176, 4
      %v2203 = vpop.permute.xlu0 %2202
      %2204 = vrot.lane.b32.xlu0 %v2177, 4
      %v2205 = vpop.permute.xlu0 %2204
      %2206 = vrot.lane.b32.xlu0 %v2178, 4
      %v2207 = vpop.permute.xlu0 %2206
      %2208 = vrot.lane.b32.xlu0 %v2179, 4
      %v2209 = vpop.permute.xlu0 %2208
      %2210 = vrot.lane.b32.xlu0 %v2180, 4
      %v2211 = vpop.permute.xlu0 %2210
      %2212 = vrot.lane.b32.xlu0 %v2181, 4
      %v2213 = vpop.permute.xlu0 %2212
      %vm2230 = vcmask 64544
      %2231 = vst.msk [vmem:[#allocation2] sm:$0xff] %vm2230, %v2183
      %2232 = vst.msk [vmem:[#allocation2 + $0x8] sm:$0xff] %vm2230, %v2185
      %2233 = vst.msk [vmem:[#allocation2 + $0x10] sm:$0xff] %vm2230, %v2187
      %2234 = vst.msk [vmem:[#allocation2 + $0x18] sm:$0xff] %vm2230, %v2189
      %2235 = vst.msk [vmem:[#allocation2 + $0x20] sm:$0xff] %vm2230, %v2191
      %2236 = vst.msk [vmem:[#allocation2 + $0x28] sm:$0xff] %vm2230, %v2193
      %2237 = vst.msk [vmem:[#allocation2 + $0x30] sm:$0xff] %vm2230, %v2195
      %2238 = vst.msk [vmem:[#allocation2 + $0x38] sm:$0xff] %vm2230, %v2197
      %2239 = vst.msk [vmem:[#allocation2 + $0x40] sm:$0xff] %vm2230, %v2199
      %2240 = vst.msk [vmem:[#allocation2 + $0x48] sm:$0xff] %vm2230, %v2201
      %2241 = vst.msk [vmem:[#allocation2 + $0x50] sm:$0xff] %vm2230, %v2203
      %2242 = vst.msk [vmem:[#allocation2 + $0x58] sm:$0xff] %vm2230, %v2205
      %2243 = vst.msk [vmem:[#allocation2 + $0x60] sm:$0xff] %vm2230, %v2207
      %2244 = vst.msk [vmem:[#allocation2 + $0x68] sm:$0xff] %vm2230, %v2209
      %2245 = vst.msk [vmem:[#allocation2 + $0x70] sm:$0xff] %vm2230, %v2211
      %2246 = vst.msk [vmem:[#allocation2 + $0x78] sm:$0xff] %vm2230, %v2213
      %v2247 = vunpack.c.l.b16 %v704
      %v2248 = vunpack.c.l.b16 %v707
      %v2249 = vunpack.c.l.b16 %v711
      %v2250 = vunpack.c.l.b16 %v714
      %v2251 = vunpack.c.l.b16 %v718
      %v2252 = vunpack.c.l.b16 %v721
      %v2253 = vunpack.c.l.b16 %v725
      %v2254 = vunpack.c.l.b16 %v728
      %v2255 = vunpack.c.l.b16 %v732
      %v2256 = vunpack.c.l.b16 %v735
      %v2257 = vunpack.c.l.b16 %v739
      %v2258 = vunpack.c.l.b16 %v742
      %v2259 = vunpack.c.l.b16 %v746
      %v2260 = vunpack.c.l.b16 %v749
      %v2261 = vunpack.c.l.b16 %v753
      %v2262 = vunpack.c.l.b16 %v756
      %v2263 = vunpack.c.l.b16 %v760
      %v2264 = vunpack.c.l.b16 %v763
      %v2265 = vunpack.c.l.b16 %v767
      %v2266 = vunpack.c.l.b16 %v770
      %v2267 = vunpack.c.l.b16 %v774
      %v2268 = vunpack.c.l.b16 %v777
      %v2269 = vunpack.c.l.b16 %v781
      %v2270 = vunpack.c.l.b16 %v784
      %v2271 = vunpack.c.l.b16 %v788
      %v2272 = vunpack.c.l.b16 %v791
      %v2273 = vunpack.c.l.b16 %v795
      %v2274 = vunpack.c.l.b16 %v798
      %v2275 = vunpack.c.l.b16 %v802
      %v2276 = vunpack.c.l.b16 %v805
      %v2277 = vunpack.c.l.b16 %v809
      %v2278 = vunpack.c.l.b16 %v812
      %v2279 = vpack.c.b16 %v2248, %v2247
      %v2280 = vpack.c.b16 %v2250, %v2249
      %v2281 = vpack.c.b16 %v2252, %v2251
      %v2282 = vpack.c.b16 %v2254, %v2253
      %v2283 = vpack.c.b16 %v2256, %v2255
      %v2284 = vpack.c.b16 %v2258, %v2257
      %v2285 = vpack.c.b16 %v2260, %v2259
      %v2286 = vpack.c.b16 %v2262, %v2261
      %v2287 = vpack.c.b16 %v2264, %v2263
      %v2288 = vpack.c.b16 %v2266, %v2265
      %v2289 = vpack.c.b16 %v2268, %v2267
      %v2290 = vpack.c.b16 %v2270, %v2269
      %v2291 = vpack.c.b16 %v2272, %v2271
      %v2292 = vpack.c.b16 %v2274, %v2273
      %v2293 = vpack.c.b16 %v2276, %v2275
      %v2294 = vpack.c.b16 %v2278, %v2277
      %2295 = vrot.lane.b32.xlu0 %v2279, 8
      %v2296 = vpop.permute.xlu0 %2295
      %2297 = vrot.lane.b32.xlu0 %v2280, 8
      %v2298 = vpop.permute.xlu0 %2297
      %2299 = vrot.lane.b32.xlu0 %v2281, 8
      %v2300 = vpop.permute.xlu0 %2299
      %2301 = vrot.lane.b32.xlu0 %v2282, 8
      %v2302 = vpop.permute.xlu0 %2301
      %2303 = vrot.lane.b32.xlu0 %v2283, 8
      %v2304 = vpop.permute.xlu0 %2303
      %2305 = vrot.lane.b32.xlu0 %v2284, 8
      %v2306 = vpop.permute.xlu0 %2305
      %2307 = vrot.lane.b32.xlu0 %v2285, 8
      %v2308 = vpop.permute.xlu0 %2307
      %2309 = vrot.lane.b32.xlu0 %v2286, 8
      %v2310 = vpop.permute.xlu0 %2309
      %2311 = vrot.lane.b32.xlu0 %v2287, 8
      %v2312 = vpop.permute.xlu0 %2311
      %2313 = vrot.lane.b32.xlu0 %v2288, 8
      %v2314 = vpop.permute.xlu0 %2313
      %2315 = vrot.lane.b32.xlu0 %v2289, 8
      %v2316 = vpop.permute.xlu0 %2315
      %2317 = vrot.lane.b32.xlu0 %v2290, 8
      %v2318 = vpop.permute.xlu0 %2317
      %2319 = vrot.lane.b32.xlu0 %v2291, 8
      %v2320 = vpop.permute.xlu0 %2319
      %2321 = vrot.lane.b32.xlu0 %v2292, 8
      %v2322 = vpop.permute.xlu0 %2321
      %2323 = vrot.lane.b32.xlu0 %v2293, 8
      %v2324 = vpop.permute.xlu0 %2323
      %2325 = vrot.lane.b32.xlu0 %v2294, 8
      %v2326 = vpop.permute.xlu0 %2325
      %vm2343 = vcmask 97344
      %2344 = vst.msk [vmem:[#allocation2] sm:$0xff] %vm2343, %v2296
      %2345 = vst.msk [vmem:[#allocation2 + $0x8] sm:$0xff] %vm2343, %v2298
      %2346 = vst.msk [vmem:[#allocation2 + $0x10] sm:$0xff] %vm2343, %v2300
      %2347 = vst.msk [vmem:[#allocation2 + $0x18] sm:$0xff] %vm2343, %v2302
      %2348 = vst.msk [vmem:[#allocation2 + $0x20] sm:$0xff] %vm2343, %v2304
      %2349 = vst.msk [vmem:[#allocation2 + $0x28] sm:$0xff] %vm2343, %v2306
      %2350 = vst.msk [vmem:[#allocation2 + $0x30] sm:$0xff] %vm2343, %v2308
      %2351 = vst.msk [vmem:[#allocation2 + $0x38] sm:$0xff] %vm2343, %v2310
      %2352 = vst.msk [vmem:[#allocation2 + $0x40] sm:$0xff] %vm2343, %v2312
      %2353 = vst.msk [vmem:[#allocation2 + $0x48] sm:$0xff] %vm2343, %v2314
      %2354 = vst.msk [vmem:[#allocation2 + $0x50] sm:$0xff] %vm2343, %v2316
      %2355 = vst.msk [vmem:[#allocation2 + $0x58] sm:$0xff] %vm2343, %v2318
      %2356 = vst.msk [vmem:[#allocation2 + $0x60] sm:$0xff] %vm2343, %v2320
      %2357 = vst.msk [vmem:[#allocation2 + $0x68] sm:$0xff] %vm2343, %v2322
      %2358 = vst.msk [vmem:[#allocation2 + $0x70] sm:$0xff] %vm2343, %v2324
      %2359 = vst.msk [vmem:[#allocation2 + $0x78] sm:$0xff] %vm2343, %v2326
      %v2376 = vunpack.c.l.b16 %v817
      %v2377 = vunpack.c.l.b16 %v818
      %v2378 = vunpack.c.l.b16 %v819
      %v2379 = vunpack.c.l.b16 %v820
      %v2380 = vunpack.c.l.b16 %v821
      %v2381 = vunpack.c.l.b16 %v822
      %v2382 = vunpack.c.l.b16 %v823
      %v2383 = vunpack.c.l.b16 %v824
      %v2384 = vunpack.c.l.b16 %v825
      %v2385 = vunpack.c.l.b16 %v826
      %v2386 = vunpack.c.l.b16 %v827
      %v2387 = vunpack.c.l.b16 %v828
      %v2388 = vunpack.c.l.b16 %v829
      %v2389 = vunpack.c.l.b16 %v830
      %v2390 = vunpack.c.l.b16 %v831
      %v2391 = vunpack.c.l.b16 %v832
      %v2392 = vunpack.c.l.b16 %v833
      %v2393 = vunpack.c.l.b16 %v834
      %v2394 = vunpack.c.l.b16 %v835
      %v2395 = vunpack.c.l.b16 %v836
      %v2396 = vunpack.c.l.b16 %v837
      %v2397 = vunpack.c.l.b16 %v838
      %v2398 = vunpack.c.l.b16 %v839
      %v2399 = vunpack.c.l.b16 %v840
      %v2400 = vunpack.c.l.b16 %v841
      %v2401 = vunpack.c.l.b16 %v842
      %v2402 = vunpack.c.l.b16 %v843
      %v2403 = vunpack.c.l.b16 %v844
      %v2404 = vunpack.c.l.b16 %v845
      %v2405 = vunpack.c.l.b16 %v846
      %v2406 = vunpack.c.l.b16 %v847
      %v2407 = vunpack.c.l.b16 %v848
      %v2408 = vpack.c.b16 %v2377, %v2376
      %v2409 = vpack.c.b16 %v2379, %v2378
      %v2410 = vpack.c.b16 %v2381, %v2380
      %v2411 = vpack.c.b16 %v2383, %v2382
      %v2412 = vpack.c.b16 %v2385, %v2384
      %v2413 = vpack.c.b16 %v2387, %v2386
      %v2414 = vpack.c.b16 %v2389, %v2388
      %v2415 = vpack.c.b16 %v2391, %v2390
      %v2416 = vpack.c.b16 %v2393, %v2392
      %v2417 = vpack.c.b16 %v2395, %v2394
      %v2418 = vpack.c.b16 %v2397, %v2396
      %v2419 = vpack.c.b16 %v2399, %v2398
      %v2420 = vpack.c.b16 %v2401, %v2400
      %v2421 = vpack.c.b16 %v2403, %v2402
      %v2422 = vpack.c.b16 %v2405, %v2404
      %v2423 = vpack.c.b16 %v2407, %v2406
      %2424 = vrot.lane.b32.xlu0 %v2408, 12
      %v2425 = vpop.permute.xlu0 %2424
      %2426 = vrot.lane.b32.xlu0 %v2409, 12
      %v2427 = vpop.permute.xlu0 %2426
      %2428 = vrot.lane.b32.xlu0 %v2410, 12
      %v2429 = vpop.permute.xlu0 %2428
      %2430 = vrot.lane.b32.xlu0 %v2411, 12
      %v2431 = vpop.permute.xlu0 %2430
      %2432 = vrot.lane.b32.xlu0 %v2412, 12
      %v2433 = vpop.permute.xlu0 %2432
      %2434 = vrot.lane.b32.xlu0 %v2413, 12
      %v2435 = vpop.permute.xlu0 %2434
      %2436 = vrot.lane.b32.xlu0 %v2414, 12
      %v2437 = vpop.permute.xlu0 %2436
      %2438 = vrot.lane.b32.xlu0 %v2415, 12
      %v2439 = vpop.permute.xlu0 %2438
      %2440 = vrot.lane.b32.xlu0 %v2416, 12
      %v2441 = vpop.permute.xlu0 %2440
      %2442 = vrot.lane.b32.xlu0 %v2417, 12
      %v2443 = vpop.permute.xlu0 %2442
      %2444 = vrot.lane.b32.xlu0 %v2418, 12
      %v2445 = vpop.permute.xlu0 %2444
      %2446 = vrot.lane.b32.xlu0 %v2419, 12
      %v2447 = vpop.permute.xlu0 %2446
      %2448 = vrot.lane.b32.xlu0 %v2420, 12
      %v2449 = vpop.permute.xlu0 %2448
      %2450 = vrot.lane.b32.xlu0 %v2421, 12
      %v2451 = vpop.permute.xlu0 %2450
      %2452 = vrot.lane.b32.xlu0 %v2422, 12
      %v2453 = vpop.permute.xlu0 %2452
      %2454 = vrot.lane.b32.xlu0 %v2423, 12
      %v2455 = vpop.permute.xlu0 %2454
      %vm2472 = vcmask 130144
      %2473 = vst.msk [vmem:[#allocation2] sm:$0xff] %vm2472, %v2425
      %2474 = vst.msk [vmem:[#allocation2 + $0x8] sm:$0xff] %vm2472, %v2427
      %2475 = vst.msk [vmem:[#allocation2 + $0x10] sm:$0xff] %vm2472, %v2429
      %2476 = vst.msk [vmem:[#allocation2 + $0x18] sm:$0xff] %vm2472, %v2431
      %2477 = vst.msk [vmem:[#allocation2 + $0x20] sm:$0xff] %vm2472, %v2433
      %2478 = vst.msk [vmem:[#allocation2 + $0x28] sm:$0xff] %vm2472, %v2435
      %2479 = vst.msk [vmem:[#allocation2 + $0x30] sm:$0xff] %vm2472, %v2437
      %2480 = vst.msk [vmem:[#allocation2 + $0x38] sm:$0xff] %vm2472, %v2439
      %2481 = vst.msk [vmem:[#allocation2 + $0x40] sm:$0xff] %vm2472, %v2441
      %2482 = vst.msk [vmem:[#allocation2 + $0x48] sm:$0xff] %vm2472, %v2443
      %2483 = vst.msk [vmem:[#allocation2 + $0x50] sm:$0xff] %vm2472, %v2445
      %2484 = vst.msk [vmem:[#allocation2 + $0x58] sm:$0xff] %vm2472, %v2447
      %2485 = vst.msk [vmem:[#allocation2 + $0x60] sm:$0xff] %vm2472, %v2449
      %2486 = vst.msk [vmem:[#allocation2 + $0x68] sm:$0xff] %vm2472, %v2451
      %2487 = vst.msk [vmem:[#allocation2 + $0x70] sm:$0xff] %vm2472, %v2453
      %2488 = vst.msk [vmem:[#allocation2 + $0x78] sm:$0xff] %vm2472, %v2455
      %v2489 = vunpack.c.l.b16 %v878
      %v2490 = vunpack.c.l.b16 %v888
      %v2491 = vunpack.c.l.b16 %v902
      %v2492 = vunpack.c.l.b16 %v912
      %v2493 = vunpack.c.l.b16 %v926
      %v2494 = vunpack.c.l.b16 %v936
      %v2495 = vunpack.c.l.b16 %v950
      %v2496 = vunpack.c.l.b16 %v960
      %v2497 = vunpack.c.l.b16 %v974
      %v2498 = vunpack.c.l.b16 %v984
      %v2499 = vunpack.c.l.b16 %v998
      %v2500 = vunpack.c.l.b16 %v1008
      %v2501 = vunpack.c.l.b16 %v1022
      %v2502 = vunpack.c.l.b16 %v1032
      %v2503 = vunpack.c.l.b16 %v1046
      %v2504 = vunpack.c.l.b16 %v1056
      %v2505 = vunpack.c.l.b16 %v1070
      %v2506 = vunpack.c.l.b16 %v1080
      %v2507 = vunpack.c.l.b16 %v1094
      %v2508 = vunpack.c.l.b16 %v1104
      %v2509 = vunpack.c.l.b16 %v1118
      %v2510 = vunpack.c.l.b16 %v1128
      %v2511 = vunpack.c.l.b16 %v1142
      %v2512 = vunpack.c.l.b16 %v1152
      %v2513 = vunpack.c.l.b16 %v1166
      %v2514 = vunpack.c.l.b16 %v1176
      %v2515 = vunpack.c.l.b16 %v1190
      %v2516 = vunpack.c.l.b16 %v1200
      %v2517 = vunpack.c.l.b16 %v1214
      %v2518 = vunpack.c.l.b16 %v1224
      %v2519 = vunpack.c.l.b16 %v1238
      %v2520 = vunpack.c.l.b16 %v1248
      %v2521 = vpack.c.b16 %v2490, %v2489
      %v2522 = vpack.c.b16 %v2492, %v2491
      %v2523 = vpack.c.b16 %v2494, %v2493
      %v2524 = vpack.c.b16 %v2496, %v2495
      %v2525 = vpack.c.b16 %v2498, %v2497
      %v2526 = vpack.c.b16 %v2500, %v2499
      %v2527 = vpack.c.b16 %v2502, %v2501
      %v2528 = vpack.c.b16 %v2504, %v2503
      %v2529 = vpack.c.b16 %v2506, %v2505
      %v2530 = vpack.c.b16 %v2508, %v2507
      %v2531 = vpack.c.b16 %v2510, %v2509
      %v2532 = vpack.c.b16 %v2512, %v2511
      %v2533 = vpack.c.b16 %v2514, %v2513
      %v2534 = vpack.c.b16 %v2516, %v2515
      %v2535 = vpack.c.b16 %v2518, %v2517
      %v2536 = vpack.c.b16 %v2520, %v2519
      %2537 = vrot.lane.b32.xlu0 %v2521, 16
      %v2538 = vpop.permute.xlu0 %2537
      %2539 = vrot.lane.b32.xlu0 %v2522, 16
      %v2540 = vpop.permute.xlu0 %2539
      %2541 = vrot.lane.b32.xlu0 %v2523, 16
      %v2542 = vpop.permute.xlu0 %2541
      %2543 = vrot.lane.b32.xlu0 %v2524, 16
      %v2544 = vpop.permute.xlu0 %2543
      %2545 = vrot.lane.b32.xlu0 %v2525, 16
      %v2546 = vpop.permute.xlu0 %2545
      %2547 = vrot.lane.b32.xlu0 %v2526, 16
      %v2548 = vpop.permute.xlu0 %2547
      %2549 = vrot.lane.b32.xlu0 %v2527, 16
      %v2550 = vpop.permute.xlu0 %2549
      %2551 = vrot.lane.b32.xlu0 %v2528, 16
      %v2552 = vpop.permute.xlu0 %2551
      %2553 = vrot.lane.b32.xlu0 %v2529, 16
      %v2554 = vpop.permute.xlu0 %2553
      %2555 = vrot.lane.b32.xlu0 %v2530, 16
      %v2556 = vpop.permute.xlu0 %2555
      %2557 = vrot.lane.b32.xlu0 %v2531, 16
      %v2558 = vpop.permute.xlu0 %2557
      %2559 = vrot.lane.b32.xlu0 %v2532, 16
      %v2560 = vpop.permute.xlu0 %2559
      %2561 = vrot.lane.b32.xlu0 %v2533, 16
      %v2562 = vpop.permute.xlu0 %2561
      %2563 = vrot.lane.b32.xlu0 %v2534, 16
      %v2564 = vpop.permute.xlu0 %2563
      %2565 = vrot.lane.b32.xlu0 %v2535, 16
      %v2566 = vpop.permute.xlu0 %2565
      %2567 = vrot.lane.b32.xlu0 %v2536, 16
      %v2568 = vpop.permute.xlu0 %2567
      %vm2585 = vcmask 162944
      %2586 = vst.msk [vmem:[#allocation2] sm:$0xff] %vm2585, %v2538
      %2587 = vst.msk [vmem:[#allocation2 + $0x8] sm:$0xff] %vm2585, %v2540
      %2588 = vst.msk [vmem:[#allocation2 + $0x10] sm:$0xff] %vm2585, %v2542
      %2589 = vst.msk [vmem:[#allocation2 + $0x18] sm:$0xff] %vm2585, %v2544
      %2590 = vst.msk [vmem:[#allocation2 + $0x20] sm:$0xff] %vm2585, %v2546
      %2591 = vst.msk [vmem:[#allocation2 + $0x28] sm:$0xff] %vm2585, %v2548
      %2592 = vst.msk [vmem:[#allocation2 + $0x30] sm:$0xff] %vm2585, %v2550
      %2593 = vst.msk [vmem:[#allocation2 + $0x38] sm:$0xff] %vm2585, %v2552
      %2594 = vst.msk [vmem:[#allocation2 + $0x40] sm:$0xff] %vm2585, %v2554
      %2595 = vst.msk [vmem:[#allocation2 + $0x48] sm:$0xff] %vm2585, %v2556
      %2596 = vst.msk [vmem:[#allocation2 + $0x50] sm:$0xff] %vm2585, %v2558
      %2597 = vst.msk [vmem:[#allocation2 + $0x58] sm:$0xff] %vm2585, %v2560
      %2598 = vst.msk [vmem:[#allocation2 + $0x60] sm:$0xff] %vm2585, %v2562
      %2599 = vst.msk [vmem:[#allocation2 + $0x68] sm:$0xff] %vm2585, %v2564
      %2600 = vst.msk [vmem:[#allocation2 + $0x70] sm:$0xff] %vm2585, %v2566
      %2601 = vst.msk [vmem:[#allocation2 + $0x78] sm:$0xff] %vm2585, %v2568
      %v2602 = vunpack.c.l.b16 %v1316
      %v2603 = vunpack.c.l.b16 %v1319
      %v2604 = vunpack.c.l.b16 %v1323
      %v2605 = vunpack.c.l.b16 %v1326
      %v2606 = vunpack.c.l.b16 %v1330
      %v2607 = vunpack.c.l.b16 %v1333
      %v2608 = vunpack.c.l.b16 %v1337
      %v2609 = vunpack.c.l.b16 %v1340
      %v2610 = vunpack.c.l.b16 %v1344
      %v2611 = vunpack.c.l.b16 %v1347
      %v2612 = vunpack.c.l.b16 %v1351
      %v2613 = vunpack.c.l.b16 %v1354
      %v2614 = vunpack.c.l.b16 %v1358
      %v2615 = vunpack.c.l.b16 %v1361
      %v2616 = vunpack.c.l.b16 %v1365
      %v2617 = vunpack.c.l.b16 %v1368
      %v2618 = vunpack.c.l.b16 %v1372
      %v2619 = vunpack.c.l.b16 %v1375
      %v2620 = vunpack.c.l.b16 %v1379
      %v2621 = vunpack.c.l.b16 %v1382
      %v2622 = vunpack.c.l.b16 %v1386
      %v2623 = vunpack.c.l.b16 %v1389
      %v2624 = vunpack.c.l.b16 %v1393
      %v2625 = vunpack.c.l.b16 %v1396
      %v2626 = vunpack.c.l.b16 %v1400
      %v2627 = vunpack.c.l.b16 %v1403
      %v2628 = vunpack.c.l.b16 %v1407
      %v2629 = vunpack.c.l.b16 %v1410
      %v2630 = vunpack.c.l.b16 %v1414
      %v2631 = vunpack.c.l.b16 %v1417
      %v2632 = vunpack.c.l.b16 %v1421
      %v2633 = vunpack.c.l.b16 %v1424
      %v2634 = vpack.c.b16 %v2603, %v2602
      %v2635 = vpack.c.b16 %v2605, %v2604
      %v2636 = vpack.c.b16 %v2607, %v2606
      %v2637 = vpack.c.b16 %v2609, %v2608
      %v2638 = vpack.c.b16 %v2611, %v2610
      %v2639 = vpack.c.b16 %v2613, %v2612
      %v2640 = vpack.c.b16 %v2615, %v2614
      %v2641 = vpack.c.b16 %v2617, %v2616
      %v2642 = vpack.c.b16 %v2619, %v2618
      %v2643 = vpack.c.b16 %v2621, %v2620
      %v2644 = vpack.c.b16 %v2623, %v2622
      %v2645 = vpack.c.b16 %v2625, %v2624
      %v2646 = vpack.c.b16 %v2627, %v2626
      %v2647 = vpack.c.b16 %v2629, %v2628
      %v2648 = vpack.c.b16 %v2631, %v2630
      %v2649 = vpack.c.b16 %v2633, %v2632
      %2650 = vrot.lane.b32.xlu0 %v2634, 20
      %v2651 = vpop.permute.xlu0 %2650
      %2652 = vrot.lane.b32.xlu0 %v2635, 20
      %v2653 = vpop.permute.xlu0 %2652
      %2654 = vrot.lane.b32.xlu0 %v2636, 20
      %v2655 = vpop.permute.xlu0 %2654
      %2656 = vrot.lane.b32.xlu0 %v2637, 20
      %v2657 = vpop.permute.xlu0 %2656
      %2658 = vrot.lane.b32.xlu0 %v2638, 20
      %v2659 = vpop.permute.xlu0 %2658
      %2660 = vrot.lane.b32.xlu0 %v2639, 20
      %v2661 = vpop.permute.xlu0 %2660
      %2662 = vrot.lane.b32.xlu0 %v2640, 20
      %v2663 = vpop.permute.xlu0 %2662
      %2664 = vrot.lane.b32.xlu0 %v2641, 20
      %v2665 = vpop.permute.xlu0 %2664
      %2666 = vrot.lane.b32.xlu0 %v2642, 20
      %v2667 = vpop.permute.xlu0 %2666
      %2668 = vrot.lane.b32.xlu0 %v2643, 20
      %v2669 = vpop.permute.xlu0 %2668
      %2670 = vrot.lane.b32.xlu0 %v2644, 20
      %v2671 = vpop.permute.xlu0 %2670
      %2672 = vrot.lane.b32.xlu0 %v2645, 20
      %v2673 = vpop.permute.xlu0 %2672
      %2674 = vrot.lane.b32.xlu0 %v2646, 20
      %v2675 = vpop.permute.xlu0 %2674
      %2676 = vrot.lane.b32.xlu0 %v2647, 20
      %v2677 = vpop.permute.xlu0 %2676
      %2678 = vrot.lane.b32.xlu0 %v2648, 20
      %v2679 = vpop.permute.xlu0 %2678
      %2680 = vrot.lane.b32.xlu0 %v2649, 20
      %v2681 = vpop.permute.xlu0 %2680
      %vm2698 = vcmask 195744
      %2699 = vst.msk [vmem:[#allocation2] sm:$0xff] %vm2698, %v2651
      %2700 = vst.msk [vmem:[#allocation2 + $0x8] sm:$0xff] %vm2698, %v2653
      %2701 = vst.msk [vmem:[#allocation2 + $0x10] sm:$0xff] %vm2698, %v2655
      %2702 = vst.msk [vmem:[#allocation2 + $0x18] sm:$0xff] %vm2698, %v2657
      %2703 = vst.msk [vmem:[#allocation2 + $0x20] sm:$0xff] %vm2698, %v2659
      %2704 = vst.msk [vmem:[#allocation2 + $0x28] sm:$0xff] %vm2698, %v2661
      %2705 = vst.msk [vmem:[#allocation2 + $0x30] sm:$0xff] %vm2698, %v2663
      %2706 = vst.msk [vmem:[#allocation2 + $0x38] sm:$0xff] %vm2698, %v2665
      %2707 = vst.msk [vmem:[#allocation2 + $0x40] sm:$0xff] %vm2698, %v2667
      %2708 = vst.msk [vmem:[#allocation2 + $0x48] sm:$0xff] %vm2698, %v2669
      %2709 = vst.msk [vmem:[#allocation2 + $0x50] sm:$0xff] %vm2698, %v2671
      %2710 = vst.msk [vmem:[#allocation2 + $0x58] sm:$0xff] %vm2698, %v2673
      %2711 = vst.msk [vmem:[#allocation2 + $0x60] sm:$0xff] %vm2698, %v2675
      %2712 = vst.msk [vmem:[#allocation2 + $0x68] sm:$0xff] %vm2698, %v2677
      %2713 = vst.msk [vmem:[#allocation2 + $0x70] sm:$0xff] %vm2698, %v2679
      %2714 = vst.msk [vmem:[#allocation2 + $0x78] sm:$0xff] %vm2698, %v2681
      %v2731 = vunpack.c.l.b16 %v1429
      %v2732 = vunpack.c.l.b16 %v1430
      %v2733 = vunpack.c.l.b16 %v1431
      %v2734 = vunpack.c.l.b16 %v1432
      %v2735 = vunpack.c.l.b16 %v1433
      %v2736 = vunpack.c.l.b16 %v1434
      %v2737 = vunpack.c.l.b16 %v1435
      %v2738 = vunpack.c.l.b16 %v1436
      %v2739 = vunpack.c.l.b16 %v1437
      %v2740 = vunpack.c.l.b16 %v1438
      %v2741 = vunpack.c.l.b16 %v1439
      %v2742 = vunpack.c.l.b16 %v1440
      %v2743 = vunpack.c.l.b16 %v1441
      %v2744 = vunpack.c.l.b16 %v1442
      %v2745 = vunpack.c.l.b16 %v1443
      %v2746 = vunpack.c.l.b16 %v1444
      %v2747 = vunpack.c.l.b16 %v1445
      %v2748 = vunpack.c.l.b16 %v1446
      %v2749 = vunpack.c.l.b16 %v1447
      %v2750 = vunpack.c.l.b16 %v1448
      %v2751 = vunpack.c.l.b16 %v1449
      %v2752 = vunpack.c.l.b16 %v1450
      %v2753 = vunpack.c.l.b16 %v1451
      %v2754 = vunpack.c.l.b16 %v1452
      %v2755 = vunpack.c.l.b16 %v1453
      %v2756 = vunpack.c.l.b16 %v1454
      %v2757 = vunpack.c.l.b16 %v1455
      %v2758 = vunpack.c.l.b16 %v1456
      %v2759 = vunpack.c.l.b16 %v1457
      %v2760 = vunpack.c.l.b16 %v1458
      %v2761 = vunpack.c.l.b16 %v1459
      %v2762 = vunpack.c.l.b16 %v1460
      %v2763 = vpack.c.b16 %v2732, %v2731
      %v2764 = vpack.c.b16 %v2734, %v2733
      %v2765 = vpack.c.b16 %v2736, %v2735
      %v2766 = vpack.c.b16 %v2738, %v2737
      %v2767 = vpack.c.b16 %v2740, %v2739
      %v2768 = vpack.c.b16 %v2742, %v2741
      %v2769 = vpack.c.b16 %v2744, %v2743
      %v2770 = vpack.c.b16 %v2746, %v2745
      %v2771 = vpack.c.b16 %v2748, %v2747
      %v2772 = vpack.c.b16 %v2750, %v2749
      %v2773 = vpack.c.b16 %v2752, %v2751
      %v2774 = vpack.c.b16 %v2754, %v2753
      %v2775 = vpack.c.b16 %v2756, %v2755
      %v2776 = vpack.c.b16 %v2758, %v2757
      %v2777 = vpack.c.b16 %v2760, %v2759
      %v2778 = vpack.c.b16 %v2762, %v2761
      %2779 = vrot.lane.b32.xlu0 %v2763, 24
      %v2780 = vpop.permute.xlu0 %2779
      %2781 = vrot.lane.b32.xlu0 %v2764, 24
      %v2782 = vpop.permute.xlu0 %2781
      %2783 = vrot.lane.b32.xlu0 %v2765, 24
      %v2784 = vpop.permute.xlu0 %2783
      %2785 = vrot.lane.b32.xlu0 %v2766, 24
      %v2786 = vpop.permute.xlu0 %2785
      %2787 = vrot.lane.b32.xlu0 %v2767, 24
      %v2788 = vpop.permute.xlu0 %2787
      %2789 = vrot.lane.b32.xlu0 %v2768, 24
      %v2790 = vpop.permute.xlu0 %2789
      %2791 = vrot.lane.b32.xlu0 %v2769, 24
      %v2792 = vpop.permute.xlu0 %2791
      %2793 = vrot.lane.b32.xlu0 %v2770, 24
      %v2794 = vpop.permute.xlu0 %2793
      %2795 = vrot.lane.b32.xlu0 %v2771, 24
      %v2796 = vpop.permute.xlu0 %2795
      %2797 = vrot.lane.b32.xlu0 %v2772, 24
      %v2798 = vpop.permute.xlu0 %2797
      %2799 = vrot.lane.b32.xlu0 %v2773, 24
      %v2800 = vpop.permute.xlu0 %2799
      %2801 = vrot.lane.b32.xlu0 %v2774, 24
      %v2802 = vpop.permute.xlu0 %2801
      %2803 = vrot.lane.b32.xlu0 %v2775, 24
      %v2804 = vpop.permute.xlu0 %2803
      %2805 = vrot.lane.b32.xlu0 %v2776, 24
      %v2806 = vpop.permute.xlu0 %2805
      %2807 = vrot.lane.b32.xlu0 %v2777, 24
      %v2808 = vpop.permute.xlu0 %2807
      %2809 = vrot.lane.b32.xlu0 %v2778, 24
      %v2810 = vpop.permute.xlu0 %2809
      %vm2827 = vcmask 228544
      %2828 = vst.msk [vmem:[#allocation2] sm:$0xff] %vm2827, %v2780
      %2829 = vst.msk [vmem:[#allocation2 + $0x8] sm:$0xff] %vm2827, %v2782
      %2830 = vst.msk [vmem:[#allocation2 + $0x10] sm:$0xff] %vm2827, %v2784
      %2831 = vst.msk [vmem:[#allocation2 + $0x18] sm:$0xff] %vm2827, %v2786
      %2832 = vst.msk [vmem:[#allocation2 + $0x20] sm:$0xff] %vm2827, %v2788
      %2833 = vst.msk [vmem:[#allocation2 + $0x28] sm:$0xff] %vm2827, %v2790
      %2834 = vst.msk [vmem:[#allocation2 + $0x30] sm:$0xff] %vm2827, %v2792
      %2835 = vst.msk [vmem:[#allocation2 + $0x38] sm:$0xff] %vm2827, %v2794
      %2836 = vst.msk [vmem:[#allocation2 + $0x40] sm:$0xff] %vm2827, %v2796
      %2837 = vst.msk [vmem:[#allocation2 + $0x48] sm:$0xff] %vm2827, %v2798
      %2838 = vst.msk [vmem:[#allocation2 + $0x50] sm:$0xff] %vm2827, %v2800
      %2839 = vst.msk [vmem:[#allocation2 + $0x58] sm:$0xff] %vm2827, %v2802
      %2840 = vst.msk [vmem:[#allocation2 + $0x60] sm:$0xff] %vm2827, %v2804
      %2841 = vst.msk [vmem:[#allocation2 + $0x68] sm:$0xff] %vm2827, %v2806
      %2842 = vst.msk [vmem:[#allocation2 + $0x70] sm:$0xff] %vm2827, %v2808
      %2843 = vst.msk [vmem:[#allocation2 + $0x78] sm:$0xff] %vm2827, %v2810
      %v2844 = vunpack.c.l.b16 %v1490
      %v2845 = vunpack.c.l.b16 %v1500
      %v2846 = vunpack.c.l.b16 %v1514
      %v2847 = vunpack.c.l.b16 %v1524
      %v2848 = vunpack.c.l.b16 %v1538
      %v2849 = vunpack.c.l.b16 %v1548
      %v2850 = vunpack.c.l.b16 %v1562
      %v2851 = vunpack.c.l.b16 %v1572
      %v2852 = vunpack.c.l.b16 %v1586
      %v2853 = vunpack.c.l.b16 %v1596
      %v2854 = vunpack.c.l.b16 %v1610
      %v2855 = vunpack.c.l.b16 %v1620
      %v2856 = vunpack.c.l.b16 %v1634
      %v2857 = vunpack.c.l.b16 %v1644
      %v2858 = vunpack.c.l.b16 %v1658
      %v2859 = vunpack.c.l.b16 %v1668
      %v2860 = vunpack.c.l.b16 %v1682
      %v2861 = vunpack.c.l.b16 %v1692
      %v2862 = vunpack.c.l.b16 %v1706
      %v2863 = vunpack.c.l.b16 %v1716
      %v2864 = vunpack.c.l.b16 %v1730
      %v2865 = vunpack.c.l.b16 %v1740
      %v2866 = vunpack.c.l.b16 %v1754
      %v2867 = vunpack.c.l.b16 %v1764
      %v2868 = vunpack.c.l.b16 %v1778
      %v2869 = vunpack.c.l.b16 %v1788
      %v2870 = vunpack.c.l.b16 %v1802
      %v2871 = vunpack.c.l.b16 %v1812
      %v2872 = vunpack.c.l.b16 %v1826
      %v2873 = vunpack.c.l.b16 %v1836
      %v2874 = vunpack.c.l.b16 %v1850
      %v2875 = vunpack.c.l.b16 %v1860
      %v2876 = vpack.c.b16 %v2845, %v2844
      %v2877 = vpack.c.b16 %v2847, %v2846
      %v2878 = vpack.c.b16 %v2849, %v2848
      %v2879 = vpack.c.b16 %v2851, %v2850
      %v2880 = vpack.c.b16 %v2853, %v2852
      %v2881 = vpack.c.b16 %v2855, %v2854
      %v2882 = vpack.c.b16 %v2857, %v2856
      %v2883 = vpack.c.b16 %v2859, %v2858
      %v2884 = vpack.c.b16 %v2861, %v2860
      %v2885 = vpack.c.b16 %v2863, %v2862
      %v2886 = vpack.c.b16 %v2865, %v2864
      %v2887 = vpack.c.b16 %v2867, %v2866
      %v2888 = vpack.c.b16 %v2869, %v2868
      %v2889 = vpack.c.b16 %v2871, %v2870
      %v2890 = vpack.c.b16 %v2873, %v2872
      %v2891 = vpack.c.b16 %v2875, %v2874
      %2892 = vrot.lane.b32.xlu0 %v2876, 28
      %v2893 = vpop.permute.xlu0 %2892
      %2894 = vrot.lane.b32.xlu0 %v2877, 28
      %v2895 = vpop.permute.xlu0 %2894
      %2896 = vrot.lane.b32.xlu0 %v2878, 28
      %v2897 = vpop.permute.xlu0 %2896
      %2898 = vrot.lane.b32.xlu0 %v2879, 28
      %v2899 = vpop.permute.xlu0 %2898
      %2900 = vrot.lane.b32.xlu0 %v2880, 28
      %v2901 = vpop.permute.xlu0 %2900
      %2902 = vrot.lane.b32.xlu0 %v2881, 28
      %v2903 = vpop.permute.xlu0 %2902
      %2904 = vrot.lane.b32.xlu0 %v2882, 28
      %v2905 = vpop.permute.xlu0 %2904
      %2906 = vrot.lane.b32.xlu0 %v2883, 28
      %v2907 = vpop.permute.xlu0 %2906
      %2908 = vrot.lane.b32.xlu0 %v2884, 28
      %v2909 = vpop.permute.xlu0 %2908
      %2910 = vrot.lane.b32.xlu0 %v2885, 28
      %v2911 = vpop.permute.xlu0 %2910
      %2912 = vrot.lane.b32.xlu0 %v2886, 28
      %v2913 = vpop.permute.xlu0 %2912
      %2914 = vrot.lane.b32.xlu0 %v2887, 28
      %v2915 = vpop.permute.xlu0 %2914
      %2916 = vrot.lane.b32.xlu0 %v2888, 28
      %v2917 = vpop.permute.xlu0 %2916
      %2918 = vrot.lane.b32.xlu0 %v2889, 28
      %v2919 = vpop.permute.xlu0 %2918
      %2920 = vrot.lane.b32.xlu0 %v2890, 28
      %v2921 = vpop.permute.xlu0 %2920
      %2922 = vrot.lane.b32.xlu0 %v2891, 28
      %v2923 = vpop.permute.xlu0 %2922
      %vm2940 = vcmask 261344
      %2941 = vst.msk [vmem:[#allocation2] sm:$0xff] %vm2940, %v2893
      %2942 = vst.msk [vmem:[#allocation2 + $0x8] sm:$0xff] %vm2940, %v2895
      %2943 = vst.msk [vmem:[#allocation2 + $0x10] sm:$0xff] %vm2940, %v2897
      %2944 = vst.msk [vmem:[#allocation2 + $0x18] sm:$0xff] %vm2940, %v2899
      %2945 = vst.msk [vmem:[#allocation2 + $0x20] sm:$0xff] %vm2940, %v2901
      %2946 = vst.msk [vmem:[#allocation2 + $0x28] sm:$0xff] %vm2940, %v2903
      %2947 = vst.msk [vmem:[#allocation2 + $0x30] sm:$0xff] %vm2940, %v2905
      %2948 = vst.msk [vmem:[#allocation2 + $0x38] sm:$0xff] %vm2940, %v2907
      %2949 = vst.msk [vmem:[#allocation2 + $0x40] sm:$0xff] %vm2940, %v2909
      %2950 = vst.msk [vmem:[#allocation2 + $0x48] sm:$0xff] %vm2940, %v2911
      %2951 = vst.msk [vmem:[#allocation2 + $0x50] sm:$0xff] %vm2940, %v2913
      %2952 = vst.msk [vmem:[#allocation2 + $0x58] sm:$0xff] %vm2940, %v2915
      %2953 = vst.msk [vmem:[#allocation2 + $0x60] sm:$0xff] %vm2940, %v2917
      %2954 = vst.msk [vmem:[#allocation2 + $0x68] sm:$0xff] %vm2940, %v2919
      %2955 = vst.msk [vmem:[#allocation2 + $0x70] sm:$0xff] %vm2940, %v2921
      %2956 = vst.msk [vmem:[#allocation2 + $0x78] sm:$0xff] %vm2940, %v2923
      %v2957 = vunpack.c.l.b16 %v1928
      %v2958 = vunpack.c.l.b16 %v1931
      %v2959 = vunpack.c.l.b16 %v1935
      %v2960 = vunpack.c.l.b16 %v1938
      %v2961 = vunpack.c.l.b16 %v1942
      %v2962 = vunpack.c.l.b16 %v1945
      %v2963 = vunpack.c.l.b16 %v1949
      %v2964 = vunpack.c.l.b16 %v1952
      %v2965 = vunpack.c.l.b16 %v1956
      %v2966 = vunpack.c.l.b16 %v1959
      %v2967 = vunpack.c.l.b16 %v1963
      %v2968 = vunpack.c.l.b16 %v1966
      %v2969 = vunpack.c.l.b16 %v1970
      %v2970 = vunpack.c.l.b16 %v1973
      %v2971 = vunpack.c.l.b16 %v1977
      %v2972 = vunpack.c.l.b16 %v1980
      %v2973 = vunpack.c.l.b16 %v1984
      %v2974 = vunpack.c.l.b16 %v1987
      %v2975 = vunpack.c.l.b16 %v1991
      %v2976 = vunpack.c.l.b16 %v1994
      %v2977 = vunpack.c.l.b16 %v1998
      %v2978 = vunpack.c.l.b16 %v2001
      %v2979 = vunpack.c.l.b16 %v2005
      %v2980 = vunpack.c.l.b16 %v2008
      %v2981 = vunpack.c.l.b16 %v2012
      %v2982 = vunpack.c.l.b16 %v2015
      %v2983 = vunpack.c.l.b16 %v2019
      %v2984 = vunpack.c.l.b16 %v2022
      %v2985 = vunpack.c.l.b16 %v2026
      %v2986 = vunpack.c.l.b16 %v2029
      %v2987 = vunpack.c.l.b16 %v2033
      %v2988 = vunpack.c.l.b16 %v2036
      %v2989 = vpack.c.b16 %v2958, %v2957
      %v2990 = vpack.c.b16 %v2960, %v2959
      %v2991 = vpack.c.b16 %v2962, %v2961
      %v2992 = vpack.c.b16 %v2964, %v2963
      %v2993 = vpack.c.b16 %v2966, %v2965
      %v2994 = vpack.c.b16 %v2968, %v2967
      %v2995 = vpack.c.b16 %v2970, %v2969
      %v2996 = vpack.c.b16 %v2972, %v2971
      %v2997 = vpack.c.b16 %v2974, %v2973
      %v2998 = vpack.c.b16 %v2976, %v2975
      %v2999 = vpack.c.b16 %v2978, %v2977
      %v3000 = vpack.c.b16 %v2980, %v2979
      %v3001 = vpack.c.b16 %v2982, %v2981
      %v3002 = vpack.c.b16 %v2984, %v2983
      %v3003 = vpack.c.b16 %v2986, %v2985
      %v3004 = vpack.c.b16 %v2988, %v2987
      %3005 = vrot.lane.b32.xlu0 %v2989, 32
      %v3006 = vpop.permute.xlu0 %3005
      %3007 = vrot.lane.b32.xlu0 %v2990, 32
      %v3008 = vpop.permute.xlu0 %3007
      %3009 = vrot.lane.b32.xlu0 %v2991, 32
      %v3010 = vpop.permute.xlu0 %3009
      %3011 = vrot.lane.b32.xlu0 %v2992, 32
      %v3012 = vpop.permute.xlu0 %3011
      %3013 = vrot.lane.b32.xlu0 %v2993, 32
      %v3014 = vpop.permute.xlu0 %3013
      %3015 = vrot.lane.b32.xlu0 %v2994, 32
      %v3016 = vpop.permute.xlu0 %3015
      %3017 = vrot.lane.b32.xlu0 %v2995, 32
      %v3018 = vpop.permute.xlu0 %3017
      %3019 = vrot.lane.b32.xlu0 %v2996, 32
      %v3020 = vpop.permute.xlu0 %3019
      %3021 = vrot.lane.b32.xlu0 %v2997, 32
      %v3022 = vpop.permute.xlu0 %3021
      %3023 = vrot.lane.b32.xlu0 %v2998, 32
      %v3024 = vpop.permute.xlu0 %3023
      %3025 = vrot.lane.b32.xlu0 %v2999, 32
      %v3026 = vpop.permute.xlu0 %3025
      %3027 = vrot.lane.b32.xlu0 %v3000, 32
      %v3028 = vpop.permute.xlu0 %3027
      %3029 = vrot.lane.b32.xlu0 %v3001, 32
      %v3030 = vpop.permute.xlu0 %3029
      %3031 = vrot.lane.b32.xlu0 %v3002, 32
      %v3032 = vpop.permute.xlu0 %3031
      %3033 = vrot.lane.b32.xlu0 %v3003, 32
      %v3034 = vpop.permute.xlu0 %3033
      %3035 = vrot.lane.b32.xlu0 %v3004, 32
      %v3036 = vpop.permute.xlu0 %3035
      %vm3053 = vcmask 294144
      %3054 = vst.msk [vmem:[#allocation2] sm:$0xff] %vm3053, %v3006
      %3055 = vst.msk [vmem:[#allocation2 + $0x8] sm:$0xff] %vm3053, %v3008
      %3056 = vst.msk [vmem:[#allocation2 + $0x10] sm:$0xff] %vm3053, %v3010
      %3057 = vst.msk [vmem:[#allocation2 + $0x18] sm:$0xff] %vm3053, %v3012
      %3058 = vst.msk [vmem:[#allocation2 + $0x20] sm:$0xff] %vm3053, %v3014
      %3059 = vst.msk [vmem:[#allocation2 + $0x28] sm:$0xff] %vm3053, %v3016
      %3060 = vst.msk [vmem:[#allocation2 + $0x30] sm:$0xff] %vm3053, %v3018
      %3061 = vst.msk [vmem:[#allocation2 + $0x38] sm:$0xff] %vm3053, %v3020
      %3062 = vst.msk [vmem:[#allocation2 + $0x40] sm:$0xff] %vm3053, %v3022
      %3063 = vst.msk [vmem:[#allocation2 + $0x48] sm:$0xff] %vm3053, %v3024
      %3064 = vst.msk [vmem:[#allocation2 + $0x50] sm:$0xff] %vm3053, %v3026
      %3065 = vst.msk [vmem:[#allocation2 + $0x58] sm:$0xff] %vm3053, %v3028
      %3066 = vst.msk [vmem:[#allocation2 + $0x60] sm:$0xff] %vm3053, %v3030
      %3067 = vst.msk [vmem:[#allocation2 + $0x68] sm:$0xff] %vm3053, %v3032
      %3068 = vst.msk [vmem:[#allocation2 + $0x70] sm:$0xff] %vm3053, %v3034
      %3069 = vst.msk [vmem:[#allocation2 + $0x78] sm:$0xff] %vm3053, %v3036
      %v3070 = vld [vmem:[#allocation2] sm:$0xff]
      %v3071 = vld [vmem:[#allocation2 + $0x8] sm:$0xff]
      %v3072 = vld [vmem:[#allocation2 + $0x10] sm:$0xff]
      %v3073 = vld [vmem:[#allocation2 + $0x18] sm:$0xff]
      %v3074 = vld [vmem:[#allocation2 + $0x20] sm:$0xff]
      %v3075 = vld [vmem:[#allocation2 + $0x28] sm:$0xff]
      %v3076 = vld [vmem:[#allocation2 + $0x30] sm:$0xff]
      %v3077 = vld [vmem:[#allocation2 + $0x38] sm:$0xff]
      %v3078 = vld [vmem:[#allocation2 + $0x40] sm:$0xff]
      %v3079 = vld [vmem:[#allocation2 + $0x48] sm:$0xff]
      %v3080 = vld [vmem:[#allocation2 + $0x50] sm:$0xff]
      %v3081 = vld [vmem:[#allocation2 + $0x58] sm:$0xff]
      %v3082 = vld [vmem:[#allocation2 + $0x60] sm:$0xff]
      %v3083 = vld [vmem:[#allocation2 + $0x68] sm:$0xff]
      %v3084 = vld [vmem:[#allocation2 + $0x70] sm:$0xff]
      %v3085 = vld [vmem:[#allocation2 + $0x78] sm:$0xff]
      %v3086 = vld [vmem:[%s1] sm:$0xf]
      %v3087 = vld [vmem:[%s1 + $0x4] sm:$0xf]
      %v3088 = vld [vmem:[%s1 + $0x8] sm:$0xf]
      %v3089 = vld [vmem:[%s1 + $0xc] sm:$0xf]
      %v3090 = vld [vmem:[%s1 + $0x10] sm:$0x3]
      %v3091 = vld [vmem:[%s2] sm:$0x1]
      %v3093 = vlaneseq
      %v3094 = vshrl.u32 %v3093, 7
      %v3095 = vsub.s32 0, %v3094
      %v3096 = vrot.slane %v3091, %v3095
      %v3103 = vunpack.c.l.b16 %v3086
      %v3104 = vunpack.c.l.b16 %v3087
      %v3105 = vunpack.c.l.b16 %v3088
      %v3106 = vunpack.c.l.b16 %v3089
      %v3107 = vunpack.c.l.b16 %v3090
      %v3108 = vpack.c.b16 %v3104, %v3103
      %v3109 = vpack.c.b16 %v3106, %v3105
      %v3110 = vpack.c.b16 %v3107, %v3107
      %vm3113 = vcmask 293888
      %v3115 = vsel %vm3113, %v3070, 0
      %v3118 = vsel %vm3113, %v3071, 0
      %v3121 = vsel %vm3113, %v3072, 0
      %v3124 = vsel %vm3113, %v3073, 0
      %v3127 = vsel %vm3113, %v3074, 0
      %v3130 = vsel %vm3113, %v3075, 0
      %v3133 = vsel %vm3113, %v3076, 0
      %v3136 = vsel %vm3113, %v3077, 0
      %v3139 = vsel %vm3113, %v3078, 0
      %v3142 = vsel %vm3113, %v3079, 0
      %v3145 = vsel %vm3113, %v3080, 0
      %v3148 = vsel %vm3113, %v3081, 0
      %v3151 = vsel %vm3113, %v3082, 0
      %v3154 = vsel %vm3113, %v3083, 0
      %v3157 = vsel %vm3113, %v3084, 0
      %v3160 = vsel %vm3113, %v3085, 0
      %vm3162 = vcmask 1041408
      %v3164 = vsel %vm3162, %v3110, 0
      %3166 = vmatprep.subr.bf16.mxu0 0
      %3167 = vmatpush1.bf16.msra.mxu0 %v3108
      %3168 = vmatprep.subr.bf16.mxu0 0
      %3169 = vmatpush1.bf16.msra.mxu0 %v3109
      %3170 = vmatprep.subr.bf16.mxu0 0
      %3171 = vmatpush1.bf16.msra.mxu0 %v3164
      %3172 = vmatprep.subr.bf16.mxu0 0
      %3173 = vmatpush1.bf16.msra.mxu0 0
      %3174 = vmatprep.subr.bf16.mxu0 0
      %3175 = vmatpush1.bf16.msra.mxu0 0
      %3176 = vmatprep.subr.bf16.mxu0 0
      %3177 = vmatpush1.bf16.msra.mxu0 0
      %3178 = vmatprep.subr.bf16.mxu0 0
      %3179 = vmatpush1.bf16.msra.mxu0 0
      %3180 = vmatprep.subr.bf16.mxu0 0
      %3181 = vmatpush1.bf16.msra.mxu0 0
      %3182 = vmatprep.subr.bf16.mxu0 0
      %3183 = vmatpush1.bf16.msra.mxu0 0
      %3184 = vmatprep.subr.bf16.mxu0 0
      %3185 = vmatpush1.bf16.msra.mxu0 0
      %3186 = vmatprep.subr.bf16.mxu0 0
      %3187 = vmatpush1.bf16.msra.mxu0 0
      %3188 = vmatprep.subr.bf16.mxu0 0
      %3189 = vmatpush1.bf16.msra.mxu0 0
      %3190 = vmatprep.subr.bf16.mxu0 0
      %3191 = vmatpush1.bf16.msra.mxu0 0
      %3192 = vmatprep.subr.bf16.mxu0 0
      %3193 = vmatpush1.bf16.msra.mxu0 0
      %3194 = vmatprep.subr.bf16.mxu0 0
      %3195 = vmatpush1.bf16.msra.mxu0 0
      %3196 = vmatprep.subr.bf16.mxu0 0
      %3197 = vmatpush1.bf16.msra.mxu0 0
      %3198 = vmatprep.mubr.bf16.mxu0 0
      %3199 = vmatmul.mubr.bf16.gmra.mrb[0].mxu0 %v3115
      %v3200 = vpop.f32.mrb[0].mxu0
      %v3201 = vadd.f32 %v3096, %v3200
      %v3202 = vpop.f32.mrb[0].mxu0
      %v3203 = vpop.f32.mrb[0].mxu0
      %v3204 = vadd.f32 %v3096, %v3203
      %v3205 = vpop.f32.mrb[0].mxu0
      %3206 = vmatprep.mubr.bf16.mxu0 0
      %3207 = vmatmul.mubr.bf16.gmra.mrb[0].mxu0 %v3118
      %v3208 = vpop.f32.mrb[0].mxu0
      %v3209 = vadd.f32 %v3096, %v3208
      %v3210 = vpop.f32.mrb[0].mxu0
      %v3211 = vpop.f32.mrb[0].mxu0
      %v3212 = vadd.f32 %v3096, %v3211
      %v3213 = vpop.f32.mrb[0].mxu0
      %3214 = vmatprep.mubr.bf16.mxu0 0
      %3215 = vmatmul.mubr.bf16.gmra.mrb[0].mxu0 %v3121
      %v3216 = vpop.f32.mrb[0].mxu0
      %v3217 = vadd.f32 %v3096, %v3216
      %v3218 = vpop.f32.mrb[0].mxu0
      %v3219 = vpop.f32.mrb[0].mxu0
      %v3220 = vadd.f32 %v3096, %v3219
      %v3221 = vpop.f32.mrb[0].mxu0
      %3222 = vmatprep.mubr.bf16.mxu0 0
      %3223 = vmatmul.mubr.bf16.gmra.mrb[0].mxu0 %v3124
      %v3224 = vpop.f32.mrb[0].mxu0
      %v3225 = vadd.f32 %v3096, %v3224
      %v3226 = vpop.f32.mrb[0].mxu0
      %v3227 = vpop.f32.mrb[0].mxu0
      %v3228 = vadd.f32 %v3096, %v3227
      %v3229 = vpop.f32.mrb[0].mxu0
      %3230 = vmatprep.mubr.bf16.mxu0 0
      %3231 = vmatmul.mubr.bf16.gmra.mrb[0].mxu0 %v3127
      %v3232 = vpop.f32.mrb[0].mxu0
      %v3233 = vadd.f32 %v3096, %v3232
      %v3234 = vpop.f32.mrb[0].mxu0
      %v3235 = vpop.f32.mrb[0].mxu0
      %v3236 = vadd.f32 %v3096, %v3235
      %v3237 = vpop.f32.mrb[0].mxu0
      %3238 = vmatprep.mubr.bf16.mxu0 0
      %3239 = vmatmul.mubr.bf16.gmra.mrb[0].mxu0 %v3130
      %v3240 = vpop.f32.mrb[0].mxu0
      %v3241 = vadd.f32 %v3096, %v3240
      %v3242 = vpop.f32.mrb[0].mxu0
      %v3243 = vpop.f32.mrb[0].mxu0
      %v3244 = vadd.f32 %v3096, %v3243
      %v3245 = vpop.f32.mrb[0].mxu0
      %3246 = vmatprep.mubr.bf16.mxu0 0
      %3247 = vmatmul.mubr.bf16.gmra.mrb[0].mxu0 %v3133
      %v3248 = vpop.f32.mrb[0].mxu0
      %v3249 = vadd.f32 %v3096, %v3248
      %v3250 = vpop.f32.mrb[0].mxu0
      %v3251 = vpop.f32.mrb[0].mxu0
      %v3252 = vadd.f32 %v3096, %v3251
      %v3253 = vpop.f32.mrb[0].mxu0
      %3254 = vmatprep.mubr.bf16.mxu0 0
      %3255 = vmatmul.mubr.bf16.gmra.mrb[0].mxu0 %v3136
      %v3256 = vpop.f32.mrb[0].mxu0
      %v3257 = vadd.f32 %v3096, %v3256
      %v3258 = vpop.f32.mrb[0].mxu0
      %v3259 = vpop.f32.mrb[0].mxu0
      %v3260 = vadd.f32 %v3096, %v3259
      %v3261 = vpop.f32.mrb[0].mxu0
      %3262 = vmatprep.mubr.bf16.mxu0 0
      %3263 = vmatmul.mubr.bf16.gmra.mrb[0].mxu0 %v3139
      %v3264 = vpop.f32.mrb[0].mxu0
      %v3265 = vadd.f32 %v3096, %v3264
      %v3266 = vpop.f32.mrb[0].mxu0
      %v3267 = vpop.f32.mrb[0].mxu0
      %v3268 = vadd.f32 %v3096, %v3267
      %v3269 = vpop.f32.mrb[0].mxu0
      %3270 = vmatprep.mubr.bf16.mxu0 0
      %3271 = vmatmul.mubr.bf16.gmra.mrb[0].mxu0 %v3142
      %v3272 = vpop.f32.mrb[0].mxu0
      %v3273 = vadd.f32 %v3096, %v3272
      %v3274 = vpop.f32.mrb[0].mxu0
      %v3275 = vpop.f32.mrb[0].mxu0
      %v3276 = vadd.f32 %v3096, %v3275
      %v3277 = vpop.f32.mrb[0].mxu0
      %3278 = vmatprep.mubr.bf16.mxu0 0
      %3279 = vmatmul.mubr.bf16.gmra.mrb[0].mxu0 %v3145
      %v3280 = vpop.f32.mrb[0].mxu0
      %v3281 = vadd.f32 %v3096, %v3280
      %v3282 = vpop.f32.mrb[0].mxu0
      %v3283 = vpop.f32.mrb[0].mxu0
      %v3284 = vadd.f32 %v3096, %v3283
      %v3285 = vpop.f32.mrb[0].mxu0
      %3286 = vmatprep.mubr.bf16.mxu0 0
      %3287 = vmatmul.mubr.bf16.gmra.mrb[0].mxu0 %v3148
      %v3288 = vpop.f32.mrb[0].mxu0
      %v3289 = vadd.f32 %v3096, %v3288
      %v3290 = vpop.f32.mrb[0].mxu0
      %v3291 = vpop.f32.mrb[0].mxu0
      %v3292 = vadd.f32 %v3096, %v3291
      %v3293 = vpop.f32.mrb[0].mxu0
      %3294 = vmatprep.mubr.bf16.mxu0 0
      %3295 = vmatmul.mubr.bf16.gmra.mrb[0].mxu0 %v3151
      %v3296 = vpop.f32.mrb[0].mxu0
      %v3297 = vadd.f32 %v3096, %v3296
      %v3298 = vpop.f32.mrb[0].mxu0
      %v3299 = vpop.f32.mrb[0].mxu0
      %v3300 = vadd.f32 %v3096, %v3299
      %v3301 = vpop.f32.mrb[0].mxu0
      %3302 = vmatprep.mubr.bf16.mxu0 0
      %3303 = vmatmul.mubr.bf16.gmra.mrb[0].mxu0 %v3154
      %v3304 = vpop.f32.mrb[0].mxu0
      %v3305 = vadd.f32 %v3096, %v3304
      %v3306 = vpop.f32.mrb[0].mxu0
      %v3307 = vpop.f32.mrb[0].mxu0
      %v3308 = vadd.f32 %v3096, %v3307
      %v3309 = vpop.f32.mrb[0].mxu0
      %3310 = vmatprep.mubr.bf16.mxu0 0
      %3311 = vmatmul.mubr.bf16.gmra.mrb[0].mxu0 %v3157
      %v3312 = vpop.f32.mrb[0].mxu0
      %v3313 = vadd.f32 %v3096, %v3312
      %v3314 = vpop.f32.mrb[0].mxu0
      %v3315 = vpop.f32.mrb[0].mxu0
      %v3316 = vadd.f32 %v3096, %v3315
      %v3317 = vpop.f32.mrb[0].mxu0
      %3318 = vmatprep.mubr.bf16.mxu0 0
      %3319 = vmatmul.mubr.bf16.gmra.mrb[0].mxu0 %v3160
      %v3320 = vpop.f32.mrb[0].mxu0
      %v3321 = vadd.f32 %v3096, %v3320
      %v3322 = vpop.f32.mrb[0].mxu0
      %v3323 = vpop.f32.mrb[0].mxu0
      %v3324 = vadd.f32 %v3096, %v3323
      %v3325 = vpop.f32.mrb[0].mxu0
      %3326 = vdwg.mxu0
      %v3327 = vmax.f32 %v3201, 0.0
      %v3328 = vmax.f32 %v3204, 0.0
      %v3329 = vmax.f32 %v3209, 0.0
      %v3330 = vmax.f32 %v3212, 0.0
      %v3331 = vmax.f32 %v3217, 0.0
      %v3332 = vmax.f32 %v3220, 0.0
      %v3333 = vmax.f32 %v3225, 0.0
      %v3334 = vmax.f32 %v3228, 0.0
      %v3335 = vmax.f32 %v3233, 0.0
      %v3336 = vmax.f32 %v3236, 0.0
      %v3337 = vmax.f32 %v3241, 0.0
      %v3338 = vmax.f32 %v3244, 0.0
      %v3339 = vmax.f32 %v3249, 0.0
      %v3340 = vmax.f32 %v3252, 0.0
      %v3341 = vmax.f32 %v3257, 0.0
      %v3342 = vmax.f32 %v3260, 0.0
      %v3343 = vmax.f32 %v3265, 0.0
      %v3344 = vmax.f32 %v3268, 0.0
      %v3345 = vmax.f32 %v3273, 0.0
      %v3346 = vmax.f32 %v3276, 0.0
      %v3347 = vmax.f32 %v3281, 0.0
      %v3348 = vmax.f32 %v3284, 0.0
      %v3349 = vmax.f32 %v3289, 0.0
      %v3350 = vmax.f32 %v3292, 0.0
      %v3351 = vmax.f32 %v3297, 0.0
      %v3352 = vmax.f32 %v3300, 0.0
      %v3353 = vmax.f32 %v3305, 0.0
      %v3354 = vmax.f32 %v3308, 0.0
      %v3355 = vmax.f32 %v3313, 0.0
      %v3356 = vmax.f32 %v3316, 0.0
      %v3357 = vmax.f32 %v3321, 0.0
      %v3358 = vmax.f32 %v3324, 0.0
      %v3359 = vpack.c.bf16 %v3328, %v3327
      %v3360 = vpack.c.bf16 %v3330, %v3329
      %v3361 = vpack.c.bf16 %v3332, %v3331
      %v3362 = vpack.c.bf16 %v3334, %v3333
      %v3363 = vpack.c.bf16 %v3336, %v3335
      %v3364 = vpack.c.bf16 %v3338, %v3337
      %v3365 = vpack.c.bf16 %v3340, %v3339
      %v3366 = vpack.c.bf16 %v3342, %v3341
      %v3367 = vpack.c.bf16 %v3344, %v3343
      %v3368 = vpack.c.bf16 %v3346, %v3345
      %v3369 = vpack.c.bf16 %v3348, %v3347
      %v3370 = vpack.c.bf16 %v3350, %v3349
      %v3371 = vpack.c.bf16 %v3352, %v3351
      %v3372 = vpack.c.bf16 %v3354, %v3353
      %v3373 = vpack.c.bf16 %v3356, %v3355
      %v3374 = vpack.c.bf16 %v3358, %v3357
      %v3391 = vunpack.c.l.b16 %v3359
      %v3392 = vunpack.c.h.b16 %v3359
      %v3393 = vunpack.c.l.b16 %v3360
      %v3394 = vunpack.c.h.b16 %v3360
      %v3395 = vunpack.c.l.b16 %v3361
      %v3396 = vunpack.c.h.b16 %v3361
      %v3397 = vunpack.c.l.b16 %v3362
      %v3398 = vunpack.c.h.b16 %v3362
      %v3399 = vunpack.c.l.b16 %v3363
      %v3400 = vunpack.c.h.b16 %v3363
      %v3401 = vunpack.c.l.b16 %v3364
      %v3402 = vunpack.c.h.b16 %v3364
      %v3403 = vunpack.c.l.b16 %v3365
      %v3404 = vunpack.c.h.b16 %v3365
      %v3405 = vunpack.c.l.b16 %v3366
      %v3406 = vunpack.c.h.b16 %v3366
      %v3407 = vunpack.c.l.b16 %v3367
      %v3408 = vunpack.c.h.b16 %v3367
      %v3409 = vunpack.c.l.b16 %v3368
      %v3410 = vunpack.c.h.b16 %v3368
      %v3411 = vunpack.c.l.b16 %v3369
      %v3412 = vunpack.c.h.b16 %v3369
      %v3413 = vunpack.c.l.b16 %v3370
      %v3414 = vunpack.c.h.b16 %v3370
      %v3415 = vunpack.c.l.b16 %v3371
      %v3416 = vunpack.c.h.b16 %v3371
      %v3417 = vunpack.c.l.b16 %v3372
      %v3418 = vunpack.c.h.b16 %v3372
      %v3419 = vunpack.c.l.b16 %v3373
      %v3420 = vunpack.c.h.b16 %v3373
      %v3421 = vunpack.c.l.b16 %v3374
      %v3422 = vunpack.c.h.b16 %v3374
      %v3423 = vpack.c.b16 %v3391, %v3391
      %v3424 = vpack.c.b16 %v3392, %v3392
      %v3425 = vpack.c.b16 %v3393, %v3393
      %v3426 = vpack.c.b16 %v3394, %v3394
      %v3427 = vpack.c.b16 %v3395, %v3395
      %v3428 = vpack.c.b16 %v3396, %v3396
      %v3429 = vpack.c.b16 %v3397, %v3397
      %v3430 = vpack.c.b16 %v3398, %v3398
      %v3431 = vpack.c.b16 %v3399, %v3399
      %v3432 = vpack.c.b16 %v3400, %v3400
      %v3433 = vpack.c.b16 %v3401, %v3401
      %v3434 = vpack.c.b16 %v3402, %v3402
      %v3435 = vpack.c.b16 %v3403, %v3403
      %v3436 = vpack.c.b16 %v3404, %v3404
      %v3437 = vpack.c.b16 %v3405, %v3405
      %v3438 = vpack.c.b16 %v3406, %v3406
      %v3439 = vpack.c.b16 %v3407, %v3407
      %v3440 = vpack.c.b16 %v3408, %v3408
      %v3441 = vpack.c.b16 %v3409, %v3409
      %v3442 = vpack.c.b16 %v3410, %v3410
      %v3443 = vpack.c.b16 %v3411, %v3411
      %v3444 = vpack.c.b16 %v3412, %v3412
      %v3445 = vpack.c.b16 %v3413, %v3413
      %v3446 = vpack.c.b16 %v3414, %v3414
      %v3447 = vpack.c.b16 %v3415, %v3415
      %v3448 = vpack.c.b16 %v3416, %v3416
      %v3449 = vpack.c.b16 %v3417, %v3417
      %v3450 = vpack.c.b16 %v3418, %v3418
      %v3451 = vpack.c.b16 %v3419, %v3419
      %v3452 = vpack.c.b16 %v3420, %v3420
      %v3453 = vpack.c.b16 %v3421, %v3421
      %v3454 = vpack.c.b16 %v3422, %v3422
      %vm3487 = vcmask 27648
      %3488 = vst.msk [vmem:[%s192] sm:$0xf] %vm3487, %v3423
      %3489 = vst.msk [vmem:[%s192 + $0x4] sm:$0xf] %vm3487, %v3424
      %3490 = vst.msk [vmem:[%s192 + $0x8] sm:$0xf] %vm3487, %v3425
      %3491 = vst.msk [vmem:[%s192 + $0xc] sm:$0xf] %vm3487, %v3426
      %3492 = vst.msk [vmem:[%s192 + $0x10] sm:$0xf] %vm3487, %v3427
      %3493 = vst.msk [vmem:[%s192 + $0x14] sm:$0xf] %vm3487, %v3428
      %3494 = vst.msk [vmem:[%s192 + $0x18] sm:$0xf] %vm3487, %v3429
      %3495 = vst.msk [vmem:[%s192 + $0x1c] sm:$0xf] %vm3487, %v3430
      %3496 = vst.msk [vmem:[%s192 + $0x20] sm:$0xf] %vm3487, %v3431
      %3497 = vst.msk [vmem:[%s192 + $0x24] sm:$0xf] %vm3487, %v3432
      %3498 = vst.msk [vmem:[%s192 + $0x28] sm:$0xf] %vm3487, %v3433
      %3499 = vst.msk [vmem:[%s192 + $0x2c] sm:$0xf] %vm3487, %v3434
      %3500 = vst.msk [vmem:[%s192 + $0x30] sm:$0xf] %vm3487, %v3435
      %3501 = vst.msk [vmem:[%s192 + $0x34] sm:$0xf] %vm3487, %v3436
      %3502 = vst.msk [vmem:[%s192 + $0x38] sm:$0xf] %vm3487, %v3437
      %3503 = vst.msk [vmem:[%s192 + $0x3c] sm:$0xf] %vm3487, %v3438
      %3504 = vst.msk [vmem:[%s192 + $0x40] sm:$0xf] %vm3487, %v3439
      %3505 = vst.msk [vmem:[%s192 + $0x44] sm:$0xf] %vm3487, %v3440
      %3506 = vst.msk [vmem:[%s192 + $0x48] sm:$0xf] %vm3487, %v3441
      %3507 = vst.msk [vmem:[%s192 + $0x4c] sm:$0xf] %vm3487, %v3442
      %3508 = vst.msk [vmem:[%s192 + $0x50] sm:$0xf] %vm3487, %v3443
      %3509 = vst.msk [vmem:[%s192 + $0x54] sm:$0xf] %vm3487, %v3444
      %3510 = vst.msk [vmem:[%s192 + $0x58] sm:$0xf] %vm3487, %v3445
      %3511 = vst.msk [vmem:[%s192 + $0x5c] sm:$0xf] %vm3487, %v3446
      %3512 = vst.msk [vmem:[%s192 + $0x60] sm:$0xf] %vm3487, %v3447
      %3513 = vst.msk [vmem:[%s192 + $0x64] sm:$0xf] %vm3487, %v3448
      %3514 = vst.msk [vmem:[%s192 + $0x68] sm:$0xf] %vm3487, %v3449
      %3515 = vst.msk [vmem:[%s192 + $0x6c] sm:$0xf] %vm3487, %v3450
      %3516 = vst.msk [vmem:[%s192 + $0x70] sm:$0xf] %vm3487, %v3451
      %3517 = vst.msk [vmem:[%s192 + $0x74] sm:$0xf] %vm3487, %v3452
      %3518 = vst.msk [vmem:[%s192 + $0x78] sm:$0xf] %vm3487, %v3453
      %3519 = vst.msk [vmem:[%s192 + $0x7c] sm:$0xf] %vm3487, %v3454
      %s3520 = smul.u32 32, %s19
      %p3521 = scmp.lt.s32.totalorder %s18, 1
      %s3522 = scalar_select %p3521, %s18, 1
      %p3523 = scmp.lt.s32.totalorder %s3520, 31
      %s3524 = scalar_select %p3523, %s3520, 31
      %s3525 = smul.addr %s3522, 32
      %s3526 = sadd.s32 %s3524, %s3525
      %s3527 = smul.addr %s3526, 4
      %s3528 = scalar_lea.vmem %s3, %s3527
      // Predicated region
      $region33: #{basic_block_forward.2} parent=31 // pred_check
        %p3529 = pneg %p114
      $region34: #{basic_block_forward.2} parent=31 // pred_check_branch
        %3531 = sbr.rel (%p3529) target = $region36
      $region35: #{basic_block_forward.2} parent=31 // pred_region
        %s3532 = smul.u32 32, %s19
      $region36: #{basic_block_forward.2} parent=31 // pred_fallthru
        _
    $region32: #{basic_block_forward.2} parent=5 // pred_fallthru
      _
    %p3533 = scmp.le.s32.totalorder 2, %s9
    // Predicated region
    $region37: #{basic_block_forward.2} parent=5 // pred_check
      %p3534 = pneg %p3533
    $region38: #{basic_block_forward.2} parent=5 // pred_check_branch
      %3536 = sbr.rel (%p3534) target = $region40
    $region39: #{basic_block_forward.2} parent=5 // pred_region
      %s3537 = ssub.s32 %s9, 2
      // Predicated region
      $region41: #{basic_block_forward.2} parent=39 // pred_check
        %p3538 = pneg %p120
      $region42: #{basic_block_forward.2} parent=39 // pred_check_branch
        %3540 = sbr.rel (%p3538) target = $region44
      $region43: #{basic_block_forward.2} parent=39 // pred_region
        %s3541 = smul.u32 32, %s21
        %p3542 = scmp.lt.s32.totalorder %s20, 1
        %s3543 = scalar_select %p3542, %s20, 1
        %p3544 = scmp.lt.s32.totalorder %s3541, 31
        %s3545 = scalar_select %p3544, %s3541, 31
        %s3546 = smul.addr %s3543, 32
        %s3547 = sadd.s32 %s3545, %s3546
        %s3548 = smul.addr %s3547, 4
        %s3549 = scalar_lea.vmem %s3, %s3548
      $region44: #{basic_block_forward.2} parent=39 // pred_fallthru
        _
    $region40: #{basic_block_forward.2} parent=5 // pred_fallthru
      _
  $region6: #{basic_block_forward.2} parent=0 // loop_footer
    %s13 = sadd.s32 1, %s9
  $region7: #{basic_block_forward.2} parent=0 // loop_footer_branch
    %8 = sbr.rel target = $region3
  $region8: #{basic_block_forward.2} parent=0 // loop_exit
    _

</llo_original>
